<compile_context>
chip_gen: v7x
topology: tpu7x:2x2x1
jax: 0.10.0
libtpu: 0.0.40
codegen_flags: <defaults>
</compile_context>

<pallas_src>
import functools

import jax
import jax.numpy as jnp
from jax import lax
from jax.experimental import pallas as pl
from jax.experimental.pallas import tpu as pltpu


LANE = 128


def _round_up(n, m):
    return ((n + m - 1) // m) * m


def _bigru_head_kernel(seq_len,          # static python int: true sequence length
                       x_ref,            # (Ts, Tb, 2*Ep)  compute dtype: [fwd | time-reversed] lanes
                       wih_ref,          # (2*Ep, 3*D)     compute dtype, D = 2*Hp, gates [r|z|n]
                       whh_ref,          # (D, 3*D)        compute dtype, block-diag per direction
                       bi_ref,           # (1, 3*D) f32    fused biases (r,z: b_i+b_h ; n: b_in)
                       bh_ref,           # (1, 3*D) f32    (zeros for r,z ; b_hn for n)
                       wlin_ref,         # (D, Cp)         compute dtype
                       blin_ref,         # (1, Cp) f32     padded class lanes = -1e30
                       out_ref,          # (Tb, Cp) f32    softmax probabilities
                       h_ref,            # scratch VMEM (Tb, D) f32 — [h_fwd | h_bwd]
                       gi_ref):          # scratch VMEM (Ts, Tb, 3*D) f32 — hoisted input gates
    Ts, Tb, E2 = x_ref.shape
    D = whh_ref.shape[0]                 # 2 * Hp (both directions)
    G3 = whh_ref.shape[1]                # 3 * D
    s_idx = pl.program_id(1)

    @pl.when(s_idx == 0)
    def _init():
        h_ref[...] = jnp.zeros_like(h_ref)

    # ---- Hoisted input->gate projection (both directions): one big MXU matmul ----
    x2d = x_ref[...].reshape(Ts * Tb, E2)
    gi = jnp.dot(x2d, wih_ref[...], preferred_element_type=jnp.float32)
    gi = gi + bi_ref[...]                             # fused b_ih (+ b_hh for r, z)
    gi_ref[...] = gi.reshape(Ts, Tb, G3)

    whh = whh_ref[...]
    bh = jnp.broadcast_to(bh_ref[...], (Tb, G3))      # hoisted broadcast
    seq_start = s_idx * Ts

    def step(t, h):
        gi_t = gi_ref[t]                                               # (Tb, 3*D)
        # single block-diagonal matmul drives BOTH directions' recurrences
        gh = jnp.dot(h.astype(whh.dtype), whh,
                     preferred_element_type=jnp.float32) + bh          # (Tb, 3*D)
        r = jax.nn.sigmoid(gi_t[:, :D] + gh[:, :D])
        z = jax.nn.sigmoid(gi_t[:, D:2 * D] + gh[:, D:2 * D])
        n = jnp.tanh(gi_t[:, 2 * D:] + r * gh[:, 2 * D:])
        h_new = (1.0 - z) * n + z * h
        # Freeze the state on padded timesteps past the true sequence length.
        keep = ((seq_start + t) < seq_len).astype(jnp.float32)
        return keep * h_new + (1.0 - keep) * h

    h_ref[...] = lax.fori_loop(0, Ts, step, h_ref[...], unroll=True)

    @pl.when(s_idx == pl.num_programs(1) - 1)
    def _finalize():
        h = h_ref[...]
        logits = jnp.dot(h.astype(wlin_ref.dtype), wlin_ref[...],
                         preferred_element_type=jnp.float32) + blin_ref[...]
        m = jnp.max(logits, axis=1, keepdims=True)
        e = jnp.exp(logits - m)          # padded class lanes -> exp(-1e30) == 0
        out_ref[...] = e / jnp.sum(e, axis=1, keepdims=True)


@functools.partial(jax.jit, static_argnames=("compute_dtype", "seq_tile"))
def glove_multi_attention_forward(word_ids, mask_ids, params,
                                  compute_dtype=jnp.bfloat16, seq_tile=8):
    """word_ids, mask_ids: (B, S) int32 token / segment ids."""
    w_emb, p_emb, s_emb = params["w_emb"], params["p_emb"], params["s_emb"]
    B, S = word_ids.shape
    E = w_emb.shape[1]
    Hh = params["w_hh_f"].shape[1]        # per-direction hidden = hidden_dim // 2
    C = params["w_lin"].shape[0]

    # ---- MultiEmbedding glue (word + position + segment), plain JAX gathers ----
    pos_ids = jnp.broadcast_to(jnp.arange(S, dtype=jnp.int32)[None, :], (B, S))
    x = (jnp.take(w_emb, word_ids, axis=0)
         + jnp.take(p_emb, pos_ids, axis=0)
         + jnp.take(s_emb, mask_ids, axis=0)).astype(jnp.float32)    # (B, S, E)
    # TODO(synk): F.dropout(p=0.2) is stochastic; identity at inference here.

    # ---- Pad to MXU/vreg friendly shapes ----
    Tb = 16                               # batch tile (bf16-tile exact, >= 8 sublanes)
    Hp = _round_up(Hh, LANE)              # per-direction hidden, 128-lane aligned
    Ep = _round_up(E, LANE)
    Cp = _round_up(C, LANE)
    Bp = _round_up(B, Tb)
    Ts = int(seq_tile)
    Sp = _round_up(S, Ts)
    D = 2 * Hp                            # concat(fwd, bwd) lane width

    # fwd stream + time-reversed stream packed side by side along the lane axis
    xt = jnp.transpose(x, (1, 0, 2))                                  # (S, B, E)
    xf = jnp.pad(xt, ((0, 0), (0, 0), (0, Ep - E)))
    xb = jnp.pad(xt[::-1], ((0, 0), (0, 0), (0, Ep - E)))
    xc = jnp.concatenate([xf, xb], axis=-1)                           # (S, B, 2*Ep)
    xc = jnp.pad(xc, ((0, Sp - S), (0, Bp - B), (0, 0))).astype(compute_dtype)

    # ---- Gate/direction-aligned weight layout (block-diagonal per direction) ----
    wih_p = jnp.zeros((2 * Ep, 3 * D), jnp.float32)
    whh_p = jnp.zeros((D, 3 * D), jnp.float32)
    bi_p = jnp.zeros((1, 3 * D), jnp.float32)
    bh_p = jnp.zeros((1, 3 * D), jnp.float32)
    for d, sfx in enumerate(("f", "b")):
        w_ih = params[f"w_ih_{sfx}"].astype(jnp.float32)   # (3*Hh, E), gate order [r, z, n]
        w_hh = params[f"w_hh_{sfx}"].astype(jnp.float32)   # (3*Hh, Hh)
        b_ih = params[f"b_ih_{sfx}"].astype(jnp.float32)
        b_hh = params[f"b_hh_{sfx}"].astype(jnp.float32)
        for g in range(3):
            col = g * D + d * Hp
            wih_p = wih_p.at[d * Ep:d * Ep + E, col:col + Hh].set(
                w_ih[g * Hh:(g + 1) * Hh, :].T)
            whh_p = whh_p.at[d * Hp:d * Hp + Hh, col:col + Hh].set(
                w_hh[g * Hh:(g + 1) * Hh, :].T)
            bg_i = b_ih[g * Hh:(g + 1) * Hh]
            bg_h = b_hh[g * Hh:(g + 1) * Hh]
            if g < 2:   # r, z gates: both biases fuse into the hoisted projection
                bi_p = bi_p.at[0, col:col + Hh].set(bg_i + bg_h)
            else:       # n gate: b_in with the input projection, b_hn with h @ W_hh
                bi_p = bi_p.at[0, col:col + Hh].set(bg_i)
                bh_p = bh_p.at[0, col:col + Hh].set(bg_h)

    w_lin = params["w_lin"].astype(jnp.float32)                       # (C, 2*Hh)
    b_lin = params["b_lin"].astype(jnp.float32)
    wlin_p = (jnp.zeros((D, Cp), jnp.float32)
              .at[:Hh, :C].set(w_lin[:, :Hh].T)          # forward-direction rows
              .at[Hp:Hp + Hh, :C].set(w_lin[:, Hh:].T))  # backward-direction rows
    blin_p = jnp.full((1, Cp), -1e30, jnp.float32).at[0, :C].set(b_lin)

    wih_p = wih_p.astype(compute_dtype)
    whh_p = whh_p.astype(compute_dtype)
    wlin_p = wlin_p.astype(compute_dtype)

    nb = Bp // Tb
    ns = Sp // Ts
    kernel = functools.partial(_bigru_head_kernel, S)

    out = pl.pallas_call(
        kernel,
        out_shape=jax.ShapeDtypeStruct((Bp, Cp), jnp.float32),
        grid_spec=pltpu.PrefetchScalarGridSpec(
            num_scalar_prefetch=0,
            grid=(nb, ns),
            in_specs=[
                pl.BlockSpec((Ts, Tb, 2 * Ep), lambda b, s: (s, b, 0)),  # x chunk (fwd|bwd)
                pl.BlockSpec((2 * Ep, 3 * D), lambda b, s: (0, 0)),      # W_ih (both dirs)
                pl.BlockSpec((D, 3 * D), lambda b, s: (0, 0)),           # W_hh block-diag
                pl.BlockSpec((1, 3 * D), lambda b, s: (0, 0)),           # fused b_i
                pl.BlockSpec((1, 3 * D), lambda b, s: (0, 0)),           # b_hn
                pl.BlockSpec((D, Cp), lambda b, s: (0, 0)),              # W_lin
                pl.BlockSpec((1, Cp), lambda b, s: (0, 0)),              # b_lin (masked)
            ],
            out_specs=pl.BlockSpec((Tb, Cp), lambda b, s: (b, 0)),
            scratch_shapes=[
                pltpu.VMEM((Tb, D), jnp.float32),             # GRU state [h_fwd | h_bwd]
                pltpu.VMEM((Ts, Tb, 3 * D), jnp.float32),     # hoisted input gates
            ],
        ),
        compiler_params=pltpu.CompilerParams(
            dimension_semantics=("parallel", "arbitrary"),
            vmem_limit_bytes=32 * 1024 * 1024,
        ),
    )(xc, wih_p, whh_p, bi_p, bh_p, wlin_p, blin_p)

    return out[:B, :C]


def init_params(key, vocab_size, pos_size, seg_size, n_class,
                embedding_dim, hidden_dim):
    assert hidden_dim % 2 == 0
    Hh = hidden_dim // 2
    ks = jax.random.split(key, 13)
    bound = 1.0 / jnp.sqrt(Hh)

    def unif(k, shape):
        return jax.random.uniform(k, shape, jnp.float32, -bound, bound)

    return {
        "w_emb": jax.random.normal(ks[0], (vocab_size, embedding_dim), jnp.float32),
        "p_emb": jax.random.normal(ks[1], (pos_size, embedding_dim), jnp.float32),
        "s_emb": jax.random.normal(ks[2], (seg_size, embedding_dim), jnp.float32),
        # PyTorch bidirectional-GRU layout per direction: (3*Hh, in), gates [r, z, n]
        "w_ih_f": unif(ks[3], (3 * Hh, embedding_dim)),
        "w_hh_f": unif(ks[4], (3 * Hh, Hh)),
        "b_ih_f": unif(ks[5], (3 * Hh,)),
        "b_hh_f": unif(ks[6], (3 * Hh,)),
        "w_ih_b": unif(ks[7], (3 * Hh, embedding_dim)),
        "w_hh_b": unif(ks[8], (3 * Hh, Hh)),
        "b_ih_b": unif(ks[9], (3 * Hh,)),
        "b_hh_b": unif(ks[10], (3 * Hh,)),
        "w_lin": unif(ks[11], (n_class, hidden_dim)),
        "b_lin": unif(ks[12], (n_class,)),
    }


def reference_forward(word_ids, mask_ids, params):
    """Pure-JAX f32 reference matching the kernel's forward."""
    w_emb, p_emb, s_emb = params["w_emb"], params["p_emb"], params["s_emb"]
    B, S = word_ids.shape
    pos_ids = jnp.broadcast_to(jnp.arange(S, dtype=jnp.int32)[None, :], (B, S))
    x = (jnp.take(w_emb, word_ids, axis=0)
         + jnp.take(p_emb, pos_ids, axis=0)
         + jnp.take(s_emb, mask_ids, axis=0)).astype(jnp.float32)
    Hh = params["w_hh_f"].shape[1]

    def run_gru(x_seq, w_ih, w_hh, b_ih, b_hh):
        def step(h, xt):
            gi = xt @ w_ih.T + b_ih
            gh = h @ w_hh.T + b_hh
            i_r, i_z, i_n = gi[:, :Hh], gi[:, Hh:2 * Hh], gi[:, 2 * Hh:]
            h_r, h_z, h_n = gh[:, :Hh], gh[:, Hh:2 * Hh], gh[:, 2 * Hh:]
            r = jax.nn.sigmoid(i_r + h_r)
            z = jax.nn.sigmoid(i_z + h_z)
            n = jnp.tanh(i_n + r * h_n)
            return (1.0 - z) * n + z * h, None

        h0 = jnp.zeros((B, Hh), jnp.float32)
        hf, _ = lax.scan(step, h0, x_seq)
        return hf

    xt = jnp.transpose(x, (1, 0, 2))                                  # (S, B, E)
    h_f = run_gru(xt, params["w_ih_f"], params["w_hh_f"],
                  params["b_ih_f"], params["b_hh_f"])
    h_b = run_gru(xt[::-1], params["w_ih_b"], params["w_hh_b"],
                  params["b_ih_b"], params["b_hh_b"])
    h = jnp.concatenate([h_f, h_b], axis=1)
    logits = h @ params["w_lin"].T + params["b_lin"]
    return jax.nn.softmax(logits, axis=1)


if __name__ == "__main__":
    vocab_size, pos_size, seg_size = 50, 64, 8
    n_class = 4
    embedding_dim, hidden_dim = 64, 64
    batch, seq = 2, 8

    key = jax.random.PRNGKey(0)
    k_params, k_ids, k_mask = jax.random.split(key, 3)
    params = init_params(k_params, vocab_size, pos_size, seg_size, n_class,
                         embedding_dim, hidden_dim)
    word_ids = jax.random.randint(k_ids, (batch, seq), 0, vocab_size, jnp.int32)
    mask_ids = jax.random.randint(k_mask, (batch, seq), 0, seg_size, jnp.int32)

    ref = reference_forward(word_ids, mask_ids, params)

    # Exactness check: f32 compute path vs pure-JAX reference.
    out_f32 = glove_multi_attention_forward(word_ids, mask_ids, params,
                                            compute_dtype=jnp.float32)
    out_f32 = jax.block_until_ready(out_f32)
    assert out_f32.shape == (batch, n_class)
    assert jnp.allclose(jnp.sum(out_f32, axis=1), 1.0, atol=1e-5)
    assert jnp.allclose(out_f32, ref, atol=1e-4, rtol=1e-4), \
        float(jnp.max(jnp.abs(out_f32 - ref)))

    # Performance path: bf16 matmul operands, f32 accumulation/gate math.
    out_bf16 = glove_multi_attention_forward(word_ids, mask_ids, params,
                                             compute_dtype=jnp.bfloat16)
    out_bf16 = jax.block_until_ready(out_bf16)
    assert out_bf16.shape == (batch, n_class)
    assert jnp.allclose(jnp.sum(out_bf16, axis=1), 1.0, atol=1e-3)
    assert jnp.allclose(out_bf16, ref, atol=5e-2, rtol=5e-2), \
        float(jnp.max(jnp.abs(out_bf16 - ref)))

    print("KERNEL_OK")
</pallas_src>

<mosaic_0001>
module attributes {stable_mosaic.version = 11 : i64} {
  func.func @_bigru_head_kernel(%arg0: i32, %arg1: i32, %arg2: memref<8x16x256xf32, #tpu.memory_space<vmem>>, %arg3: memref<256x768xf32, #tpu.memory_space<vmem>>, %arg4: memref<256x768xf32, #tpu.memory_space<vmem>>, %arg5: memref<1x768xf32, #tpu.memory_space<vmem>>, %arg6: memref<1x768xf32, #tpu.memory_space<vmem>>, %arg7: memref<256x128xf32, #tpu.memory_space<vmem>>, %arg8: memref<1x128xf32, #tpu.memory_space<vmem>>, %arg9: memref<16x128xf32, #tpu.memory_space<vmem>>, %arg10: memref<16x256xf32, #tpu.memory_space<vmem>>, %arg11: memref<8x16x768xf32, #tpu.memory_space<vmem>>) attributes {dimension_semantics = [#tpu.dimension_semantics<parallel>, #tpu.dimension_semantics<arbitrary>], iteration_bounds = array<i64: 1, 1>, scalar_prefetch = 0 : i64, scratch_operands = 2 : i64, tpu.core_type = #tpu.core_type<tc>, window_params = [{transform_indices = @transform_0, window_bounds = array<i64: 8, 16, 256>}, {pipeline_mode = #tpu.pipeline_mode<synchronous>, transform_indices = @transform_1, window_bounds = array<i64: 256, 768>}, {pipeline_mode = #tpu.pipeline_mode<synchronous>, transform_indices = @transform_2, window_bounds = array<i64: 256, 768>}, {pipeline_mode = #tpu.pipeline_mode<synchronous>, transform_indices = @transform_3, window_bounds = array<i64: 1, 768>}, {pipeline_mode = #tpu.pipeline_mode<synchronous>, transform_indices = @transform_4, window_bounds = array<i64: 1, 768>}, {pipeline_mode = #tpu.pipeline_mode<synchronous>, transform_indices = @transform_5, window_bounds = array<i64: 256, 128>}, {pipeline_mode = #tpu.pipeline_mode<synchronous>, transform_indices = @transform_6, window_bounds = array<i64: 1, 128>}, {transform_indices = @transform_7, window_bounds = array<i64: 16, 128>}]} {
    %c0_i32 = arith.constant 0 : i32
    %0 = arith.cmpi eq, %arg1, %c0_i32 : i32
    %1 = arith.extui %0 : i1 to i32
    %c0_i32_0 = arith.constant 0 : i32
    %2 = arith.cmpi ne, %1, %c0_i32_0 : i32
    scf.if %2 {
      %cst_86 = arith.constant 0.000000e+00 : f32
      %350 = vector.broadcast %cst_86 : f32 to vector<16x256xf32>
      %c0_87 = arith.constant 0 : index
      %c0_88 = arith.constant 0 : index
      %351 = vector.load %arg10[%c0_87, %c0_88] : memref<16x256xf32, #tpu.memory_space<vmem>>, vector<16x256xf32>
      tpu.vector_store %arg10[%c0_87, %c0_88], %350 {strides = array<i32>} : memref<16x256xf32, #tpu.memory_space<vmem>>, vector<16x256xf32>,
    } else {
    }
    %c0 = arith.constant 0 : index
    %c0_1 = arith.constant 0 : index
    %c0_2 = arith.constant 0 : index
    %3 = vector.load %arg2[%c0, %c0_1, %c0_2] : memref<8x16x256xf32, #tpu.memory_space<vmem>>, vector<8x16x256xf32>
    %4 = vector.shape_cast %3 : vector<8x16x256xf32> to vector<128x256xf32>
    %c0_3 = arith.constant 0 : index
    %c0_4 = arith.constant 0 : index
    %5 = vector.load %arg3[%c0_3, %c0_4] : memref<256x768xf32, #tpu.memory_space<vmem>>, vector<256x768xf32>
    %cst = arith.constant dense<0.000000e+00> : vector<128x768xf32>
    %6 = tpu.matmul %4, %5, %cst {dimension_numbers = #tpu.dot_dimension_numbers<[1], [0], [0], [1], [0, 0, 1, 1], [], []>} : vector<128x256xf32>, vector<256x768xf32>, vector<128x768xf32> -> vector<128x768xf32>
    %c0_5 = arith.constant 0 : index
    %c0_6 = arith.constant 0 : index
    %7 = vector.load %arg5[%c0_5, %c0_6] : memref<1x768xf32, #tpu.memory_space<vmem>>, vector<1x768xf32>
    %8 = vector.broadcast %7 : vector<1x768xf32> to vector<128x768xf32>
    %9 = arith.addf %6, %8 : vector<128x768xf32>
    %10 = vector.shape_cast %9 : vector<128x768xf32> to vector<8x16x768xf32>
    %c0_7 = arith.constant 0 : index
    %c0_8 = arith.constant 0 : index
    %c0_9 = arith.constant 0 : index
    %11 = vector.load %arg11[%c0_7, %c0_8, %c0_9] : memref<8x16x768xf32, #tpu.memory_space<vmem>>, vector<8x16x768xf32>
    tpu.vector_store %arg11[%c0_7, %c0_8, %c0_9], %10 {strides = array<i32>} : memref<8x16x768xf32, #tpu.memory_space<vmem>>, vector<8x16x768xf32>,
    %c0_10 = arith.constant 0 : index
    %c0_11 = arith.constant 0 : index
    %12 = vector.load %arg4[%c0_10, %c0_11] : memref<256x768xf32, #tpu.memory_space<vmem>>, vector<256x768xf32>
    %c0_12 = arith.constant 0 : index
    %c0_13 = arith.constant 0 : index
    %13 = vector.load %arg6[%c0_12, %c0_13] : memref<1x768xf32, #tpu.memory_space<vmem>>, vector<1x768xf32>
    %14 = vector.shape_cast %13 : vector<1x768xf32> to vector<1x768xf32>
    %15 = vector.broadcast %14 : vector<1x768xf32> to vector<16x768xf32>
    %c8_i32 = arith.constant 8 : i32
    %16 = arith.muli %arg1, %c8_i32 : i32
    %c0_14 = arith.constant 0 : index
    %c0_15 = arith.constant 0 : index
    %17 = vector.load %arg10[%c0_14, %c0_15] : memref<16x256xf32, #tpu.memory_space<vmem>>, vector<16x256xf32>
    %c0_i32_16 = arith.constant 0 : i32
    %18 = arith.index_cast %c0_i32_16 : i32 to index
    %c0_17 = arith.constant 0 : index
    %c0_18 = arith.constant 0 : index
    %19 = vector.load %arg11[%18, %c0_17, %c0_18] : memref<8x16x768xf32, #tpu.memory_space<vmem>>, vector<1x16x768xf32>
    %20 = vector.shape_cast %19 : vector<1x16x768xf32> to vector<16x768xf32>
    %cst_19 = arith.constant dense<0.000000e+00> : vector<16x768xf32>
    %21 = tpu.matmul %17, %12, %cst_19 {dimension_numbers = #tpu.dot_dimension_numbers<[1], [0], [0], [1], [0, 0, 1, 1], [], []>} : vector<16x256xf32>, vector<256x768xf32>, vector<16x768xf32> -> vector<16x768xf32>
    %22 = arith.addf %21, %15 : vector<16x768xf32>
    %23 = vector.extract_strided_slice %20 {offsets = [0, 0], sizes = [16, 256], strides = [1, 1]} : vector<16x768xf32> to vector<16x256xf32>
    %24 = vector.extract_strided_slice %22 {offsets = [0, 0], sizes = [16, 256], strides = [1, 1]} : vector<16x768xf32> to vector<16x256xf32>
    %25 = arith.addf %23, %24 : vector<16x256xf32>
    %26 = arith.negf %25 : vector<16x256xf32>
    %27 = math.exp %26 : vector<16x256xf32>
    %cst_20 = arith.constant 1.000000e+00 : f32
    %28 = vector.broadcast %cst_20 : f32 to vector<16x256xf32>
    %29 = arith.addf %28, %27 : vector<16x256xf32>
    %30 = arith.divf %28, %29 : vector<16x256xf32>
    %31 = vector.extract_strided_slice %20 {offsets = [0, 256], sizes = [16, 256], strides = [1, 1]} : vector<16x768xf32> to vector<16x256xf32>
    %32 = vector.extract_strided_slice %22 {offsets = [0, 256], sizes = [16, 256], strides = [1, 1]} : vector<16x768xf32> to vector<16x256xf32>
    %33 = arith.addf %31, %32 : vector<16x256xf32>
    %34 = arith.negf %33 : vector<16x256xf32>
    %35 = math.exp %34 : vector<16x256xf32>
    %cst_21 = arith.constant 1.000000e+00 : f32
    %36 = vector.broadcast %cst_21 : f32 to vector<16x256xf32>
    %37 = arith.addf %36, %35 : vector<16x256xf32>
    %38 = arith.divf %36, %37 : vector<16x256xf32>
    %39 = vector.extract_strided_slice %20 {offsets = [0, 512], sizes = [16, 256], strides = [1, 1]} : vector<16x768xf32> to vector<16x256xf32>
    %40 = vector.extract_strided_slice %22 {offsets = [0, 512], sizes = [16, 256], strides = [1, 1]} : vector<16x768xf32> to vector<16x256xf32>
    %41 = arith.mulf %30, %40 : vector<16x256xf32>
    %42 = arith.addf %39, %41 : vector<16x256xf32>
    %43 = math.tanh %42 : vector<16x256xf32>
    %cst_22 = arith.constant 1.000000e+00 : f32
    %44 = vector.broadcast %cst_22 : f32 to vector<16x256xf32>
    %45 = arith.subf %44, %38 : vector<16x256xf32>
    %46 = arith.mulf %45, %43 : vector<16x256xf32>
    %47 = arith.mulf %38, %17 : vector<16x256xf32>
    %48 = arith.addf %46, %47 : vector<16x256xf32>
    %49 = arith.addi %16, %c0_i32_16 : i32
    %c8_i32_23 = arith.constant 8 : i32
    %50 = arith.cmpi slt, %49, %c8_i32_23 : i32
    %51 = arith.extui %50 : i1 to i32
    %52 = arith.sitofp %51 : i32 to f32
    %53 = vector.broadcast %52 : f32 to vector<16x256xf32>
    %54 = arith.mulf %53, %48 : vector<16x256xf32>
    %cst_24 = arith.constant 1.000000e+00 : f32
    %55 = arith.subf %cst_24, %52 : f32
    %56 = vector.broadcast %55 : f32 to vector<16x256xf32>
    %57 = arith.mulf %56, %17 : vector<16x256xf32>
    %58 = arith.addf %54, %57 : vector<16x256xf32>
    %c1_i32 = arith.constant 1 : i32
    %59 = arith.index_cast %c1_i32 : i32 to index
    %c0_25 = arith.constant 0 : index
    %c0_26 = arith.constant 0 : index
    %60 = vector.load %arg11[%59, %c0_25, %c0_26] : memref<8x16x768xf32, #tpu.memory_space<vmem>>, vector<1x16x768xf32>
    %61 = vector.shape_cast %60 : vector<1x16x768xf32> to vector<16x768xf32>
    %cst_27 = arith.constant dense<0.000000e+00> : vector<16x768xf32>
    %62 = tpu.matmul %58, %12, %cst_27 {dimension_numbers = #tpu.dot_dimension_numbers<[1], [0], [0], [1], [0, 0, 1, 1], [], []>} : vector<16x256xf32>, vector<256x768xf32>, vector<16x768xf32> -> vector<16x768xf32>
    %63 = arith.addf %62, %15 : vector<16x768xf32>
    %64 = vector.extract_strided_slice %61 {offsets = [0, 0], sizes = [16, 256], strides = [1, 1]} : vector<16x768xf32> to vector<16x256xf32>
    %65 = vector.extract_strided_slice %63 {offsets = [0, 0], sizes = [16, 256], strides = [1, 1]} : vector<16x768xf32> to vector<16x256xf32>
    %66 = arith.addf %64, %65 : vector<16x256xf32>
    %67 = arith.negf %66 : vector<16x256xf32>
    %68 = math.exp %67 : vector<16x256xf32>
    %cst_28 = arith.constant 1.000000e+00 : f32
    %69 = vector.broadcast %cst_28 : f32 to vector<16x256xf32>
    %70 = arith.addf %69, %68 : vector<16x256xf32>
    %71 = arith.divf %69, %70 : vector<16x256xf32>
    %72 = vector.extract_strided_slice %61 {offsets = [0, 256], sizes = [16, 256], strides = [1, 1]} : vector<16x768xf32> to vector<16x256xf32>
    %73 = vector.extract_strided_slice %63 {offsets = [0, 256], sizes = [16, 256], strides = [1, 1]} : vector<16x768xf32> to vector<16x256xf32>
    %74 = arith.addf %72, %73 : vector<16x256xf32>
    %75 = arith.negf %74 : vector<16x256xf32>
    %76 = math.exp %75 : vector<16x256xf32>
    %cst_29 = arith.constant 1.000000e+00 : f32
    %77 = vector.broadcast %cst_29 : f32 to vector<16x256xf32>
    %78 = arith.addf %77, %76 : vector<16x256xf32>
    %79 = arith.divf %77, %78 : vector<16x256xf32>
    %80 = vector.extract_strided_slice %61 {offsets = [0, 512], sizes = [16, 256], strides = [1, 1]} : vector<16x768xf32> to vector<16x256xf32>
    %81 = vector.extract_strided_slice %63 {offsets = [0, 512], sizes = [16, 256], strides = [1, 1]} : vector<16x768xf32> to vector<16x256xf32>
    %82 = arith.mulf %71, %81 : vector<16x256xf32>
    %83 = arith.addf %80, %82 : vector<16x256xf32>
    %84 = math.tanh %83 : vector<16x256xf32>
    %cst_30 = arith.constant 1.000000e+00 : f32
    %85 = vector.broadcast %cst_30 : f32 to vector<16x256xf32>
    %86 = arith.subf %85, %79 : vector<16x256xf32>
    %87 = arith.mulf %86, %84 : vector<16x256xf32>
    %88 = arith.mulf %79, %58 : vector<16x256xf32>
    %89 = arith.addf %87, %88 : vector<16x256xf32>
    %90 = arith.addi %16, %c1_i32 : i32
    %c8_i32_31 = arith.constant 8 : i32
    %91 = arith.cmpi slt, %90, %c8_i32_31 : i32
    %92 = arith.extui %91 : i1 to i32
    %93 = arith.sitofp %92 : i32 to f32
    %94 = vector.broadcast %93 : f32 to vector<16x256xf32>
    %95 = arith.mulf %94, %89 : vector<16x256xf32>
    %cst_32 = arith.constant 1.000000e+00 : f32
    %96 = arith.subf %cst_32, %93 : f32
    %97 = vector.broadcast %96 : f32 to vector<16x256xf32>
    %98 = arith.mulf %97, %58 : vector<16x256xf32>
    %99 = arith.addf %95, %98 : vector<16x256xf32>
    %c2_i32 = arith.constant 2 : i32
    %100 = arith.index_cast %c2_i32 : i32 to index
    %c0_33 = arith.constant 0 : index
    %c0_34 = arith.constant 0 : index
    %101 = vector.load %arg11[%100, %c0_33, %c0_34] : memref<8x16x768xf32, #tpu.memory_space<vmem>>, vector<1x16x768xf32>
    %102 = vector.shape_cast %101 : vector<1x16x768xf32> to vector<16x768xf32>
    %cst_35 = arith.constant dense<0.000000e+00> : vector<16x768xf32>
    %103 = tpu.matmul %99, %12, %cst_35 {dimension_numbers = #tpu.dot_dimension_numbers<[1], [0], [0], [1], [0, 0, 1, 1], [], []>} : vector<16x256xf32>, vector<256x768xf32>, vector<16x768xf32> -> vector<16x768xf32>
    %104 = arith.addf %103, %15 : vector<16x768xf32>
    %105 = vector.extract_strided_slice %102 {offsets = [0, 0], sizes = [16, 256], strides = [1, 1]} : vector<16x768xf32> to vector<16x256xf32>
    %106 = vector.extract_strided_slice %104 {offsets = [0, 0], sizes = [16, 256], strides = [1, 1]} : vector<16x768xf32> to vector<16x256xf32>
    %107 = arith.addf %105, %106 : vector<16x256xf32>
    %108 = arith.negf %107 : vector<16x256xf32>
    %109 = math.exp %108 : vector<16x256xf32>
    %cst_36 = arith.constant 1.000000e+00 : f32
    %110 = vector.broadcast %cst_36 : f32 to vector<16x256xf32>
    %111 = arith.addf %110, %109 : vector<16x256xf32>
    %112 = arith.divf %110, %111 : vector<16x256xf32>
    %113 = vector.extract_strided_slice %102 {offsets = [0, 256], sizes = [16, 256], strides = [1, 1]} : vector<16x768xf32> to vector<16x256xf32>
    %114 = vector.extract_strided_slice %104 {offsets = [0, 256], sizes = [16, 256], strides = [1, 1]} : vector<16x768xf32> to vector<16x256xf32>
    %115 = arith.addf %113, %114 : vector<16x256xf32>
    %116 = arith.negf %115 : vector<16x256xf32>
    %117 = math.exp %116 : vector<16x256xf32>
    %cst_37 = arith.constant 1.000000e+00 : f32
    %118 = vector.broadcast %cst_37 : f32 to vector<16x256xf32>
    %119 = arith.addf %118, %117 : vector<16x256xf32>
    %120 = arith.divf %118, %119 : vector<16x256xf32>
    %121 = vector.extract_strided_slice %102 {offsets = [0, 512], sizes = [16, 256], strides = [1, 1]} : vector<16x768xf32> to vector<16x256xf32>
    %122 = vector.extract_strided_slice %104 {offsets = [0, 512], sizes = [16, 256], strides = [1, 1]} : vector<16x768xf32> to vector<16x256xf32>
    %123 = arith.mulf %112, %122 : vector<16x256xf32>
    %124 = arith.addf %121, %123 : vector<16x256xf32>
    %125 = math.tanh %124 : vector<16x256xf32>
    %cst_38 = arith.constant 1.000000e+00 : f32
    %126 = vector.broadcast %cst_38 : f32 to vector<16x256xf32>
    %127 = arith.subf %126, %120 : vector<16x256xf32>
    %128 = arith.mulf %127, %125 : vector<16x256xf32>
    %129 = arith.mulf %120, %99 : vector<16x256xf32>
    %130 = arith.addf %128, %129 : vector<16x256xf32>
    %131 = arith.addi %16, %c2_i32 : i32
    %c8_i32_39 = arith.constant 8 : i32
    %132 = arith.cmpi slt, %131, %c8_i32_39 : i32
    %133 = arith.extui %132 : i1 to i32
    %134 = arith.sitofp %133 : i32 to f32
    %135 = vector.broadcast %134 : f32 to vector<16x256xf32>
    %136 = arith.mulf %135, %130 : vector<16x256xf32>
    %cst_40 = arith.constant 1.000000e+00 : f32
    %137 = arith.subf %cst_40, %134 : f32
    %138 = vector.broadcast %137 : f32 to vector<16x256xf32>
    %139 = arith.mulf %138, %99 : vector<16x256xf32>
    %140 = arith.addf %136, %139 : vector<16x256xf32>
    %c3_i32 = arith.constant 3 : i32
    %141 = arith.index_cast %c3_i32 : i32 to index
    %c0_41 = arith.constant 0 : index
    %c0_42 = arith.constant 0 : index
    %142 = vector.load %arg11[%141, %c0_41, %c0_42] : memref<8x16x768xf32, #tpu.memory_space<vmem>>, vector<1x16x768xf32>
    %143 = vector.shape_cast %142 : vector<1x16x768xf32> to vector<16x768xf32>
    %cst_43 = arith.constant dense<0.000000e+00> : vector<16x768xf32>
    %144 = tpu.matmul %140, %12, %cst_43 {dimension_numbers = #tpu.dot_dimension_numbers<[1], [0], [0], [1], [0, 0, 1, 1], [], []>} : vector<16x256xf32>, vector<256x768xf32>, vector<16x768xf32> -> vector<16x768xf32>
    %145 = arith.addf %144, %15 : vector<16x768xf32>
    %146 = vector.extract_strided_slice %143 {offsets = [0, 0], sizes = [16, 256], strides = [1, 1]} : vector<16x768xf32> to vector<16x256xf32>
    %147 = vector.extract_strided_slice %145 {offsets = [0, 0], sizes = [16, 256], strides = [1, 1]} : vector<16x768xf32> to vector<16x256xf32>
    %148 = arith.addf %146, %147 : vector<16x256xf32>
    %149 = arith.negf %148 : vector<16x256xf32>
    %150 = math.exp %149 : vector<16x256xf32>
    %cst_44 = arith.constant 1.000000e+00 : f32
    %151 = vector.broadcast %cst_44 : f32 to vector<16x256xf32>
    %152 = arith.addf %151, %150 : vector<16x256xf32>
    %153 = arith.divf %151, %152 : vector<16x256xf32>
    %154 = vector.extract_strided_slice %143 {offsets = [0, 256], sizes = [16, 256], strides = [1, 1]} : vector<16x768xf32> to vector<16x256xf32>
    %155 = vector.extract_strided_slice %145 {offsets = [0, 256], sizes = [16, 256], strides = [1, 1]} : vector<16x768xf32> to vector<16x256xf32>
    %156 = arith.addf %154, %155 : vector<16x256xf32>
    %157 = arith.negf %156 : vector<16x256xf32>
    %158 = math.exp %157 : vector<16x256xf32>
    %cst_45 = arith.constant 1.000000e+00 : f32
    %159 = vector.broadcast %cst_45 : f32 to vector<16x256xf32>
    %160 = arith.addf %159, %158 : vector<16x256xf32>
    %161 = arith.divf %159, %160 : vector<16x256xf32>
    %162 = vector.extract_strided_slice %143 {offsets = [0, 512], sizes = [16, 256], strides = [1, 1]} : vector<16x768xf32> to vector<16x256xf32>
    %163 = vector.extract_strided_slice %145 {offsets = [0, 512], sizes = [16, 256], strides = [1, 1]} : vector<16x768xf32> to vector<16x256xf32>
    %164 = arith.mulf %153, %163 : vector<16x256xf32>
    %165 = arith.addf %162, %164 : vector<16x256xf32>
    %166 = math.tanh %165 : vector<16x256xf32>
    %cst_46 = arith.constant 1.000000e+00 : f32
    %167 = vector.broadcast %cst_46 : f32 to vector<16x256xf32>
    %168 = arith.subf %167, %161 : vector<16x256xf32>
    %169 = arith.mulf %168, %166 : vector<16x256xf32>
    %170 = arith.mulf %161, %140 : vector<16x256xf32>
    %171 = arith.addf %169, %170 : vector<16x256xf32>
    %172 = arith.addi %16, %c3_i32 : i32
    %c8_i32_47 = arith.constant 8 : i32
    %173 = arith.cmpi slt, %172, %c8_i32_47 : i32
    %174 = arith.extui %173 : i1 to i32
    %175 = arith.sitofp %174 : i32 to f32
    %176 = vector.broadcast %175 : f32 to vector<16x256xf32>
    %177 = arith.mulf %176, %171 : vector<16x256xf32>
    %cst_48 = arith.constant 1.000000e+00 : f32
    %178 = arith.subf %cst_48, %175 : f32
    %179 = vector.broadcast %178 : f32 to vector<16x256xf32>
    %180 = arith.mulf %179, %140 : vector<16x256xf32>
    %181 = arith.addf %177, %180 : vector<16x256xf32>
    %c4_i32 = arith.constant 4 : i32
    %182 = arith.index_cast %c4_i32 : i32 to index
    %c0_49 = arith.constant 0 : index
    %c0_50 = arith.constant 0 : index
    %183 = vector.load %arg11[%182, %c0_49, %c0_50] : memref<8x16x768xf32, #tpu.memory_space<vmem>>, vector<1x16x768xf32>
    %184 = vector.shape_cast %183 : vector<1x16x768xf32> to vector<16x768xf32>
    %cst_51 = arith.constant dense<0.000000e+00> : vector<16x768xf32>
    %185 = tpu.matmul %181, %12, %cst_51 {dimension_numbers = #tpu.dot_dimension_numbers<[1], [0], [0], [1], [0, 0, 1, 1], [], []>} : vector<16x256xf32>, vector<256x768xf32>, vector<16x768xf32> -> vector<16x768xf32>
    %186 = arith.addf %185, %15 : vector<16x768xf32>
    %187 = vector.extract_strided_slice %184 {offsets = [0, 0], sizes = [16, 256], strides = [1, 1]} : vector<16x768xf32> to vector<16x256xf32>
    %188 = vector.extract_strided_slice %186 {offsets = [0, 0], sizes = [16, 256], strides = [1, 1]} : vector<16x768xf32> to vector<16x256xf32>
    %189 = arith.addf %187, %188 : vector<16x256xf32>
    %190 = arith.negf %189 : vector<16x256xf32>
    %191 = math.exp %190 : vector<16x256xf32>
    %cst_52 = arith.constant 1.000000e+00 : f32
    %192 = vector.broadcast %cst_52 : f32 to vector<16x256xf32>
    %193 = arith.addf %192, %191 : vector<16x256xf32>
    %194 = arith.divf %192, %193 : vector<16x256xf32>
    %195 = vector.extract_strided_slice %184 {offsets = [0, 256], sizes = [16, 256], strides = [1, 1]} : vector<16x768xf32> to vector<16x256xf32>
    %196 = vector.extract_strided_slice %186 {offsets = [0, 256], sizes = [16, 256], strides = [1, 1]} : vector<16x768xf32> to vector<16x256xf32>
    %197 = arith.addf %195, %196 : vector<16x256xf32>
    %198 = arith.negf %197 : vector<16x256xf32>
    %199 = math.exp %198 : vector<16x256xf32>
    %cst_53 = arith.constant 1.000000e+00 : f32
    %200 = vector.broadcast %cst_53 : f32 to vector<16x256xf32>
    %201 = arith.addf %200, %199 : vector<16x256xf32>
    %202 = arith.divf %200, %201 : vector<16x256xf32>
    %203 = vector.extract_strided_slice %184 {offsets = [0, 512], sizes = [16, 256], strides = [1, 1]} : vector<16x768xf32> to vector<16x256xf32>
    %204 = vector.extract_strided_slice %186 {offsets = [0, 512], sizes = [16, 256], strides = [1, 1]} : vector<16x768xf32> to vector<16x256xf32>
    %205 = arith.mulf %194, %204 : vector<16x256xf32>
    %206 = arith.addf %203, %205 : vector<16x256xf32>
    %207 = math.tanh %206 : vector<16x256xf32>
    %cst_54 = arith.constant 1.000000e+00 : f32
    %208 = vector.broadcast %cst_54 : f32 to vector<16x256xf32>
    %209 = arith.subf %208, %202 : vector<16x256xf32>
    %210 = arith.mulf %209, %207 : vector<16x256xf32>
    %211 = arith.mulf %202, %181 : vector<16x256xf32>
    %212 = arith.addf %210, %211 : vector<16x256xf32>
    %213 = arith.addi %16, %c4_i32 : i32
    %c8_i32_55 = arith.constant 8 : i32
    %214 = arith.cmpi slt, %213, %c8_i32_55 : i32
    %215 = arith.extui %214 : i1 to i32
    %216 = arith.sitofp %215 : i32 to f32
    %217 = vector.broadcast %216 : f32 to vector<16x256xf32>
    %218 = arith.mulf %217, %212 : vector<16x256xf32>
    %cst_56 = arith.constant 1.000000e+00 : f32
    %219 = arith.subf %cst_56, %216 : f32
    %220 = vector.broadcast %219 : f32 to vector<16x256xf32>
    %221 = arith.mulf %220, %181 : vector<16x256xf32>
    %222 = arith.addf %218, %221 : vector<16x256xf32>
    %c5_i32 = arith.constant 5 : i32
    %223 = arith.index_cast %c5_i32 : i32 to index
    %c0_57 = arith.constant 0 : index
    %c0_58 = arith.constant 0 : index
    %224 = vector.load %arg11[%223, %c0_57, %c0_58] : memref<8x16x768xf32, #tpu.memory_space<vmem>>, vector<1x16x768xf32>
    %225 = vector.shape_cast %224 : vector<1x16x768xf32> to vector<16x768xf32>
    %cst_59 = arith.constant dense<0.000000e+00> : vector<16x768xf32>
    %226 = tpu.matmul %222, %12, %cst_59 {dimension_numbers = #tpu.dot_dimension_numbers<[1], [0], [0], [1], [0, 0, 1, 1], [], []>} : vector<16x256xf32>, vector<256x768xf32>, vector<16x768xf32> -> vector<16x768xf32>
    %227 = arith.addf %226, %15 : vector<16x768xf32>
    %228 = vector.extract_strided_slice %225 {offsets = [0, 0], sizes = [16, 256], strides = [1, 1]} : vector<16x768xf32> to vector<16x256xf32>
    %229 = vector.extract_strided_slice %227 {offsets = [0, 0], sizes = [16, 256], strides = [1, 1]} : vector<16x768xf32> to vector<16x256xf32>
    %230 = arith.addf %228, %229 : vector<16x256xf32>
    %231 = arith.negf %230 : vector<16x256xf32>
    %232 = math.exp %231 : vector<16x256xf32>
    %cst_60 = arith.constant 1.000000e+00 : f32
    %233 = vector.broadcast %cst_60 : f32 to vector<16x256xf32>
    %234 = arith.addf %233, %232 : vector<16x256xf32>
    %235 = arith.divf %233, %234 : vector<16x256xf32>
    %236 = vector.extract_strided_slice %225 {offsets = [0, 256], sizes = [16, 256], strides = [1, 1]} : vector<16x768xf32> to vector<16x256xf32>
    %237 = vector.extract_strided_slice %227 {offsets = [0, 256], sizes = [16, 256], strides = [1, 1]} : vector<16x768xf32> to vector<16x256xf32>
    %238 = arith.addf %236, %237 : vector<16x256xf32>
    %239 = arith.negf %238 : vector<16x256xf32>
    %240 = math.exp %239 : vector<16x256xf32>
    %cst_61 = arith.constant 1.000000e+00 : f32
    %241 = vector.broadcast %cst_61 : f32 to vector<16x256xf32>
    %242 = arith.addf %241, %240 : vector<16x256xf32>
    %243 = arith.divf %241, %242 : vector<16x256xf32>
    %244 = vector.extract_strided_slice %225 {offsets = [0, 512], sizes = [16, 256], strides = [1, 1]} : vector<16x768xf32> to vector<16x256xf32>
    %245 = vector.extract_strided_slice %227 {offsets = [0, 512], sizes = [16, 256], strides = [1, 1]} : vector<16x768xf32> to vector<16x256xf32>
    %246 = arith.mulf %235, %245 : vector<16x256xf32>
    %247 = arith.addf %244, %246 : vector<16x256xf32>
    %248 = math.tanh %247 : vector<16x256xf32>
    %cst_62 = arith.constant 1.000000e+00 : f32
    %249 = vector.broadcast %cst_62 : f32 to vector<16x256xf32>
    %250 = arith.subf %249, %243 : vector<16x256xf32>
    %251 = arith.mulf %250, %248 : vector<16x256xf32>
    %252 = arith.mulf %243, %222 : vector<16x256xf32>
    %253 = arith.addf %251, %252 : vector<16x256xf32>
    %254 = arith.addi %16, %c5_i32 : i32
    %c8_i32_63 = arith.constant 8 : i32
    %255 = arith.cmpi slt, %254, %c8_i32_63 : i32
    %256 = arith.extui %255 : i1 to i32
    %257 = arith.sitofp %256 : i32 to f32
    %258 = vector.broadcast %257 : f32 to vector<16x256xf32>
    %259 = arith.mulf %258, %253 : vector<16x256xf32>
    %cst_64 = arith.constant 1.000000e+00 : f32
    %260 = arith.subf %cst_64, %257 : f32
    %261 = vector.broadcast %260 : f32 to vector<16x256xf32>
    %262 = arith.mulf %261, %222 : vector<16x256xf32>
    %263 = arith.addf %259, %262 : vector<16x256xf32>
    %c6_i32 = arith.constant 6 : i32
    %264 = arith.index_cast %c6_i32 : i32 to index
    %c0_65 = arith.constant 0 : index
    %c0_66 = arith.constant 0 : index
    %265 = vector.load %arg11[%264, %c0_65, %c0_66] : memref<8x16x768xf32, #tpu.memory_space<vmem>>, vector<1x16x768xf32>
    %266 = vector.shape_cast %265 : vector<1x16x768xf32> to vector<16x768xf32>
    %cst_67 = arith.constant dense<0.000000e+00> : vector<16x768xf32>
    %267 = tpu.matmul %263, %12, %cst_67 {dimension_numbers = #tpu.dot_dimension_numbers<[1], [0], [0], [1], [0, 0, 1, 1], [], []>} : vector<16x256xf32>, vector<256x768xf32>, vector<16x768xf32> -> vector<16x768xf32>
    %268 = arith.addf %267, %15 : vector<16x768xf32>
    %269 = vector.extract_strided_slice %266 {offsets = [0, 0], sizes = [16, 256], strides = [1, 1]} : vector<16x768xf32> to vector<16x256xf32>
    %270 = vector.extract_strided_slice %268 {offsets = [0, 0], sizes = [16, 256], strides = [1, 1]} : vector<16x768xf32> to vector<16x256xf32>
    %271 = arith.addf %269, %270 : vector<16x256xf32>
    %272 = arith.negf %271 : vector<16x256xf32>
    %273 = math.exp %272 : vector<16x256xf32>
    %cst_68 = arith.constant 1.000000e+00 : f32
    %274 = vector.broadcast %cst_68 : f32 to vector<16x256xf32>
    %275 = arith.addf %274, %273 : vector<16x256xf32>
    %276 = arith.divf %274, %275 : vector<16x256xf32>
    %277 = vector.extract_strided_slice %266 {offsets = [0, 256], sizes = [16, 256], strides = [1, 1]} : vector<16x768xf32> to vector<16x256xf32>
    %278 = vector.extract_strided_slice %268 {offsets = [0, 256], sizes = [16, 256], strides = [1, 1]} : vector<16x768xf32> to vector<16x256xf32>
    %279 = arith.addf %277, %278 : vector<16x256xf32>
    %280 = arith.negf %279 : vector<16x256xf32>
    %281 = math.exp %280 : vector<16x256xf32>
    %cst_69 = arith.constant 1.000000e+00 : f32
    %282 = vector.broadcast %cst_69 : f32 to vector<16x256xf32>
    %283 = arith.addf %282, %281 : vector<16x256xf32>
    %284 = arith.divf %282, %283 : vector<16x256xf32>
    %285 = vector.extract_strided_slice %266 {offsets = [0, 512], sizes = [16, 256], strides = [1, 1]} : vector<16x768xf32> to vector<16x256xf32>
    %286 = vector.extract_strided_slice %268 {offsets = [0, 512], sizes = [16, 256], strides = [1, 1]} : vector<16x768xf32> to vector<16x256xf32>
    %287 = arith.mulf %276, %286 : vector<16x256xf32>
    %288 = arith.addf %285, %287 : vector<16x256xf32>
    %289 = math.tanh %288 : vector<16x256xf32>
    %cst_70 = arith.constant 1.000000e+00 : f32
    %290 = vector.broadcast %cst_70 : f32 to vector<16x256xf32>
    %291 = arith.subf %290, %284 : vector<16x256xf32>
    %292 = arith.mulf %291, %289 : vector<16x256xf32>
    %293 = arith.mulf %284, %263 : vector<16x256xf32>
    %294 = arith.addf %292, %293 : vector<16x256xf32>
    %295 = arith.addi %16, %c6_i32 : i32
    %c8_i32_71 = arith.constant 8 : i32
    %296 = arith.cmpi slt, %295, %c8_i32_71 : i32
    %297 = arith.extui %296 : i1 to i32
    %298 = arith.sitofp %297 : i32 to f32
    %299 = vector.broadcast %298 : f32 to vector<16x256xf32>
    %300 = arith.mulf %299, %294 : vector<16x256xf32>
    %cst_72 = arith.constant 1.000000e+00 : f32
    %301 = arith.subf %cst_72, %298 : f32
    %302 = vector.broadcast %301 : f32 to vector<16x256xf32>
    %303 = arith.mulf %302, %263 : vector<16x256xf32>
    %304 = arith.addf %300, %303 : vector<16x256xf32>
    %c7_i32 = arith.constant 7 : i32
    %305 = arith.index_cast %c7_i32 : i32 to index
    %c0_73 = arith.constant 0 : index
    %c0_74 = arith.constant 0 : index
    %306 = vector.load %arg11[%305, %c0_73, %c0_74] : memref<8x16x768xf32, #tpu.memory_space<vmem>>, vector<1x16x768xf32>
    %307 = vector.shape_cast %306 : vector<1x16x768xf32> to vector<16x768xf32>
    %cst_75 = arith.constant dense<0.000000e+00> : vector<16x768xf32>
    %308 = tpu.matmul %304, %12, %cst_75 {dimension_numbers = #tpu.dot_dimension_numbers<[1], [0], [0], [1], [0, 0, 1, 1], [], []>} : vector<16x256xf32>, vector<256x768xf32>, vector<16x768xf32> -> vector<16x768xf32>
    %309 = arith.addf %308, %15 : vector<16x768xf32>
    %310 = vector.extract_strided_slice %307 {offsets = [0, 0], sizes = [16, 256], strides = [1, 1]} : vector<16x768xf32> to vector<16x256xf32>
    %311 = vector.extract_strided_slice %309 {offsets = [0, 0], sizes = [16, 256], strides = [1, 1]} : vector<16x768xf32> to vector<16x256xf32>
    %312 = arith.addf %310, %311 : vector<16x256xf32>
    %313 = arith.negf %312 : vector<16x256xf32>
    %314 = math.exp %313 : vector<16x256xf32>
    %cst_76 = arith.constant 1.000000e+00 : f32
    %315 = vector.broadcast %cst_76 : f32 to vector<16x256xf32>
    %316 = arith.addf %315, %314 : vector<16x256xf32>
    %317 = arith.divf %315, %316 : vector<16x256xf32>
    %318 = vector.extract_strided_slice %307 {offsets = [0, 256], sizes = [16, 256], strides = [1, 1]} : vector<16x768xf32> to vector<16x256xf32>
    %319 = vector.extract_strided_slice %309 {offsets = [0, 256], sizes = [16, 256], strides = [1, 1]} : vector<16x768xf32> to vector<16x256xf32>
    %320 = arith.addf %318, %319 : vector<16x256xf32>
    %321 = arith.negf %320 : vector<16x256xf32>
    %322 = math.exp %321 : vector<16x256xf32>
    %cst_77 = arith.constant 1.000000e+00 : f32
    %323 = vector.broadcast %cst_77 : f32 to vector<16x256xf32>
    %324 = arith.addf %323, %322 : vector<16x256xf32>
    %325 = arith.divf %323, %324 : vector<16x256xf32>
    %326 = vector.extract_strided_slice %307 {offsets = [0, 512], sizes = [16, 256], strides = [1, 1]} : vector<16x768xf32> to vector<16x256xf32>
    %327 = vector.extract_strided_slice %309 {offsets = [0, 512], sizes = [16, 256], strides = [1, 1]} : vector<16x768xf32> to vector<16x256xf32>
    %328 = arith.mulf %317, %327 : vector<16x256xf32>
    %329 = arith.addf %326, %328 : vector<16x256xf32>
    %330 = math.tanh %329 : vector<16x256xf32>
    %cst_78 = arith.constant 1.000000e+00 : f32
    %331 = vector.broadcast %cst_78 : f32 to vector<16x256xf32>
    %332 = arith.subf %331, %325 : vector<16x256xf32>
    %333 = arith.mulf %332, %330 : vector<16x256xf32>
    %334 = arith.mulf %325, %304 : vector<16x256xf32>
    %335 = arith.addf %333, %334 : vector<16x256xf32>
    %336 = arith.addi %16, %c7_i32 : i32
    %c8_i32_79 = arith.constant 8 : i32
    %337 = arith.cmpi slt, %336, %c8_i32_79 : i32
    %338 = arith.extui %337 : i1 to i32
    %339 = arith.sitofp %338 : i32 to f32
    %340 = vector.broadcast %339 : f32 to vector<16x256xf32>
    %341 = arith.mulf %340, %335 : vector<16x256xf32>
    %cst_80 = arith.constant 1.000000e+00 : f32
    %342 = arith.subf %cst_80, %339 : f32
    %343 = vector.broadcast %342 : f32 to vector<16x256xf32>
    %344 = arith.mulf %343, %304 : vector<16x256xf32>
    %345 = arith.addf %341, %344 : vector<16x256xf32>
    %c8_i32_81 = arith.constant 8 : i32
    %c0_82 = arith.constant 0 : index
    %c0_83 = arith.constant 0 : index
    %346 = vector.load %arg10[%c0_82, %c0_83] : memref<16x256xf32, #tpu.memory_space<vmem>>, vector<16x256xf32>
    tpu.vector_store %arg10[%c0_82, %c0_83], %345 {strides = array<i32>} : memref<16x256xf32, #tpu.memory_space<vmem>>, vector<16x256xf32>,
    %c0_i32_84 = arith.constant 0 : i32
    %347 = arith.cmpi eq, %arg1, %c0_i32_84 : i32
    %348 = arith.extui %347 : i1 to i32
    %c0_i32_85 = arith.constant 0 : i32
    %349 = arith.cmpi ne, %348, %c0_i32_85 : i32
    scf.if %349 {
      %c0_86 = arith.constant 0 : index
      %c0_87 = arith.constant 0 : index
      %350 = vector.load %arg10[%c0_86, %c0_87] : memref<16x256xf32, #tpu.memory_space<vmem>>, vector<16x256xf32>
      %c0_88 = arith.constant 0 : index
      %c0_89 = arith.constant 0 : index
      %351 = vector.load %arg7[%c0_88, %c0_89] : memref<256x128xf32, #tpu.memory_space<vmem>>, vector<256x128xf32>
      %cst_90 = arith.constant dense<0.000000e+00> : vector<16x128xf32>
      %352 = tpu.matmul %350, %351, %cst_90 {dimension_numbers = #tpu.dot_dimension_numbers<[1], [0], [0], [1], [0, 0, 1, 1], [], []>} : vector<16x256xf32>, vector<256x128xf32>, vector<16x128xf32> -> vector<16x128xf32>
      %c0_91 = arith.constant 0 : index
      %c0_92 = arith.constant 0 : index
      %353 = vector.load %arg8[%c0_91, %c0_92] : memref<1x128xf32, #tpu.memory_space<vmem>>, vector<1x128xf32>
      %354 = vector.broadcast %353 : vector<1x128xf32> to vector<16x128xf32>
      %355 = arith.addf %352, %354 : vector<16x128xf32>
      %cst_93 = arith.constant dense<0xFF800000> : vector<16xf32>
      %356 = vector.multi_reduction <maximumf>, %355, %cst_93 [1] : vector<16x128xf32> to vector<16xf32>
      %357 = vector.shape_cast %356 : vector<16xf32> to vector<16x1xf32>
      %358 = vector.broadcast %357 : vector<16x1xf32> to vector<16x128xf32>
      %359 = arith.subf %355, %358 : vector<16x128xf32>
      %360 = math.exp %359 : vector<16x128xf32>
      %cst_94 = arith.constant dense<0.000000e+00> : vector<16xf32>
      %361 = vector.multi_reduction <add>, %360, %cst_94 [1] : vector<16x128xf32> to vector<16xf32>
      %362 = vector.shape_cast %361 : vector<16xf32> to vector<16x1xf32>
      %363 = vector.broadcast %362 : vector<16x1xf32> to vector<16x128xf32>
      %364 = arith.divf %360, %363 : vector<16x128xf32>
      %c0_95 = arith.constant 0 : index
      %c0_96 = arith.constant 0 : index
      %365 = vector.load %arg9[%c0_95, %c0_96] : memref<16x128xf32, #tpu.memory_space<vmem>>, vector<16x128xf32>
      tpu.vector_store %arg9[%c0_95, %c0_96], %364 {strides = array<i32>} : memref<16x128xf32, #tpu.memory_space<vmem>>, vector<16x128xf32>,
    } else {
    }
    return
  }
  func.func @transform_0(%arg0: i32, %arg1: i32) -> (i32, i32, i32) {
    %c0_i32 = arith.constant 0 : i32
    %c0_i32_0 = arith.constant 0 : i32
    return %arg1, %arg0, %c0_i32 : i32, i32, i32
  }
  func.func @transform_1(%arg0: i32, %arg1: i32) -> (i32, i32) {
    %c0_i32 = arith.constant 0 : i32
    %c0_i32_0 = arith.constant 0 : i32
    %c0_i32_1 = arith.constant 0 : i32
    return %c0_i32, %c0_i32_0 : i32, i32
  }
  func.func @transform_2(%arg0: i32, %arg1: i32) -> (i32, i32) {
    %c0_i32 = arith.constant 0 : i32
    %c0_i32_0 = arith.constant 0 : i32
    %c0_i32_1 = arith.constant 0 : i32
    return %c0_i32, %c0_i32_0 : i32, i32
  }
  func.func @transform_3(%arg0: i32, %arg1: i32) -> (i32, i32) {
    %c0_i32 = arith.constant 0 : i32
    %c0_i32_0 = arith.constant 0 : i32
    %c0_i32_1 = arith.constant 0 : i32
    return %c0_i32, %c0_i32_0 : i32, i32
  }
  func.func @transform_4(%arg0: i32, %arg1: i32) -> (i32, i32) {
    %c0_i32 = arith.constant 0 : i32
    %c0_i32_0 = arith.constant 0 : i32
    %c0_i32_1 = arith.constant 0 : i32
    return %c0_i32, %c0_i32_0 : i32, i32
  }
  func.func @transform_5(%arg0: i32, %arg1: i32) -> (i32, i32) {
    %c0_i32 = arith.constant 0 : i32
    %c0_i32_0 = arith.constant 0 : i32
    %c0_i32_1 = arith.constant 0 : i32
    return %c0_i32, %c0_i32_0 : i32, i32
  }
  func.func @transform_6(%arg0: i32, %arg1: i32) -> (i32, i32) {
    %c0_i32 = arith.constant 0 : i32
    %c0_i32_0 = arith.constant 0 : i32
    %c0_i32_1 = arith.constant 0 : i32
    return %c0_i32, %c0_i32_0 : i32, i32
  }
  func.func @transform_7(%arg0: i32, %arg1: i32) -> (i32, i32) {
    %c0_i32 = arith.constant 0 : i32
    %c0_i32_0 = arith.constant 0 : i32
    return %arg0, %c0_i32 : i32, i32
  }
}

</mosaic_0001>

<llo_original>
// kernel: glove_multi_attention_forward.1
$region0: #{glove_multi_attention_forward.1}
  #allocation0 [shape = 'u32[]', space=smem, size = 0x4, offset = 0x4, fixed_abs, tag = 'smem constant byte address 0x4 - core index']
  #allocation1 [shape = 'u32[144,128]{1,0:T(1,128)}', space=vmem, size = 0x12000, scoped, tag = 'internal scratch']
  #allocation2 [shape = 'f32[16,256]{1,0:T(8,128)}', space=vmem, size = 0x4000, scoped, tag = 'scratch operand']
  #allocation3 [shape = 'f32[8,16,768]{2,1,0:T(8,128)}', space=vmem, size = 0x60000, scoped, tag = 'scratch operand']
  %s0 = inlined_call_operand.vmem [shape: f32[8,16,256], index: 0, kind: input, shape index: {}]
  %s1 = inlined_call_operand.vmem [shape: f32[256,768], index: 1, kind: input, shape index: {}]
  %s2 = inlined_call_operand.vmem [shape: f32[256,768], index: 2, kind: input, shape index: {}]
  %s3 = inlined_call_operand.vmem [shape: f32[1,768], index: 3, kind: input, shape index: {}]
  %s4 = inlined_call_operand.vmem [shape: f32[1,768], index: 4, kind: input, shape index: {}]
  %s5 = inlined_call_operand.vmem [shape: f32[256,128], index: 5, kind: input, shape index: {}]
  %s6 = inlined_call_operand.vmem [shape: f32[1,128], index: 6, kind: input, shape index: {}]
  %s7 = inlined_call_operand.vmem [shape: f32[16,128], index: 7, kind: output, shape index: {}]
  %s8 = sld [smem:[#allocation0]]
  $region46: #{glove_multi_attention_forward.1} parent=0
    _
  %s10 = ssub.s32 1, %s8
  %s11 = scalar_select 0, %s10, %s8
  // Predicated region
  $region2: #{glove_multi_attention_forward.1} parent=0 // pred_check
    _
  $region3: #{glove_multi_attention_forward.1} parent=0 // pred_check_branch
    %13 = sbr.rel (0) target = $region5
  $region4: #{glove_multi_attention_forward.1} parent=0 // pred_region
    _
  $region5: #{glove_multi_attention_forward.1} parent=0 // pred_fallthru
    _
  // Predicated region
  $region6: #{glove_multi_attention_forward.1} parent=0 // pred_check
    _
  $region7: #{glove_multi_attention_forward.1} parent=0 // pred_check_branch
    %15 = sbr.rel (0) target = $region9
  $region8: #{glove_multi_attention_forward.1} parent=0 // pred_region
    _
  $region9: #{glove_multi_attention_forward.1} parent=0 // pred_fallthru
    _
  // Predicated region
  $region10: #{glove_multi_attention_forward.1} parent=0 // pred_check
    _
  $region11: #{glove_multi_attention_forward.1} parent=0 // pred_check_branch
    %17 = sbr.rel (0) target = $region13
  $region12: #{glove_multi_attention_forward.1} parent=0 // pred_region
    _
  $region13: #{glove_multi_attention_forward.1} parent=0 // pred_fallthru
    _
  // Predicated region
  $region14: #{glove_multi_attention_forward.1} parent=0 // pred_check
    _
  $region15: #{glove_multi_attention_forward.1} parent=0 // pred_check_branch
    %19 = sbr.rel (0) target = $region17
  $region16: #{glove_multi_attention_forward.1} parent=0 // pred_region
    _
  $region17: #{glove_multi_attention_forward.1} parent=0 // pred_fallthru
    _
  // Predicated region
  $region18: #{glove_multi_attention_forward.1} parent=0 // pred_check
    _
  $region19: #{glove_multi_attention_forward.1} parent=0 // pred_check_branch
    %21 = sbr.rel (0) target = $region21
  $region20: #{glove_multi_attention_forward.1} parent=0 // pred_region
    _
  $region21: #{glove_multi_attention_forward.1} parent=0 // pred_fallthru
    _
  // Predicated region
  $region22: #{glove_multi_attention_forward.1} parent=0 // pred_check
    _
  $region23: #{glove_multi_attention_forward.1} parent=0 // pred_check_branch
    %23 = sbr.rel (0) target = $region25
  $region24: #{glove_multi_attention_forward.1} parent=0 // pred_region
    _
  $region25: #{glove_multi_attention_forward.1} parent=0 // pred_fallthru
    _
  // Predicated region
  $region26: #{glove_multi_attention_forward.1} parent=0 // pred_check
    _
  $region27: #{glove_multi_attention_forward.1} parent=0 // pred_check_branch
    %25 = sbr.rel (0) target = $region29
  $region28: #{glove_multi_attention_forward.1} parent=0 // pred_region
    _
  $region29: #{glove_multi_attention_forward.1} parent=0 // pred_fallthru
    _
  %p26 = scmp.eq.s32.totalorder 0, 0
  // Predicated region
  $region30: #{glove_multi_attention_forward.1} parent=0 // pred_check
    %p27 = pneg %p26
  $region31: #{glove_multi_attention_forward.1} parent=0 // pred_check_branch
    %29 = sbr.rel (%p27) target = $region33
  $region32: #{glove_multi_attention_forward.1} parent=0 // pred_region
    %30 = vst [vmem:[#allocation2] sm:$0xff] 0.0
    %31 = vst [vmem:[#allocation2 + $0x8] sm:$0xff] 0.0
    %32 = vst [vmem:[#allocation2 + $0x10] sm:$0xff] 0.0
    %33 = vst [vmem:[#allocation2 + $0x18] sm:$0xff] 0.0
  $region33: #{glove_multi_attention_forward.1} parent=0 // pred_fallthru
    _
  %v34 = vld [vmem:[%s0] sm:$0xff]
  %v35 = vld [vmem:[%s0 + $0x8] sm:$0xff]
  %v36 = vld [vmem:[%s0 + $0x10] sm:$0xff]
  %v37 = vld [vmem:[%s0 + $0x18] sm:$0xff]
  %v38 = vld [vmem:[%s0 + $0x20] sm:$0xff]
  %v39 = vld [vmem:[%s0 + $0x28] sm:$0xff]
  %v40 = vld [vmem:[%s0 + $0x30] sm:$0xff]
  %v41 = vld [vmem:[%s0 + $0x38] sm:$0xff]
  %v42 = vld [vmem:[%s0 + $0x40] sm:$0xff]
  %v43 = vld [vmem:[%s0 + $0x48] sm:$0xff]
  %v44 = vld [vmem:[%s0 + $0x50] sm:$0xff]
  %v45 = vld [vmem:[%s0 + $0x58] sm:$0xff]
  %v46 = vld [vmem:[%s0 + $0x60] sm:$0xff]
  %v47 = vld [vmem:[%s0 + $0x68] sm:$0xff]
  %v48 = vld [vmem:[%s0 + $0x70] sm:$0xff]
  %v49 = vld [vmem:[%s0 + $0x78] sm:$0xff]
  %v50 = vld [vmem:[%s0 + $0x80] sm:$0xff]
  %v51 = vld [vmem:[%s0 + $0x88] sm:$0xff]
  %v52 = vld [vmem:[%s0 + $0x90] sm:$0xff]
  %v53 = vld [vmem:[%s0 + $0x98] sm:$0xff]
  %v54 = vld [vmem:[%s0 + $0xa0] sm:$0xff]
  %v55 = vld [vmem:[%s0 + $0xa8] sm:$0xff]
  %v56 = vld [vmem:[%s0 + $0xb0] sm:$0xff]
  %v57 = vld [vmem:[%s0 + $0xb8] sm:$0xff]
  %v58 = vld [vmem:[%s0 + $0xc0] sm:$0xff]
  %v59 = vld [vmem:[%s0 + $0xc8] sm:$0xff]
  %v60 = vld [vmem:[%s0 + $0xd0] sm:$0xff]
  %v61 = vld [vmem:[%s0 + $0xd8] sm:$0xff]
  %v62 = vld [vmem:[%s0 + $0xe0] sm:$0xff]
  %v63 = vld [vmem:[%s0 + $0xe8] sm:$0xff]
  %v64 = vld [vmem:[%s0 + $0xf0] sm:$0xff]
  %v65 = vld [vmem:[%s0 + $0xf8] sm:$0xff]
  %v66 = vld [vmem:[%s1] sm:$0xff]
  %v67 = vld [vmem:[%s1 + $0x8] sm:$0xff]
  %v68 = vld [vmem:[%s1 + $0x10] sm:$0xff]
  %v69 = vld [vmem:[%s1 + $0x18] sm:$0xff]
  %v70 = vld [vmem:[%s1 + $0x20] sm:$0xff]
  %v71 = vld [vmem:[%s1 + $0x28] sm:$0xff]
  %v72 = vld [vmem:[%s1 + $0x30] sm:$0xff]
  %v73 = vld [vmem:[%s1 + $0x38] sm:$0xff]
  %v74 = vld [vmem:[%s1 + $0x40] sm:$0xff]
  %v75 = vld [vmem:[%s1 + $0x48] sm:$0xff]
  %v76 = vld [vmem:[%s1 + $0x50] sm:$0xff]
  %v77 = vld [vmem:[%s1 + $0x58] sm:$0xff]
  %v78 = vld [vmem:[%s1 + $0x60] sm:$0xff]
  %v79 = vld [vmem:[%s1 + $0x68] sm:$0xff]
  %v80 = vld [vmem:[%s1 + $0x70] sm:$0xff]
  %v81 = vld [vmem:[%s1 + $0x78] sm:$0xff]
  %v82 = vld [vmem:[%s1 + $0x80] sm:$0xff]
  %v83 = vld [vmem:[%s1 + $0x88] sm:$0xff]
  %v84 = vld [vmem:[%s1 + $0x90] sm:$0xff]
  %v85 = vld [vmem:[%s1 + $0x98] sm:$0xff]
  %v86 = vld [vmem:[%s1 + $0xa0] sm:$0xff]
  %v87 = vld [vmem:[%s1 + $0xa8] sm:$0xff]
  %v88 = vld [vmem:[%s1 + $0xb0] sm:$0xff]
  %v89 = vld [vmem:[%s1 + $0xb8] sm:$0xff]
  %v90 = vld [vmem:[%s1 + $0xc0] sm:$0xff]
  %v91 = vld [vmem:[%s1 + $0xc8] sm:$0xff]
  %v92 = vld [vmem:[%s1 + $0xd0] sm:$0xff]
  %v93 = vld [vmem:[%s1 + $0xd8] sm:$0xff]
  %v94 = vld [vmem:[%s1 + $0xe0] sm:$0xff]
  %v95 = vld [vmem:[%s1 + $0xe8] sm:$0xff]
  %v96 = vld [vmem:[%s1 + $0xf0] sm:$0xff]
  %v97 = vld [vmem:[%s1 + $0xf8] sm:$0xff]
  %v98 = vld [vmem:[%s1 + $0x100] sm:$0xff]
  %v99 = vld [vmem:[%s1 + $0x108] sm:$0xff]
  %v100 = vld [vmem:[%s1 + $0x110] sm:$0xff]
  %v101 = vld [vmem:[%s1 + $0x118] sm:$0xff]
  %v102 = vld [vmem:[%s1 + $0x120] sm:$0xff]
  %v103 = vld [vmem:[%s1 + $0x128] sm:$0xff]
  %v104 = vld [vmem:[%s1 + $0x130] sm:$0xff]
  %v105 = vld [vmem:[%s1 + $0x138] sm:$0xff]
  %v106 = vld [vmem:[%s1 + $0x140] sm:$0xff]
  %v107 = vld [vmem:[%s1 + $0x148] sm:$0xff]
  %v108 = vld [vmem:[%s1 + $0x150] sm:$0xff]
  %v109 = vld [vmem:[%s1 + $0x158] sm:$0xff]
  %v110 = vld [vmem:[%s1 + $0x160] sm:$0xff]
  %v111 = vld [vmem:[%s1 + $0x168] sm:$0xff]
  %v112 = vld [vmem:[%s1 + $0x170] sm:$0xff]
  %v113 = vld [vmem:[%s1 + $0x178] sm:$0xff]
  %v114 = vld [vmem:[%s1 + $0x180] sm:$0xff]
  %v115 = vld [vmem:[%s1 + $0x188] sm:$0xff]
  %v116 = vld [vmem:[%s1 + $0x190] sm:$0xff]
  %v117 = vld [vmem:[%s1 + $0x198] sm:$0xff]
  %v118 = vld [vmem:[%s1 + $0x1a0] sm:$0xff]
  %v119 = vld [vmem:[%s1 + $0x1a8] sm:$0xff]
  %v120 = vld [vmem:[%s1 + $0x1b0] sm:$0xff]
  %v121 = vld [vmem:[%s1 + $0x1b8] sm:$0xff]
  %v122 = vld [vmem:[%s1 + $0x1c0] sm:$0xff]
  %v123 = vld [vmem:[%s1 + $0x1c8] sm:$0xff]
  %v124 = vld [vmem:[%s1 + $0x1d0] sm:$0xff]
  %v125 = vld [vmem:[%s1 + $0x1d8] sm:$0xff]
  %v126 = vld [vmem:[%s1 + $0x1e0] sm:$0xff]
  %v127 = vld [vmem:[%s1 + $0x1e8] sm:$0xff]
  %v128 = vld [vmem:[%s1 + $0x1f0] sm:$0xff]
  %v129 = vld [vmem:[%s1 + $0x1f8] sm:$0xff]
  %v130 = vld [vmem:[%s1 + $0x200] sm:$0xff]
  %v131 = vld [vmem:[%s1 + $0x208] sm:$0xff]
  %v132 = vld [vmem:[%s1 + $0x210] sm:$0xff]
  %v133 = vld [vmem:[%s1 + $0x218] sm:$0xff]
  %v134 = vld [vmem:[%s1 + $0x220] sm:$0xff]
  %v135 = vld [vmem:[%s1 + $0x228] sm:$0xff]
  %v136 = vld [vmem:[%s1 + $0x230] sm:$0xff]
  %v137 = vld [vmem:[%s1 + $0x238] sm:$0xff]
  %v138 = vld [vmem:[%s1 + $0x240] sm:$0xff]
  %v139 = vld [vmem:[%s1 + $0x248] sm:$0xff]
  %v140 = vld [vmem:[%s1 + $0x250] sm:$0xff]
  %v141 = vld [vmem:[%s1 + $0x258] sm:$0xff]
  %v142 = vld [vmem:[%s1 + $0x260] sm:$0xff]
  %v143 = vld [vmem:[%s1 + $0x268] sm:$0xff]
  %v144 = vld [vmem:[%s1 + $0x270] sm:$0xff]
  %v145 = vld [vmem:[%s1 + $0x278] sm:$0xff]
  %v146 = vld [vmem:[%s1 + $0x280] sm:$0xff]
  %v147 = vld [vmem:[%s1 + $0x288] sm:$0xff]
  %v148 = vld [vmem:[%s1 + $0x290] sm:$0xff]
  %v149 = vld [vmem:[%s1 + $0x298] sm:$0xff]
  %v150 = vld [vmem:[%s1 + $0x2a0] sm:$0xff]
  %v151 = vld [vmem:[%s1 + $0x2a8] sm:$0xff]
  %v152 = vld [vmem:[%s1 + $0x2b0] sm:$0xff]
  %v153 = vld [vmem:[%s1 + $0x2b8] sm:$0xff]
  %v154 = vld [vmem:[%s1 + $0x2c0] sm:$0xff]
  %v155 = vld [vmem:[%s1 + $0x2c8] sm:$0xff]
  %v156 = vld [vmem:[%s1 + $0x2d0] sm:$0xff]
  %v157 = vld [vmem:[%s1 + $0x2d8] sm:$0xff]
  %v158 = vld [vmem:[%s1 + $0x2e0] sm:$0xff]
  %v159 = vld [vmem:[%s1 + $0x2e8] sm:$0xff]
  %v160 = vld [vmem:[%s1 + $0x2f0] sm:$0xff]
  %v161 = vld [vmem:[%s1 + $0x2f8] sm:$0xff]
  %v162 = vld [vmem:[%s1 + $0x300] sm:$0xff]
  %v163 = vld [vmem:[%s1 + $0x308] sm:$0xff]
  %v164 = vld [vmem:[%s1 + $0x310] sm:$0xff]
  %v165 = vld [vmem:[%s1 + $0x318] sm:$0xff]
  %v166 = vld [vmem:[%s1 + $0x320] sm:$0xff]
  %v167 = vld [vmem:[%s1 + $0x328] sm:$0xff]
  %v168 = vld [vmem:[%s1 + $0x330] sm:$0xff]
  %v169 = vld [vmem:[%s1 + $0x338] sm:$0xff]
  %v170 = vld [vmem:[%s1 + $0x340] sm:$0xff]
  %v171 = vld [vmem:[%s1 + $0x348] sm:$0xff]
  %v172 = vld [vmem:[%s1 + $0x350] sm:$0xff]
  %v173 = vld [vmem:[%s1 + $0x358] sm:$0xff]
  %v174 = vld [vmem:[%s1 + $0x360] sm:$0xff]
  %v175 = vld [vmem:[%s1 + $0x368] sm:$0xff]
  %v176 = vld [vmem:[%s1 + $0x370] sm:$0xff]
  %v177 = vld [vmem:[%s1 + $0x378] sm:$0xff]
  %v178 = vld [vmem:[%s1 + $0x380] sm:$0xff]
  %v179 = vld [vmem:[%s1 + $0x388] sm:$0xff]
  %v180 = vld [vmem:[%s1 + $0x390] sm:$0xff]
  %v181 = vld [vmem:[%s1 + $0x398] sm:$0xff]
  %v182 = vld [vmem:[%s1 + $0x3a0] sm:$0xff]
  %v183 = vld [vmem:[%s1 + $0x3a8] sm:$0xff]
  %v184 = vld [vmem:[%s1 + $0x3b0] sm:$0xff]
  %v185 = vld [vmem:[%s1 + $0x3b8] sm:$0xff]
  %v186 = vld [vmem:[%s1 + $0x3c0] sm:$0xff]
  %v187 = vld [vmem:[%s1 + $0x3c8] sm:$0xff]
  %v188 = vld [vmem:[%s1 + $0x3d0] sm:$0xff]
  %v189 = vld [vmem:[%s1 + $0x3d8] sm:$0xff]
  %v190 = vld [vmem:[%s1 + $0x3e0] sm:$0xff]
  %v191 = vld [vmem:[%s1 + $0x3e8] sm:$0xff]
  %v192 = vld [vmem:[%s1 + $0x3f0] sm:$0xff]
  %v193 = vld [vmem:[%s1 + $0x3f8] sm:$0xff]
  %v194 = vld [vmem:[%s1 + $0x400] sm:$0xff]
  %v195 = vld [vmem:[%s1 + $0x408] sm:$0xff]
  %v196 = vld [vmem:[%s1 + $0x410] sm:$0xff]
  %v197 = vld [vmem:[%s1 + $0x418] sm:$0xff]
  %v198 = vld [vmem:[%s1 + $0x420] sm:$0xff]
  %v199 = vld [vmem:[%s1 + $0x428] sm:$0xff]
  %v200 = vld [vmem:[%s1 + $0x430] sm:$0xff]
  %v201 = vld [vmem:[%s1 + $0x438] sm:$0xff]
  %v202 = vld [vmem:[%s1 + $0x440] sm:$0xff]
  %v203 = vld [vmem:[%s1 + $0x448] sm:$0xff]
  %v204 = vld [vmem:[%s1 + $0x450] sm:$0xff]
  %v205 = vld [vmem:[%s1 + $0x458] sm:$0xff]
  %v206 = vld [vmem:[%s1 + $0x460] sm:$0xff]
  %v207 = vld [vmem:[%s1 + $0x468] sm:$0xff]
  %v208 = vld [vmem:[%s1 + $0x470] sm:$0xff]
  %v209 = vld [vmem:[%s1 + $0x478] sm:$0xff]
  %v210 = vld [vmem:[%s1 + $0x480] sm:$0xff]
  %v211 = vld [vmem:[%s1 + $0x488] sm:$0xff]
  %v212 = vld [vmem:[%s1 + $0x490] sm:$0xff]
  %v213 = vld [vmem:[%s1 + $0x498] sm:$0xff]
  %v214 = vld [vmem:[%s1 + $0x4a0] sm:$0xff]
  %v215 = vld [vmem:[%s1 + $0x4a8] sm:$0xff]
  %v216 = vld [vmem:[%s1 + $0x4b0] sm:$0xff]
  %v217 = vld [vmem:[%s1 + $0x4b8] sm:$0xff]
  %v218 = vld [vmem:[%s1 + $0x4c0] sm:$0xff]
  %v219 = vld [vmem:[%s1 + $0x4c8] sm:$0xff]
  %v220 = vld [vmem:[%s1 + $0x4d0] sm:$0xff]
  %v221 = vld [vmem:[%s1 + $0x4d8] sm:$0xff]
  %v222 = vld [vmem:[%s1 + $0x4e0] sm:$0xff]
  %v223 = vld [vmem:[%s1 + $0x4e8] sm:$0xff]
  %v224 = vld [vmem:[%s1 + $0x4f0] sm:$0xff]
  %v225 = vld [vmem:[%s1 + $0x4f8] sm:$0xff]
  %v226 = vld [vmem:[%s1 + $0x500] sm:$0xff]
  %v227 = vld [vmem:[%s1 + $0x508] sm:$0xff]
  %v228 = vld [vmem:[%s1 + $0x510] sm:$0xff]
  %v229 = vld [vmem:[%s1 + $0x518] sm:$0xff]
  %v230 = vld [vmem:[%s1 + $0x520] sm:$0xff]
  %v231 = vld [vmem:[%s1 + $0x528] sm:$0xff]
  %v232 = vld [vmem:[%s1 + $0x530] sm:$0xff]
  %v233 = vld [vmem:[%s1 + $0x538] sm:$0xff]
  %v234 = vld [vmem:[%s1 + $0x540] sm:$0xff]
  %v235 = vld [vmem:[%s1 + $0x548] sm:$0xff]
  %v236 = vld [vmem:[%s1 + $0x550] sm:$0xff]
  %v237 = vld [vmem:[%s1 + $0x558] sm:$0xff]
  %v238 = vld [vmem:[%s1 + $0x560] sm:$0xff]
  %v239 = vld [vmem:[%s1 + $0x568] sm:$0xff]
  %v240 = vld [vmem:[%s1 + $0x570] sm:$0xff]
  %v241 = vld [vmem:[%s1 + $0x578] sm:$0xff]
  %v242 = vld [vmem:[%s1 + $0x580] sm:$0xff]
  %v243 = vld [vmem:[%s1 + $0x588] sm:$0xff]
  %v244 = vld [vmem:[%s1 + $0x590] sm:$0xff]
  %v245 = vld [vmem:[%s1 + $0x598] sm:$0xff]
  %v246 = vld [vmem:[%s1 + $0x5a0] sm:$0xff]
  %v247 = vld [vmem:[%s1 + $0x5a8] sm:$0xff]
  %v248 = vld [vmem:[%s1 + $0x5b0] sm:$0xff]
  %v249 = vld [vmem:[%s1 + $0x5b8] sm:$0xff]
  %v250 = vld [vmem:[%s1 + $0x5c0] sm:$0xff]
  %v251 = vld [vmem:[%s1 + $0x5c8] sm:$0xff]
  %v252 = vld [vmem:[%s1 + $0x5d0] sm:$0xff]
  %v253 = vld [vmem:[%s1 + $0x5d8] sm:$0xff]
  %v254 = vld [vmem:[%s1 + $0x5e0] sm:$0xff]
  %v255 = vld [vmem:[%s1 + $0x5e8] sm:$0xff]
  %v256 = vld [vmem:[%s1 + $0x5f0] sm:$0xff]
  %v257 = vld [vmem:[%s1 + $0x5f8] sm:$0xff]
  %v258 = vld [vmem:[%s3] sm:$0x3f]
  %v260 = vlaneseq
  %v261 = vshrl.u32 %v260, 7
  %v262 = vsub.s32 0, %v261
  %v263 = vrot.slane %v258, %v262
  %v264 = vlaneseq
  %v265 = vshrl.u32 %v264, 7
  %v266 = vsub.s32 1, %v265
  %v267 = vrot.slane %v258, %v266
  %v268 = vlaneseq
  %v269 = vshrl.u32 %v268, 7
  %v270 = vsub.s32 2, %v269
  %v271 = vrot.slane %v258, %v270
  %v272 = vlaneseq
  %v273 = vshrl.u32 %v272, 7
  %v274 = vsub.s32 3, %v273
  %v275 = vrot.slane %v258, %v274
  %v276 = vlaneseq
  %v277 = vshrl.u32 %v276, 7
  %v278 = vsub.s32 4, %v277
  %v279 = vrot.slane %v258, %v278
  %v280 = vlaneseq
  %v281 = vshrl.u32 %v280, 7
  %v282 = vsub.s32 5, %v281
  %v283 = vrot.slane %v258, %v282
  %290 = vmatprep.subr.mxu0 %v67
  %291 = vmatpush1.msra.mxu0 %v66
  %292 = vmatprep.subr.mxu0 %v73
  %293 = vmatpush1.msra.mxu0 %v72
  %294 = vmatprep.subr.mxu0 %v79
  %295 = vmatpush1.msra.mxu0 %v78
  %296 = vmatprep.subr.mxu0 %v85
  %297 = vmatpush1.msra.mxu0 %v84
  %298 = vmatprep.subr.mxu0 %v91
  %299 = vmatpush1.msra.mxu0 %v90
  %300 = vmatprep.subr.mxu0 %v97
  %301 = vmatpush1.msra.mxu0 %v96
  %302 = vmatprep.subr.mxu0 %v103
  %303 = vmatpush1.msra.mxu0 %v102
  %304 = vmatprep.subr.mxu0 %v109
  %305 = vmatpush1.msra.mxu0 %v108
  %306 = vmatprep.subr.mxu0 %v115
  %307 = vmatpush1.msra.mxu0 %v114
  %308 = vmatprep.subr.mxu0 %v121
  %309 = vmatpush1.msra.mxu0 %v120
  %310 = vmatprep.subr.mxu0 %v127
  %311 = vmatpush1.msra.mxu0 %v126
  %312 = vmatprep.subr.mxu0 %v133
  %313 = vmatpush1.msra.mxu0 %v132
  %314 = vmatprep.subr.mxu0 %v139
  %315 = vmatpush1.msra.mxu0 %v138
  %316 = vmatprep.subr.mxu0 %v145
  %317 = vmatpush1.msra.mxu0 %v144
  %318 = vmatprep.subr.mxu0 %v151
  %319 = vmatpush1.msra.mxu0 %v150
  %320 = vmatprep.subr.mxu0 %v157
  %321 = vmatpush1.msra.mxu0 %v156
  %322 = vmatprep.subr.mxu0 %v163
  %323 = vmatpush1.msra.mxu0 %v162
  %324 = vmatprep.subr.mxu0 %v169
  %325 = vmatpush1.msra.mxu0 %v168
  %326 = vmatprep.subr.mxu0 %v175
  %327 = vmatpush1.msra.mxu0 %v174
  %328 = vmatprep.subr.mxu0 %v181
  %329 = vmatpush1.msra.mxu0 %v180
  %330 = vmatprep.subr.mxu0 %v187
  %331 = vmatpush1.msra.mxu0 %v186
  %332 = vmatprep.subr.mxu0 %v193
  %333 = vmatpush1.msra.mxu0 %v192
  %334 = vmatprep.subr.mxu0 %v199
  %335 = vmatpush1.msra.mxu0 %v198
  %336 = vmatprep.subr.mxu0 %v205
  %337 = vmatpush1.msra.mxu0 %v204
  %338 = vmatprep.subr.mxu0 %v211
  %339 = vmatpush1.msra.mxu0 %v210
  %340 = vmatprep.subr.mxu0 %v217
  %341 = vmatpush1.msra.mxu0 %v216
  %342 = vmatprep.subr.mxu0 %v223
  %343 = vmatpush1.msra.mxu0 %v222
  %344 = vmatprep.subr.mxu0 %v229
  %345 = vmatpush1.msra.mxu0 %v228
  %346 = vmatprep.subr.mxu0 %v235
  %347 = vmatpush1.msra.mxu0 %v234
  %348 = vmatprep.subr.mxu0 %v241
  %349 = vmatpush1.msra.mxu0 %v240
  %350 = vmatprep.subr.mxu0 %v247
  %351 = vmatpush1.msra.mxu0 %v246
  %352 = vmatprep.subr.mxu0 %v253
  %353 = vmatpush1.msra.mxu0 %v252
  %354 = vmatprep.mubr.f32.mxu0 %v35
  %355 = vmatmul.mubr.f32.gmra.mrb[0].mxu0 %v34
  %v356 = vpop.f32.mrb[0].mxu0
  %v357 = vadd.f32 %v263, %v356
  %v358 = vpop.f32.mrb[0].mxu0
  %v359 = vadd.f32 %v267, %v358
  %360 = vmatprep.mubr.f32.mxu0 %v37
  %361 = vmatmul.mubr.f32.gmra.mrb[0].mxu0 %v36
  %v362 = vpop.f32.mrb[0].mxu0
  %v363 = vadd.f32 %v263, %v362
  %v364 = vpop.f32.mrb[0].mxu0
  %v365 = vadd.f32 %v267, %v364
  %366 = vmatprep.mubr.f32.mxu0 %v39
  %367 = vmatmul.mubr.f32.gmra.mrb[0].mxu0 %v38
  %v368 = vpop.f32.mrb[0].mxu0
  %v369 = vadd.f32 %v263, %v368
  %v370 = vpop.f32.mrb[0].mxu0
  %v371 = vadd.f32 %v267, %v370
  %372 = vmatprep.mubr.f32.mxu0 %v41
  %373 = vmatmul.mubr.f32.gmra.mrb[0].mxu0 %v40
  %v374 = vpop.f32.mrb[0].mxu0
  %v375 = vadd.f32 %v263, %v374
  %v376 = vpop.f32.mrb[0].mxu0
  %v377 = vadd.f32 %v267, %v376
  %378 = vmatprep.mubr.f32.mxu0 %v43
  %379 = vmatmul.mubr.f32.gmra.mrb[0].mxu0 %v42
  %v380 = vpop.f32.mrb[0].mxu0
  %v381 = vadd.f32 %v263, %v380
  %v382 = vpop.f32.mrb[0].mxu0
  %v383 = vadd.f32 %v267, %v382
  %384 = vmatprep.mubr.f32.mxu0 %v45
  %385 = vmatmul.mubr.f32.gmra.mrb[0].mxu0 %v44
  %v386 = vpop.f32.mrb[0].mxu0
  %v387 = vadd.f32 %v263, %v386
  %v388 = vpop.f32.mrb[0].mxu0
  %v389 = vadd.f32 %v267, %v388
  %390 = vmatprep.mubr.f32.mxu0 %v47
  %391 = vmatmul.mubr.f32.gmra.mrb[0].mxu0 %v46
  %v392 = vpop.f32.mrb[0].mxu0
  %v393 = vadd.f32 %v263, %v392
  %v394 = vpop.f32.mrb[0].mxu0
  %v395 = vadd.f32 %v267, %v394
  %396 = vmatprep.mubr.f32.mxu0 %v49
  %397 = vmatmul.mubr.f32.gmra.mrb[0].mxu0 %v48
  %v398 = vpop.f32.mrb[0].mxu0
  %v399 = vadd.f32 %v263, %v398
  %v400 = vpop.f32.mrb[0].mxu0
  %v401 = vadd.f32 %v267, %v400
  %402 = vmatprep.mubr.f32.mxu0 %v51
  %403 = vmatmul.mubr.f32.gmra.mrb[0].mxu0 %v50
  %v404 = vpop.f32.mrb[0].mxu0
  %v405 = vadd.f32 %v263, %v404
  %v406 = vpop.f32.mrb[0].mxu0
  %v407 = vadd.f32 %v267, %v406
  %408 = vmatprep.mubr.f32.mxu0 %v53
  %409 = vmatmul.mubr.f32.gmra.mrb[0].mxu0 %v52
  %v410 = vpop.f32.mrb[0].mxu0
  %v411 = vadd.f32 %v263, %v410
  %v412 = vpop.f32.mrb[0].mxu0
  %v413 = vadd.f32 %v267, %v412
  %414 = vmatprep.mubr.f32.mxu0 %v55
  %415 = vmatmul.mubr.f32.gmra.mrb[0].mxu0 %v54
  %v416 = vpop.f32.mrb[0].mxu0
  %v417 = vadd.f32 %v263, %v416
  %v418 = vpop.f32.mrb[0].mxu0
  %v419 = vadd.f32 %v267, %v418
  %420 = vmatprep.mubr.f32.mxu0 %v57
  %421 = vmatmul.mubr.f32.gmra.mrb[0].mxu0 %v56
  %v422 = vpop.f32.mrb[0].mxu0
  %v423 = vadd.f32 %v263, %v422
  %v424 = vpop.f32.mrb[0].mxu0
  %v425 = vadd.f32 %v267, %v424
  %426 = vmatprep.mubr.f32.mxu0 %v59
  %427 = vmatmul.mubr.f32.gmra.mrb[0].mxu0 %v58
  %v428 = vpop.f32.mrb[0].mxu0
  %v429 = vadd.f32 %v263, %v428
  %v430 = vpop.f32.mrb[0].mxu0
  %v431 = vadd.f32 %v267, %v430
  %432 = vmatprep.mubr.f32.mxu0 %v61
  %433 = vmatmul.mubr.f32.gmra.mrb[0].mxu0 %v60
  %v434 = vpop.f32.mrb[0].mxu0
  %v435 = vadd.f32 %v263, %v434
  %v436 = vpop.f32.mrb[0].mxu0
  %v437 = vadd.f32 %v267, %v436
  %438 = vmatprep.mubr.f32.mxu0 %v63
  %439 = vmatmul.mubr.f32.gmra.mrb[0].mxu0 %v62
  %v440 = vpop.f32.mrb[0].mxu0
  %v441 = vadd.f32 %v263, %v440
  %v442 = vpop.f32.mrb[0].mxu0
  %v443 = vadd.f32 %v267, %v442
  %444 = vmatprep.mubr.f32.mxu0 %v65
  %445 = vmatmul.mubr.f32.gmra.mrb[0].mxu0 %v64
  %v446 = vpop.f32.mrb[0].mxu0
  %v447 = vadd.f32 %v263, %v446
  %v448 = vpop.f32.mrb[0].mxu0
  %v449 = vadd.f32 %v267, %v448
  %450 = vdwg.mxu0
  %451 = vmatprep.subr.mxu0 %v69
  %452 = vmatpush1.msra.mxu0 %v68
  %453 = vmatprep.subr.mxu0 %v75
  %454 = vmatpush1.msra.mxu0 %v74
  %455 = vmatprep.subr.mxu0 %v81
  %456 = vmatpush1.msra.mxu0 %v80
  %457 = vmatprep.subr.mxu0 %v87
  %458 = vmatpush1.msra.mxu0 %v86
  %459 = vmatprep.subr.mxu0 %v93
  %460 = vmatpush1.msra.mxu0 %v92
  %461 = vmatprep.subr.mxu0 %v99
  %462 = vmatpush1.msra.mxu0 %v98
  %463 = vmatprep.subr.mxu0 %v105
  %464 = vmatpush1.msra.mxu0 %v104
  %465 = vmatprep.subr.mxu0 %v111
  %466 = vmatpush1.msra.mxu0 %v110
  %467 = vmatprep.subr.mxu0 %v117
  %468 = vmatpush1.msra.mxu0 %v116
  %469 = vmatprep.subr.mxu0 %v123
  %470 = vmatpush1.msra.mxu0 %v122
  %471 = vmatprep.subr.mxu0 %v129
  %472 = vmatpush1.msra.mxu0 %v128
  %473 = vmatprep.subr.mxu0 %v135
  %474 = vmatpush1.msra.mxu0 %v134
  %475 = vmatprep.subr.mxu0 %v141
  %476 = vmatpush1.msra.mxu0 %v140
  %477 = vmatprep.subr.mxu0 %v147
  %478 = vmatpush1.msra.mxu0 %v146
  %479 = vmatprep.subr.mxu0 %v153
  %480 = vmatpush1.msra.mxu0 %v152
  %481 = vmatprep.subr.mxu0 %v159
  %482 = vmatpush1.msra.mxu0 %v158
  %483 = vmatprep.subr.mxu0 %v165
  %484 = vmatpush1.msra.mxu0 %v164
  %485 = vmatprep.subr.mxu0 %v171
  %486 = vmatpush1.msra.mxu0 %v170
  %487 = vmatprep.subr.mxu0 %v177
  %488 = vmatpush1.msra.mxu0 %v176
  %489 = vmatprep.subr.mxu0 %v183
  %490 = vmatpush1.msra.mxu0 %v182
  %491 = vmatprep.subr.mxu0 %v189
  %492 = vmatpush1.msra.mxu0 %v188
  %493 = vmatprep.subr.mxu0 %v195
  %494 = vmatpush1.msra.mxu0 %v194
  %495 = vmatprep.subr.mxu0 %v201
  %496 = vmatpush1.msra.mxu0 %v200
  %497 = vmatprep.subr.mxu0 %v207
  %498 = vmatpush1.msra.mxu0 %v206
  %499 = vmatprep.subr.mxu0 %v213
  %500 = vmatpush1.msra.mxu0 %v212
  %501 = vmatprep.subr.mxu0 %v219
  %502 = vmatpush1.msra.mxu0 %v218
  %503 = vmatprep.subr.mxu0 %v225
  %504 = vmatpush1.msra.mxu0 %v224
  %505 = vmatprep.subr.mxu0 %v231
  %506 = vmatpush1.msra.mxu0 %v230
  %507 = vmatprep.subr.mxu0 %v237
  %508 = vmatpush1.msra.mxu0 %v236
  %509 = vmatprep.subr.mxu0 %v243
  %510 = vmatpush1.msra.mxu0 %v242
  %511 = vmatprep.subr.mxu0 %v249
  %512 = vmatpush1.msra.mxu0 %v248
  %513 = vmatprep.subr.mxu0 %v255
  %514 = vmatpush1.msra.mxu0 %v254
  %515 = vmatprep.mubr.f32.mxu0 %v35
  %516 = vmatmul.mubr.f32.gmra.mrb[0].mxu0 %v34
  %v517 = vpop.f32.mrb[0].mxu0
  %v518 = vadd.f32 %v271, %v517
  %v519 = vpop.f32.mrb[0].mxu0
  %v520 = vadd.f32 %v275, %v519
  %521 = vmatprep.mubr.f32.mxu0 %v37
  %522 = vmatmul.mubr.f32.gmra.mrb[0].mxu0 %v36
  %v523 = vpop.f32.mrb[0].mxu0
  %v524 = vadd.f32 %v271, %v523
  %v525 = vpop.f32.mrb[0].mxu0
  %v526 = vadd.f32 %v275, %v525
  %527 = vmatprep.mubr.f32.mxu0 %v39
  %528 = vmatmul.mubr.f32.gmra.mrb[0].mxu0 %v38
  %v529 = vpop.f32.mrb[0].mxu0
  %v530 = vadd.f32 %v271, %v529
  %v531 = vpop.f32.mrb[0].mxu0
  %v532 = vadd.f32 %v275, %v531
  %533 = vmatprep.mubr.f32.mxu0 %v41
  %534 = vmatmul.mubr.f32.gmra.mrb[0].mxu0 %v40
  %v535 = vpop.f32.mrb[0].mxu0
  %v536 = vadd.f32 %v271, %v535
  %v537 = vpop.f32.mrb[0].mxu0
  %v538 = vadd.f32 %v275, %v537
  %539 = vmatprep.mubr.f32.mxu0 %v43
  %540 = vmatmul.mubr.f32.gmra.mrb[0].mxu0 %v42
  %v541 = vpop.f32.mrb[0].mxu0
  %v542 = vadd.f32 %v271, %v541
  %v543 = vpop.f32.mrb[0].mxu0
  %v544 = vadd.f32 %v275, %v543
  %545 = vmatprep.mubr.f32.mxu0 %v45
  %546 = vmatmul.mubr.f32.gmra.mrb[0].mxu0 %v44
  %v547 = vpop.f32.mrb[0].mxu0
  %v548 = vadd.f32 %v271, %v547
  %v549 = vpop.f32.mrb[0].mxu0
  %v550 = vadd.f32 %v275, %v549
  %551 = vmatprep.mubr.f32.mxu0 %v47
  %552 = vmatmul.mubr.f32.gmra.mrb[0].mxu0 %v46
  %v553 = vpop.f32.mrb[0].mxu0
  %v554 = vadd.f32 %v271, %v553
  %v555 = vpop.f32.mrb[0].mxu0
  %v556 = vadd.f32 %v275, %v555
  %557 = vmatprep.mubr.f32.mxu0 %v49
  %558 = vmatmul.mubr.f32.gmra.mrb[0].mxu0 %v48
  %v559 = vpop.f32.mrb[0].mxu0
  %v560 = vadd.f32 %v271, %v559
  %v561 = vpop.f32.mrb[0].mxu0
  %v562 = vadd.f32 %v275, %v561
  %563 = vmatprep.mubr.f32.mxu0 %v51
  %564 = vmatmul.mubr.f32.gmra.mrb[0].mxu0 %v50
  %v565 = vpop.f32.mrb[0].mxu0
  %v566 = vadd.f32 %v271, %v565
  %v567 = vpop.f32.mrb[0].mxu0
  %v568 = vadd.f32 %v275, %v567
  %569 = vmatprep.mubr.f32.mxu0 %v53
  %570 = vmatmul.mubr.f32.gmra.mrb[0].mxu0 %v52
  %v571 = vpop.f32.mrb[0].mxu0
  %v572 = vadd.f32 %v271, %v571
  %v573 = vpop.f32.mrb[0].mxu0
  %v574 = vadd.f32 %v275, %v573
  %575 = vmatprep.mubr.f32.mxu0 %v55
  %576 = vmatmul.mubr.f32.gmra.mrb[0].mxu0 %v54
  %v577 = vpop.f32.mrb[0].mxu0
  %v578 = vadd.f32 %v271, %v577
  %v579 = vpop.f32.mrb[0].mxu0
  %v580 = vadd.f32 %v275, %v579
  %581 = vmatprep.mubr.f32.mxu0 %v57
  %582 = vmatmul.mubr.f32.gmra.mrb[0].mxu0 %v56
  %v583 = vpop.f32.mrb[0].mxu0
  %v584 = vadd.f32 %v271, %v583
  %v585 = vpop.f32.mrb[0].mxu0
  %v586 = vadd.f32 %v275, %v585
  %587 = vmatprep.mubr.f32.mxu0 %v59
  %588 = vmatmul.mubr.f32.gmra.mrb[0].mxu0 %v58
  %v589 = vpop.f32.mrb[0].mxu0
  %v590 = vadd.f32 %v271, %v589
  %v591 = vpop.f32.mrb[0].mxu0
  %v592 = vadd.f32 %v275, %v591
  %593 = vmatprep.mubr.f32.mxu0 %v61
  %594 = vmatmul.mubr.f32.gmra.mrb[0].mxu0 %v60
  %v595 = vpop.f32.mrb[0].mxu0
  %v596 = vadd.f32 %v271, %v595
  %v597 = vpop.f32.mrb[0].mxu0
  %v598 = vadd.f32 %v275, %v597
  %599 = vmatprep.mubr.f32.mxu0 %v63
  %600 = vmatmul.mubr.f32.gmra.mrb[0].mxu0 %v62
  %v601 = vpop.f32.mrb[0].mxu0
  %v602 = vadd.f32 %v271, %v601
  %v603 = vpop.f32.mrb[0].mxu0
  %v604 = vadd.f32 %v275, %v603
  %605 = vmatprep.mubr.f32.mxu0 %v65
  %606 = vmatmul.mubr.f32.gmra.mrb[0].mxu0 %v64
  %v607 = vpop.f32.mrb[0].mxu0
  %v608 = vadd.f32 %v271, %v607
  %v609 = vpop.f32.mrb[0].mxu0
  %v610 = vadd.f32 %v275, %v609
  %611 = vdwg.mxu0
  %612 = vmatprep.subr.mxu0 %v71
  %613 = vmatpush1.msra.mxu0 %v70
  %614 = vmatprep.subr.mxu0 %v77
  %615 = vmatpush1.msra.mxu0 %v76
  %616 = vmatprep.subr.mxu0 %v83
  %617 = vmatpush1.msra.mxu0 %v82
  %618 = vmatprep.subr.mxu0 %v89
  %619 = vmatpush1.msra.mxu0 %v88
  %620 = vmatprep.subr.mxu0 %v95
  %621 = vmatpush1.msra.mxu0 %v94
  %622 = vmatprep.subr.mxu0 %v101
  %623 = vmatpush1.msra.mxu0 %v100
  %624 = vmatprep.subr.mxu0 %v107
  %625 = vmatpush1.msra.mxu0 %v106
  %626 = vmatprep.subr.mxu0 %v113
  %627 = vmatpush1.msra.mxu0 %v112
  %628 = vmatprep.subr.mxu0 %v119
  %629 = vmatpush1.msra.mxu0 %v118
  %630 = vmatprep.subr.mxu0 %v125
  %631 = vmatpush1.msra.mxu0 %v124
  %632 = vmatprep.subr.mxu0 %v131
  %633 = vmatpush1.msra.mxu0 %v130
  %634 = vmatprep.subr.mxu0 %v137
  %635 = vmatpush1.msra.mxu0 %v136
  %636 = vmatprep.subr.mxu0 %v143
  %637 = vmatpush1.msra.mxu0 %v142
  %638 = vmatprep.subr.mxu0 %v149
  %639 = vmatpush1.msra.mxu0 %v148
  %640 = vmatprep.subr.mxu0 %v155
  %641 = vmatpush1.msra.mxu0 %v154
  %642 = vmatprep.subr.mxu0 %v161
  %643 = vmatpush1.msra.mxu0 %v160
  %644 = vmatprep.subr.mxu0 %v167
  %645 = vmatpush1.msra.mxu0 %v166
  %646 = vmatprep.subr.mxu0 %v173
  %647 = vmatpush1.msra.mxu0 %v172
  %648 = vmatprep.subr.mxu0 %v179
  %649 = vmatpush1.msra.mxu0 %v178
  %650 = vmatprep.subr.mxu0 %v185
  %651 = vmatpush1.msra.mxu0 %v184
  %652 = vmatprep.subr.mxu0 %v191
  %653 = vmatpush1.msra.mxu0 %v190
  %654 = vmatprep.subr.mxu0 %v197
  %655 = vmatpush1.msra.mxu0 %v196
  %656 = vmatprep.subr.mxu0 %v203
  %657 = vmatpush1.msra.mxu0 %v202
  %658 = vmatprep.subr.mxu0 %v209
  %659 = vmatpush1.msra.mxu0 %v208
  %660 = vmatprep.subr.mxu0 %v215
  %661 = vmatpush1.msra.mxu0 %v214
  %662 = vmatprep.subr.mxu0 %v221
  %663 = vmatpush1.msra.mxu0 %v220
  %664 = vmatprep.subr.mxu0 %v227
  %665 = vmatpush1.msra.mxu0 %v226
  %666 = vmatprep.subr.mxu0 %v233
  %667 = vmatpush1.msra.mxu0 %v232
  %668 = vmatprep.subr.mxu0 %v239
  %669 = vmatpush1.msra.mxu0 %v238
  %670 = vmatprep.subr.mxu0 %v245
  %671 = vmatpush1.msra.mxu0 %v244
  %672 = vmatprep.subr.mxu0 %v251
  %673 = vmatpush1.msra.mxu0 %v250
  %674 = vmatprep.subr.mxu0 %v257
  %675 = vmatpush1.msra.mxu0 %v256
  %676 = vmatprep.mubr.f32.mxu0 %v35
  %677 = vmatmul.mubr.f32.gmra.mrb[0].mxu0 %v34
  %v678 = vpop.f32.mrb[0].mxu0
  %v679 = vadd.f32 %v279, %v678
  %v680 = vpop.f32.mrb[0].mxu0
  %v681 = vadd.f32 %v283, %v680
  %682 = vmatprep.mubr.f32.mxu0 %v37
  %683 = vmatmul.mubr.f32.gmra.mrb[0].mxu0 %v36
  %v684 = vpop.f32.mrb[0].mxu0
  %v685 = vadd.f32 %v279, %v684
  %v686 = vpop.f32.mrb[0].mxu0
  %v687 = vadd.f32 %v283, %v686
  %688 = vmatprep.mubr.f32.mxu0 %v39
  %689 = vmatmul.mubr.f32.gmra.mrb[0].mxu0 %v38
  %v690 = vpop.f32.mrb[0].mxu0
  %v691 = vadd.f32 %v279, %v690
  %v692 = vpop.f32.mrb[0].mxu0
  %v693 = vadd.f32 %v283, %v692
  %694 = vmatprep.mubr.f32.mxu0 %v41
  %695 = vmatmul.mubr.f32.gmra.mrb[0].mxu0 %v40
  %v696 = vpop.f32.mrb[0].mxu0
  %v697 = vadd.f32 %v279, %v696
  %v698 = vpop.f32.mrb[0].mxu0
  %v699 = vadd.f32 %v283, %v698
  %700 = vmatprep.mubr.f32.mxu0 %v43
  %701 = vmatmul.mubr.f32.gmra.mrb[0].mxu0 %v42
  %v702 = vpop.f32.mrb[0].mxu0
  %v703 = vadd.f32 %v279, %v702
  %v704 = vpop.f32.mrb[0].mxu0
  %v705 = vadd.f32 %v283, %v704
  %706 = vmatprep.mubr.f32.mxu0 %v45
  %707 = vmatmul.mubr.f32.gmra.mrb[0].mxu0 %v44
  %v708 = vpop.f32.mrb[0].mxu0
  %v709 = vadd.f32 %v279, %v708
  %v710 = vpop.f32.mrb[0].mxu0
  %v711 = vadd.f32 %v283, %v710
  %712 = vmatprep.mubr.f32.mxu0 %v47
  %713 = vmatmul.mubr.f32.gmra.mrb[0].mxu0 %v46
  %v714 = vpop.f32.mrb[0].mxu0
  %v715 = vadd.f32 %v279, %v714
  %v716 = vpop.f32.mrb[0].mxu0
  %v717 = vadd.f32 %v283, %v716
  %718 = vmatprep.mubr.f32.mxu0 %v49
  %719 = vmatmul.mubr.f32.gmra.mrb[0].mxu0 %v48
  %v720 = vpop.f32.mrb[0].mxu0
  %v721 = vadd.f32 %v279, %v720
  %v722 = vpop.f32.mrb[0].mxu0
  %v723 = vadd.f32 %v283, %v722
  %724 = vmatprep.mubr.f32.mxu0 %v51
  %725 = vmatmul.mubr.f32.gmra.mrb[0].mxu0 %v50
  %v726 = vpop.f32.mrb[0].mxu0
  %v727 = vadd.f32 %v279, %v726
  %v728 = vpop.f32.mrb[0].mxu0
  %v729 = vadd.f32 %v283, %v728
  %730 = vmatprep.mubr.f32.mxu0 %v53
  %731 = vmatmul.mubr.f32.gmra.mrb[0].mxu0 %v52
  %v732 = vpop.f32.mrb[0].mxu0
  %v733 = vadd.f32 %v279, %v732
  %v734 = vpop.f32.mrb[0].mxu0
  %v735 = vadd.f32 %v283, %v734
  %736 = vmatprep.mubr.f32.mxu0 %v55
  %737 = vmatmul.mubr.f32.gmra.mrb[0].mxu0 %v54
  %v738 = vpop.f32.mrb[0].mxu0
  %v739 = vadd.f32 %v279, %v738
  %v740 = vpop.f32.mrb[0].mxu0
  %v741 = vadd.f32 %v283, %v740
  %742 = vmatprep.mubr.f32.mxu0 %v57
  %743 = vmatmul.mubr.f32.gmra.mrb[0].mxu0 %v56
  %v744 = vpop.f32.mrb[0].mxu0
  %v745 = vadd.f32 %v279, %v744
  %v746 = vpop.f32.mrb[0].mxu0
  %v747 = vadd.f32 %v283, %v746
  %748 = vmatprep.mubr.f32.mxu0 %v59
  %749 = vmatmul.mubr.f32.gmra.mrb[0].mxu0 %v58
  %v750 = vpop.f32.mrb[0].mxu0
  %v751 = vadd.f32 %v279, %v750
  %v752 = vpop.f32.mrb[0].mxu0
  %v753 = vadd.f32 %v283, %v752
  %754 = vmatprep.mubr.f32.mxu0 %v61
  %755 = vmatmul.mubr.f32.gmra.mrb[0].mxu0 %v60
  %v756 = vpop.f32.mrb[0].mxu0
  %v757 = vadd.f32 %v279, %v756
  %v758 = vpop.f32.mrb[0].mxu0
  %v759 = vadd.f32 %v283, %v758
  %760 = vmatprep.mubr.f32.mxu0 %v63
  %761 = vmatmul.mubr.f32.gmra.mrb[0].mxu0 %v62
  %v762 = vpop.f32.mrb[0].mxu0
  %v763 = vadd.f32 %v279, %v762
  %v764 = vpop.f32.mrb[0].mxu0
  %v765 = vadd.f32 %v283, %v764
  %766 = vmatprep.mubr.f32.mxu0 %v65
  %767 = vmatmul.mubr.f32.gmra.mrb[0].mxu0 %v64
  %v768 = vpop.f32.mrb[0].mxu0
  %v769 = vadd.f32 %v279, %v768
  %v770 = vpop.f32.mrb[0].mxu0
  %v771 = vadd.f32 %v283, %v770
  %772 = vdwg.mxu0
  %773 = vst [vmem:[#allocation3] sm:$0xff] %v357
  %774 = vst [vmem:[#allocation3 + $0x8] sm:$0xff] %v359
  %775 = vst [vmem:[#allocation3 + $0x10] sm:$0xff] %v518
  %776 = vst [vmem:[#allocation3 + $0x18] sm:$0xff] %v520
  %777 = vst [vmem:[#allocation3 + $0x20] sm:$0xff] %v679
  %778 = vst [vmem:[#allocation3 + $0x28] sm:$0xff] %v681
  %779 = vst [vmem:[#allocation3 + $0x30] sm:$0xff] %v363
  %780 = vst [vmem:[#allocation3 + $0x38] sm:$0xff] %v365
  %781 = vst [vmem:[#allocation3 + $0x40] sm:$0xff] %v524
  %782 = vst [vmem:[#allocation3 + $0x48] sm:$0xff] %v526
  %783 = vst [vmem:[#allocation3 + $0x50] sm:$0xff] %v685
  %784 = vst [vmem:[#allocation3 + $0x58] sm:$0xff] %v687
  %785 = vst [vmem:[#allocation3 + $0x60] sm:$0xff] %v369
  %786 = vst [vmem:[#allocation3 + $0x68] sm:$0xff] %v371
  %787 = vst [vmem:[#allocation3 + $0x70] sm:$0xff] %v530
  %788 = vst [vmem:[#allocation3 + $0x78] sm:$0xff] %v532
  %789 = vst [vmem:[#allocation3 + $0x80] sm:$0xff] %v691
  %790 = vst [vmem:[#allocation3 + $0x88] sm:$0xff] %v693
  %791 = vst [vmem:[#allocation3 + $0x90] sm:$0xff] %v375
  %792 = vst [vmem:[#allocation3 + $0x98] sm:$0xff] %v377
  %793 = vst [vmem:[#allocation3 + $0xa0] sm:$0xff] %v536
  %794 = vst [vmem:[#allocation3 + $0xa8] sm:$0xff] %v538
  %795 = vst [vmem:[#allocation3 + $0xb0] sm:$0xff] %v697
  %796 = vst [vmem:[#allocation3 + $0xb8] sm:$0xff] %v699
  %797 = vst [vmem:[#allocation3 + $0xc0] sm:$0xff] %v381
  %798 = vst [vmem:[#allocation3 + $0xc8] sm:$0xff] %v383
  %799 = vst [vmem:[#allocation3 + $0xd0] sm:$0xff] %v542
  %800 = vst [vmem:[#allocation3 + $0xd8] sm:$0xff] %v544
  %801 = vst [vmem:[#allocation3 + $0xe0] sm:$0xff] %v703
  %802 = vst [vmem:[#allocation3 + $0xe8] sm:$0xff] %v705
  %803 = vst [vmem:[#allocation3 + $0xf0] sm:$0xff] %v387
  %804 = vst [vmem:[#allocation3 + $0xf8] sm:$0xff] %v389
  %805 = vst [vmem:[#allocation3 + $0x100] sm:$0xff] %v548
  %806 = vst [vmem:[#allocation3 + $0x108] sm:$0xff] %v550
  %807 = vst [vmem:[#allocation3 + $0x110] sm:$0xff] %v709
  %808 = vst [vmem:[#allocation3 + $0x118] sm:$0xff] %v711
  %809 = vst [vmem:[#allocation3 + $0x120] sm:$0xff] %v393
  %810 = vst [vmem:[#allocation3 + $0x128] sm:$0xff] %v395
  %811 = vst [vmem:[#allocation3 + $0x130] sm:$0xff] %v554
  %812 = vst [vmem:[#allocation3 + $0x138] sm:$0xff] %v556
  %813 = vst [vmem:[#allocation3 + $0x140] sm:$0xff] %v715
  %814 = vst [vmem:[#allocation3 + $0x148] sm:$0xff] %v717
  %815 = vst [vmem:[#allocation3 + $0x150] sm:$0xff] %v399
  %816 = vst [vmem:[#allocation3 + $0x158] sm:$0xff] %v401
  %817 = vst [vmem:[#allocation3 + $0x160] sm:$0xff] %v560
  %818 = vst [vmem:[#allocation3 + $0x168] sm:$0xff] %v562
  %819 = vst [vmem:[#allocation3 + $0x170] sm:$0xff] %v721
  %820 = vst [vmem:[#allocation3 + $0x178] sm:$0xff] %v723
  %821 = vst [vmem:[#allocation3 + $0x180] sm:$0xff] %v405
  %822 = vst [vmem:[#allocation3 + $0x188] sm:$0xff] %v407
  %823 = vst [vmem:[#allocation3 + $0x190] sm:$0xff] %v566
  %824 = vst [vmem:[#allocation3 + $0x198] sm:$0xff] %v568
  %825 = vst [vmem:[#allocation3 + $0x1a0] sm:$0xff] %v727
  %826 = vst [vmem:[#allocation3 + $0x1a8] sm:$0xff] %v729
  %827 = vst [vmem:[#allocation3 + $0x1b0] sm:$0xff] %v411
  %828 = vst [vmem:[#allocation3 + $0x1b8] sm:$0xff] %v413
  %829 = vst [vmem:[#allocation3 + $0x1c0] sm:$0xff] %v572
  %830 = vst [vmem:[#allocation3 + $0x1c8] sm:$0xff] %v574
  %831 = vst [vmem:[#allocation3 + $0x1d0] sm:$0xff] %v733
  %832 = vst [vmem:[#allocation3 + $0x1d8] sm:$0xff] %v735
  %833 = vst [vmem:[#allocation3 + $0x1e0] sm:$0xff] %v417
  %834 = vst [vmem:[#allocation3 + $0x1e8] sm:$0xff] %v419
  %835 = vst [vmem:[#allocation3 + $0x1f0] sm:$0xff] %v578
  %836 = vst [vmem:[#allocation3 + $0x1f8] sm:$0xff] %v580
  %837 = vst [vmem:[#allocation3 + $0x200] sm:$0xff] %v739
  %838 = vst [vmem:[#allocation3 + $0x208] sm:$0xff] %v741
  %839 = vst [vmem:[#allocation3 + $0x210] sm:$0xff] %v423
  %840 = vst [vmem:[#allocation3 + $0x218] sm:$0xff] %v425
  %841 = vst [vmem:[#allocation3 + $0x220] sm:$0xff] %v584
  %842 = vst [vmem:[#allocation3 + $0x228] sm:$0xff] %v586
  %843 = vst [vmem:[#allocation3 + $0x230] sm:$0xff] %v745
  %844 = vst [vmem:[#allocation3 + $0x238] sm:$0xff] %v747
  %845 = vst [vmem:[#allocation3 + $0x240] sm:$0xff] %v429
  %846 = vst [vmem:[#allocation3 + $0x248] sm:$0xff] %v431
  %847 = vst [vmem:[#allocation3 + $0x250] sm:$0xff] %v590
  %848 = vst [vmem:[#allocation3 + $0x258] sm:$0xff] %v592
  %849 = vst [vmem:[#allocation3 + $0x260] sm:$0xff] %v751
  %850 = vst [vmem:[#allocation3 + $0x268] sm:$0xff] %v753
  %851 = vst [vmem:[#allocation3 + $0x270] sm:$0xff] %v435
  %852 = vst [vmem:[#allocation3 + $0x278] sm:$0xff] %v437
  %853 = vst [vmem:[#allocation3 + $0x280] sm:$0xff] %v596
  %854 = vst [vmem:[#allocation3 + $0x288] sm:$0xff] %v598
  %855 = vst [vmem:[#allocation3 + $0x290] sm:$0xff] %v757
  %856 = vst [vmem:[#allocation3 + $0x298] sm:$0xff] %v759
  %857 = vst [vmem:[#allocation3 + $0x2a0] sm:$0xff] %v441
  %858 = vst [vmem:[#allocation3 + $0x2a8] sm:$0xff] %v443
  %859 = vst [vmem:[#allocation3 + $0x2b0] sm:$0xff] %v602
  %860 = vst [vmem:[#allocation3 + $0x2b8] sm:$0xff] %v604
  %861 = vst [vmem:[#allocation3 + $0x2c0] sm:$0xff] %v763
  %862 = vst [vmem:[#allocation3 + $0x2c8] sm:$0xff] %v765
  %863 = vst [vmem:[#allocation3 + $0x2d0] sm:$0xff] %v447
  %864 = vst [vmem:[#allocation3 + $0x2d8] sm:$0xff] %v449
  %865 = vst [vmem:[#allocation3 + $0x2e0] sm:$0xff] %v608
  %866 = vst [vmem:[#allocation3 + $0x2e8] sm:$0xff] %v610
  %867 = vst [vmem:[#allocation3 + $0x2f0] sm:$0xff] %v769
  %868 = vst [vmem:[#allocation3 + $0x2f8] sm:$0xff] %v771
  %v869 = vld [vmem:[%s2] sm:$0xff]
  %v870 = vld [vmem:[%s2 + $0x8] sm:$0xff]
  %v871 = vld [vmem:[%s2 + $0x10] sm:$0xff]
  %v872 = vld [vmem:[%s2 + $0x18] sm:$0xff]
  %v873 = vld [vmem:[%s2 + $0x20] sm:$0xff]
  %v874 = vld [vmem:[%s2 + $0x28] sm:$0xff]
  %v875 = vld [vmem:[%s2 + $0x30] sm:$0xff]
  %v876 = vld [vmem:[%s2 + $0x38] sm:$0xff]
  %v877 = vld [vmem:[%s2 + $0x40] sm:$0xff]
  %v878 = vld [vmem:[%s2 + $0x48] sm:$0xff]
  %v879 = vld [vmem:[%s2 + $0x50] sm:$0xff]
  %v880 = vld [vmem:[%s2 + $0x58] sm:$0xff]
  %v881 = vld [vmem:[%s2 + $0x60] sm:$0xff]
  %v882 = vld [vmem:[%s2 + $0x68] sm:$0xff]
  %v883 = vld [vmem:[%s2 + $0x70] sm:$0xff]
  %v884 = vld [vmem:[%s2 + $0x78] sm:$0xff]
  %v885 = vld [vmem:[%s2 + $0x80] sm:$0xff]
  %v886 = vld [vmem:[%s2 + $0x88] sm:$0xff]
  %v887 = vld [vmem:[%s2 + $0x90] sm:$0xff]
  %v888 = vld [vmem:[%s2 + $0x98] sm:$0xff]
  %v889 = vld [vmem:[%s2 + $0xa0] sm:$0xff]
  %v890 = vld [vmem:[%s2 + $0xa8] sm:$0xff]
  %v891 = vld [vmem:[%s2 + $0xb0] sm:$0xff]
  %v892 = vld [vmem:[%s2 + $0xb8] sm:$0xff]
  %v893 = vld [vmem:[%s2 + $0xc0] sm:$0xff]
  %v894 = vld [vmem:[%s2 + $0xc8] sm:$0xff]
  %v895 = vld [vmem:[%s2 + $0xd0] sm:$0xff]
  %v896 = vld [vmem:[%s2 + $0xd8] sm:$0xff]
  %v897 = vld [vmem:[%s2 + $0xe0] sm:$0xff]
  %v898 = vld [vmem:[%s2 + $0xe8] sm:$0xff]
  %v899 = vld [vmem:[%s2 + $0xf0] sm:$0xff]
  %v900 = vld [vmem:[%s2 + $0xf8] sm:$0xff]
  %v901 = vld [vmem:[%s2 + $0x100] sm:$0xff]
  %v902 = vld [vmem:[%s2 + $0x108] sm:$0xff]
  %v903 = vld [vmem:[%s2 + $0x110] sm:$0xff]
  %v904 = vld [vmem:[%s2 + $0x118] sm:$0xff]
  %v905 = vld [vmem:[%s2 + $0x120] sm:$0xff]
  %v906 = vld [vmem:[%s2 + $0x128] sm:$0xff]
  %v907 = vld [vmem:[%s2 + $0x130] sm:$0xff]
  %v908 = vld [vmem:[%s2 + $0x138] sm:$0xff]
  %v909 = vld [vmem:[%s2 + $0x140] sm:$0xff]
  %v910 = vld [vmem:[%s2 + $0x148] sm:$0xff]
  %v911 = vld [vmem:[%s2 + $0x150] sm:$0xff]
  %v912 = vld [vmem:[%s2 + $0x158] sm:$0xff]
  %v913 = vld [vmem:[%s2 + $0x160] sm:$0xff]
  %v914 = vld [vmem:[%s2 + $0x168] sm:$0xff]
  %v915 = vld [vmem:[%s2 + $0x170] sm:$0xff]
  %v916 = vld [vmem:[%s2 + $0x178] sm:$0xff]
  %v917 = vld [vmem:[%s2 + $0x180] sm:$0xff]
  %v918 = vld [vmem:[%s2 + $0x188] sm:$0xff]
  %v919 = vld [vmem:[%s2 + $0x190] sm:$0xff]
  %v920 = vld [vmem:[%s2 + $0x198] sm:$0xff]
  %v921 = vld [vmem:[%s2 + $0x1a0] sm:$0xff]
  %v922 = vld [vmem:[%s2 + $0x1a8] sm:$0xff]
  %v923 = vld [vmem:[%s2 + $0x1b0] sm:$0xff]
  %v924 = vld [vmem:[%s2 + $0x1b8] sm:$0xff]
  %v925 = vld [vmem:[%s2 + $0x1c0] sm:$0xff]
  %v926 = vld [vmem:[%s2 + $0x1c8] sm:$0xff]
  %v927 = vld [vmem:[%s2 + $0x1d0] sm:$0xff]
  %v928 = vld [vmem:[%s2 + $0x1d8] sm:$0xff]
  %v929 = vld [vmem:[%s2 + $0x1e0] sm:$0xff]
  %v930 = vld [vmem:[%s2 + $0x1e8] sm:$0xff]
  %v931 = vld [vmem:[%s2 + $0x1f0] sm:$0xff]
  %v932 = vld [vmem:[%s2 + $0x1f8] sm:$0xff]
  %v933 = vld [vmem:[%s2 + $0x200] sm:$0xff]
  %v934 = vld [vmem:[%s2 + $0x208] sm:$0xff]
  %v935 = vld [vmem:[%s2 + $0x210] sm:$0xff]
  %v936 = vld [vmem:[%s2 + $0x218] sm:$0xff]
  %v937 = vld [vmem:[%s2 + $0x220] sm:$0xff]
  %v938 = vld [vmem:[%s2 + $0x228] sm:$0xff]
  %v939 = vld [vmem:[%s2 + $0x230] sm:$0xff]
  %v940 = vld [vmem:[%s2 + $0x238] sm:$0xff]
  %v941 = vld [vmem:[%s2 + $0x240] sm:$0xff]
  %v942 = vld [vmem:[%s2 + $0x248] sm:$0xff]
  %v943 = vld [vmem:[%s2 + $0x250] sm:$0xff]
  %v944 = vld [vmem:[%s2 + $0x258] sm:$0xff]
  %v945 = vld [vmem:[%s2 + $0x260] sm:$0xff]
  %v946 = vld [vmem:[%s2 + $0x268] sm:$0xff]
  %v947 = vld [vmem:[%s2 + $0x270] sm:$0xff]
  %v948 = vld [vmem:[%s2 + $0x278] sm:$0xff]
  %v949 = vld [vmem:[%s2 + $0x280] sm:$0xff]
  %v950 = vld [vmem:[%s2 + $0x288] sm:$0xff]
  %v951 = vld [vmem:[%s2 + $0x290] sm:$0xff]
  %v952 = vld [vmem:[%s2 + $0x298] sm:$0xff]
  %v953 = vld [vmem:[%s2 + $0x2a0] sm:$0xff]
  %v954 = vld [vmem:[%s2 + $0x2a8] sm:$0xff]
  %v955 = vld [vmem:[%s2 + $0x2b0] sm:$0xff]
  %v956 = vld [vmem:[%s2 + $0x2b8] sm:$0xff]
  %v957 = vld [vmem:[%s2 + $0x2c0] sm:$0xff]
  %v958 = vld [vmem:[%s2 + $0x2c8] sm:$0xff]
  %v959 = vld [vmem:[%s2 + $0x2d0] sm:$0xff]
  %v960 = vld [vmem:[%s2 + $0x2d8] sm:$0xff]
  %v961 = vld [vmem:[%s2 + $0x2e0] sm:$0xff]
  %v962 = vld [vmem:[%s2 + $0x2e8] sm:$0xff]
  %v963 = vld [vmem:[%s2 + $0x2f0] sm:$0xff]
  %v964 = vld [vmem:[%s2 + $0x2f8] sm:$0xff]
  %v965 = vld [vmem:[%s2 + $0x300] sm:$0xff]
  %v966 = vld [vmem:[%s2 + $0x308] sm:$0xff]
  %v967 = vld [vmem:[%s2 + $0x310] sm:$0xff]
  %v968 = vld [vmem:[%s2 + $0x318] sm:$0xff]
  %v969 = vld [vmem:[%s2 + $0x320] sm:$0xff]
  %v970 = vld [vmem:[%s2 + $0x328] sm:$0xff]
  %v971 = vld [vmem:[%s2 + $0x330] sm:$0xff]
  %v972 = vld [vmem:[%s2 + $0x338] sm:$0xff]
  %v973 = vld [vmem:[%s2 + $0x340] sm:$0xff]
  %v974 = vld [vmem:[%s2 + $0x348] sm:$0xff]
  %v975 = vld [vmem:[%s2 + $0x350] sm:$0xff]
  %v976 = vld [vmem:[%s2 + $0x358] sm:$0xff]
  %v977 = vld [vmem:[%s2 + $0x360] sm:$0xff]
  %v978 = vld [vmem:[%s2 + $0x368] sm:$0xff]
  %v979 = vld [vmem:[%s2 + $0x370] sm:$0xff]
  %v980 = vld [vmem:[%s2 + $0x378] sm:$0xff]
  %v981 = vld [vmem:[%s2 + $0x380] sm:$0xff]
  %v982 = vld [vmem:[%s2 + $0x388] sm:$0xff]
  %v983 = vld [vmem:[%s2 + $0x390] sm:$0xff]
  %v984 = vld [vmem:[%s2 + $0x398] sm:$0xff]
  %v985 = vld [vmem:[%s2 + $0x3a0] sm:$0xff]
  %v986 = vld [vmem:[%s2 + $0x3a8] sm:$0xff]
  %v987 = vld [vmem:[%s2 + $0x3b0] sm:$0xff]
  %v988 = vld [vmem:[%s2 + $0x3b8] sm:$0xff]
  %v989 = vld [vmem:[%s2 + $0x3c0] sm:$0xff]
  %v990 = vld [vmem:[%s2 + $0x3c8] sm:$0xff]
  %v991 = vld [vmem:[%s2 + $0x3d0] sm:$0xff]
  %v992 = vld [vmem:[%s2 + $0x3d8] sm:$0xff]
  %v993 = vld [vmem:[%s2 + $0x3e0] sm:$0xff]
  %v994 = vld [vmem:[%s2 + $0x3e8] sm:$0xff]
  %v995 = vld [vmem:[%s2 + $0x3f0] sm:$0xff]
  %v996 = vld [vmem:[%s2 + $0x3f8] sm:$0xff]
  %v997 = vld [vmem:[%s2 + $0x400] sm:$0xff]
  %v998 = vld [vmem:[%s2 + $0x408] sm:$0xff]
  %v999 = vld [vmem:[%s2 + $0x410] sm:$0xff]
  %v1000 = vld [vmem:[%s2 + $0x418] sm:$0xff]
  %v1001 = vld [vmem:[%s2 + $0x420] sm:$0xff]
  %v1002 = vld [vmem:[%s2 + $0x428] sm:$0xff]
  %v1003 = vld [vmem:[%s2 + $0x430] sm:$0xff]
  %v1004 = vld [vmem:[%s2 + $0x438] sm:$0xff]
  %v1005 = vld [vmem:[%s2 + $0x440] sm:$0xff]
  %v1006 = vld [vmem:[%s2 + $0x448] sm:$0xff]
  %v1007 = vld [vmem:[%s2 + $0x450] sm:$0xff]
  %v1008 = vld [vmem:[%s2 + $0x458] sm:$0xff]
  %v1009 = vld [vmem:[%s2 + $0x460] sm:$0xff]
  %v1010 = vld [vmem:[%s2 + $0x468] sm:$0xff]
  %v1011 = vld [vmem:[%s2 + $0x470] sm:$0xff]
  %v1012 = vld [vmem:[%s2 + $0x478] sm:$0xff]
  %v1013 = vld [vmem:[%s2 + $0x480] sm:$0xff]
  %v1014 = vld [vmem:[%s2 + $0x488] sm:$0xff]
  %v1015 = vld [vmem:[%s2 + $0x490] sm:$0xff]
  %v1016 = vld [vmem:[%s2 + $0x498] sm:$0xff]
  %v1017 = vld [vmem:[%s2 + $0x4a0] sm:$0xff]
  %v1018 = vld [vmem:[%s2 + $0x4a8] sm:$0xff]
  %v1019 = vld [vmem:[%s2 + $0x4b0] sm:$0xff]
  %v1020 = vld [vmem:[%s2 + $0x4b8] sm:$0xff]
  %v1021 = vld [vmem:[%s2 + $0x4c0] sm:$0xff]
  %v1022 = vld [vmem:[%s2 + $0x4c8] sm:$0xff]
  %v1023 = vld [vmem:[%s2 + $0x4d0] sm:$0xff]
  %v1024 = vld [vmem:[%s2 + $0x4d8] sm:$0xff]
  %v1025 = vld [vmem:[%s2 + $0x4e0] sm:$0xff]
  %v1026 = vld [vmem:[%s2 + $0x4e8] sm:$0xff]
  %v1027 = vld [vmem:[%s2 + $0x4f0] sm:$0xff]
  %v1028 = vld [vmem:[%s2 + $0x4f8] sm:$0xff]
  %v1029 = vld [vmem:[%s2 + $0x500] sm:$0xff]
  %v1030 = vld [vmem:[%s2 + $0x508] sm:$0xff]
  %v1031 = vld [vmem:[%s2 + $0x510] sm:$0xff]
  %v1032 = vld [vmem:[%s2 + $0x518] sm:$0xff]
  %v1033 = vld [vmem:[%s2 + $0x520] sm:$0xff]
  %v1034 = vld [vmem:[%s2 + $0x528] sm:$0xff]
  %v1035 = vld [vmem:[%s2 + $0x530] sm:$0xff]
  %v1036 = vld [vmem:[%s2 + $0x538] sm:$0xff]
  %v1037 = vld [vmem:[%s2 + $0x540] sm:$0xff]
  %v1038 = vld [vmem:[%s2 + $0x548] sm:$0xff]
  %v1039 = vld [vmem:[%s2 + $0x550] sm:$0xff]
  %v1040 = vld [vmem:[%s2 + $0x558] sm:$0xff]
  %v1041 = vld [vmem:[%s2 + $0x560] sm:$0xff]
  %v1042 = vld [vmem:[%s2 + $0x568] sm:$0xff]
  %v1043 = vld [vmem:[%s2 + $0x570] sm:$0xff]
  %v1044 = vld [vmem:[%s2 + $0x578] sm:$0xff]
  %v1045 = vld [vmem:[%s2 + $0x580] sm:$0xff]
  %v1046 = vld [vmem:[%s2 + $0x588] sm:$0xff]
  %v1047 = vld [vmem:[%s2 + $0x590] sm:$0xff]
  %v1048 = vld [vmem:[%s2 + $0x598] sm:$0xff]
  %v1049 = vld [vmem:[%s2 + $0x5a0] sm:$0xff]
  %v1050 = vld [vmem:[%s2 + $0x5a8] sm:$0xff]
  %v1051 = vld [vmem:[%s2 + $0x5b0] sm:$0xff]
  %v1052 = vld [vmem:[%s2 + $0x5b8] sm:$0xff]
  %v1053 = vld [vmem:[%s2 + $0x5c0] sm:$0xff]
  %v1054 = vld [vmem:[%s2 + $0x5c8] sm:$0xff]
  %v1055 = vld [vmem:[%s2 + $0x5d0] sm:$0xff]
  %v1056 = vld [vmem:[%s2 + $0x5d8] sm:$0xff]
  %v1057 = vld [vmem:[%s2 + $0x5e0] sm:$0xff]
  %v1058 = vld [vmem:[%s2 + $0x5e8] sm:$0xff]
  %v1059 = vld [vmem:[%s2 + $0x5f0] sm:$0xff]
  %v1060 = vld [vmem:[%s2 + $0x5f8] sm:$0xff]
  %v1061 = vld [vmem:[%s4] sm:$0x3f]
  %v1063 = vlaneseq
  %v1064 = vshrl.u32 %v1063, 7
  %v1065 = vsub.s32 0, %v1064
  %v1066 = vrot.slane %v1061, %v1065
  %v1067 = vlaneseq
  %v1068 = vshrl.u32 %v1067, 7
  %v1069 = vsub.s32 1, %v1068
  %v1070 = vrot.slane %v1061, %v1069
  %v1071 = vlaneseq
  %v1072 = vshrl.u32 %v1071, 7
  %v1073 = vsub.s32 2, %v1072
  %v1074 = vrot.slane %v1061, %v1073
  %v1075 = vlaneseq
  %v1076 = vshrl.u32 %v1075, 7
  %v1077 = vsub.s32 3, %v1076
  %v1078 = vrot.slane %v1061, %v1077
  %v1079 = vlaneseq
  %v1080 = vshrl.u32 %v1079, 7
  %v1081 = vsub.s32 4, %v1080
  %v1082 = vrot.slane %v1061, %v1081
  %v1083 = vlaneseq
  %v1084 = vshrl.u32 %v1083, 7
  %v1085 = vsub.s32 5, %v1084
  %v1086 = vrot.slane %v1061, %v1085
  %s1093 = smul.u32 0, 8
  %v1094 = vld [vmem:[#allocation2] sm:$0xff]
  %v1095 = vld [vmem:[#allocation2 + $0x8] sm:$0xff]
  %v1096 = vld [vmem:[#allocation2 + $0x10] sm:$0xff]
  %v1097 = vld [vmem:[#allocation2 + $0x18] sm:$0xff]
  %v1098 = vld [vmem:[#allocation3] sm:$0xff]
  %v1099 = vld [vmem:[#allocation3 + $0x8] sm:$0xff]
  %v1100 = vld [vmem:[#allocation3 + $0x10] sm:$0xff]
  %v1101 = vld [vmem:[#allocation3 + $0x18] sm:$0xff]
  %v1102 = vld [vmem:[#allocation3 + $0x20] sm:$0xff]
  %v1103 = vld [vmem:[#allocation3 + $0x28] sm:$0xff]
  %v1104 = vld [vmem:[#allocation3 + $0x30] sm:$0xff]
  %v1105 = vld [vmem:[#allocation3 + $0x38] sm:$0xff]
  %v1106 = vld [vmem:[#allocation3 + $0x40] sm:$0xff]
  %v1107 = vld [vmem:[#allocation3 + $0x48] sm:$0xff]
  %v1108 = vld [vmem:[#allocation3 + $0x50] sm:$0xff]
  %v1109 = vld [vmem:[#allocation3 + $0x58] sm:$0xff]
  %1110 = vmatprep.subr.mxu0 %v870
  %1111 = vmatpush1.msra.mxu0 %v869
  %1112 = vmatprep.subr.mxu0 %v876
  %1113 = vmatpush1.msra.mxu0 %v875
  %1114 = vmatprep.subr.mxu0 %v882
  %1115 = vmatpush1.msra.mxu0 %v881
  %1116 = vmatprep.subr.mxu0 %v888
  %1117 = vmatpush1.msra.mxu0 %v887
  %1118 = vmatprep.subr.mxu0 %v894
  %1119 = vmatpush1.msra.mxu0 %v893
  %1120 = vmatprep.subr.mxu0 %v900
  %1121 = vmatpush1.msra.mxu0 %v899
  %1122 = vmatprep.subr.mxu0 %v906
  %1123 = vmatpush1.msra.mxu0 %v905
  %1124 = vmatprep.subr.mxu0 %v912
  %1125 = vmatpush1.msra.mxu0 %v911
  %1126 = vmatprep.subr.mxu0 %v918
  %1127 = vmatpush1.msra.mxu0 %v917
  %1128 = vmatprep.subr.mxu0 %v924
  %1129 = vmatpush1.msra.mxu0 %v923
  %1130 = vmatprep.subr.mxu0 %v930
  %1131 = vmatpush1.msra.mxu0 %v929
  %1132 = vmatprep.subr.mxu0 %v936
  %1133 = vmatpush1.msra.mxu0 %v935
  %1134 = vmatprep.subr.mxu0 %v942
  %1135 = vmatpush1.msra.mxu0 %v941
  %1136 = vmatprep.subr.mxu0 %v948
  %1137 = vmatpush1.msra.mxu0 %v947
  %1138 = vmatprep.subr.mxu0 %v954
  %1139 = vmatpush1.msra.mxu0 %v953
  %1140 = vmatprep.subr.mxu0 %v960
  %1141 = vmatpush1.msra.mxu0 %v959
  %1142 = vmatprep.subr.mxu0 %v966
  %1143 = vmatpush1.msra.mxu0 %v965
  %1144 = vmatprep.subr.mxu0 %v972
  %1145 = vmatpush1.msra.mxu0 %v971
  %1146 = vmatprep.subr.mxu0 %v978
  %1147 = vmatpush1.msra.mxu0 %v977
  %1148 = vmatprep.subr.mxu0 %v984
  %1149 = vmatpush1.msra.mxu0 %v983
  %1150 = vmatprep.subr.mxu0 %v990
  %1151 = vmatpush1.msra.mxu0 %v989
  %1152 = vmatprep.subr.mxu0 %v996
  %1153 = vmatpush1.msra.mxu0 %v995
  %1154 = vmatprep.subr.mxu0 %v1002
  %1155 = vmatpush1.msra.mxu0 %v1001
  %1156 = vmatprep.subr.mxu0 %v1008
  %1157 = vmatpush1.msra.mxu0 %v1007
  %1158 = vmatprep.subr.mxu0 %v1014
  %1159 = vmatpush1.msra.mxu0 %v1013
  %1160 = vmatprep.subr.mxu0 %v1020
  %1161 = vmatpush1.msra.mxu0 %v1019
  %1162 = vmatprep.subr.mxu0 %v1026
  %1163 = vmatpush1.msra.mxu0 %v1025
  %1164 = vmatprep.subr.mxu0 %v1032
  %1165 = vmatpush1.msra.mxu0 %v1031
  %1166 = vmatprep.subr.mxu0 %v1038
  %1167 = vmatpush1.msra.mxu0 %v1037
  %1168 = vmatprep.subr.mxu0 %v1044
  %1169 = vmatpush1.msra.mxu0 %v1043
  %1170 = vmatprep.subr.mxu0 %v1050
  %1171 = vmatpush1.msra.mxu0 %v1049
  %1172 = vmatprep.subr.mxu0 %v1056
  %1173 = vmatpush1.msra.mxu0 %v1055
  %1174 = vmatprep.mubr.f32.mxu0 %v1095
  %1175 = vmatmul.mubr.f32.gmra.mrb[0].mxu0 %v1094
  %v1176 = vpop.f32.mrb[0].mxu0
  %v1177 = vadd.f32 %v1066, %v1176
  %v1178 = vpop.f32.mrb[0].mxu0
  %v1179 = vadd.f32 %v1070, %v1178
  %1180 = vmatprep.mubr.f32.mxu0 %v1097
  %1181 = vmatmul.mubr.f32.gmra.mrb[0].mxu0 %v1096
  %v1182 = vpop.f32.mrb[0].mxu0
  %v1183 = vadd.f32 %v1066, %v1182
  %v1184 = vpop.f32.mrb[0].mxu0
  %v1185 = vadd.f32 %v1070, %v1184
  %1186 = vdwg.mxu0
  %1187 = vmatprep.subr.mxu0 %v872
  %1188 = vmatpush1.msra.mxu0 %v871
  %1189 = vmatprep.subr.mxu0 %v878
  %1190 = vmatpush1.msra.mxu0 %v877
  %1191 = vmatprep.subr.mxu0 %v884
  %1192 = vmatpush1.msra.mxu0 %v883
  %1193 = vmatprep.subr.mxu0 %v890
  %1194 = vmatpush1.msra.mxu0 %v889
  %1195 = vmatprep.subr.mxu0 %v896
  %1196 = vmatpush1.msra.mxu0 %v895
  %1197 = vmatprep.subr.mxu0 %v902
  %1198 = vmatpush1.msra.mxu0 %v901
  %1199 = vmatprep.subr.mxu0 %v908
  %1200 = vmatpush1.msra.mxu0 %v907
  %1201 = vmatprep.subr.mxu0 %v914
  %1202 = vmatpush1.msra.mxu0 %v913
  %1203 = vmatprep.subr.mxu0 %v920
  %1204 = vmatpush1.msra.mxu0 %v919
  %1205 = vmatprep.subr.mxu0 %v926
  %1206 = vmatpush1.msra.mxu0 %v925
  %1207 = vmatprep.subr.mxu0 %v932
  %1208 = vmatpush1.msra.mxu0 %v931
  %1209 = vmatprep.subr.mxu0 %v938
  %1210 = vmatpush1.msra.mxu0 %v937
  %1211 = vmatprep.subr.mxu0 %v944
  %1212 = vmatpush1.msra.mxu0 %v943
  %1213 = vmatprep.subr.mxu0 %v950
  %1214 = vmatpush1.msra.mxu0 %v949
  %1215 = vmatprep.subr.mxu0 %v956
  %1216 = vmatpush1.msra.mxu0 %v955
  %1217 = vmatprep.subr.mxu0 %v962
  %1218 = vmatpush1.msra.mxu0 %v961
  %1219 = vmatprep.subr.mxu0 %v968
  %1220 = vmatpush1.msra.mxu0 %v967
  %1221 = vmatprep.subr.mxu0 %v974
  %1222 = vmatpush1.msra.mxu0 %v973
  %1223 = vmatprep.subr.mxu0 %v980
  %1224 = vmatpush1.msra.mxu0 %v979
  %1225 = vmatprep.subr.mxu0 %v986
  %1226 = vmatpush1.msra.mxu0 %v985
  %1227 = vmatprep.subr.mxu0 %v992
  %1228 = vmatpush1.msra.mxu0 %v991
  %1229 = vmatprep.subr.mxu0 %v998
  %1230 = vmatpush1.msra.mxu0 %v997
  %1231 = vmatprep.subr.mxu0 %v1004
  %1232 = vmatpush1.msra.mxu0 %v1003
  %1233 = vmatprep.subr.mxu0 %v1010
  %1234 = vmatpush1.msra.mxu0 %v1009
  %1235 = vmatprep.subr.mxu0 %v1016
  %1236 = vmatpush1.msra.mxu0 %v1015
  %1237 = vmatprep.subr.mxu0 %v1022
  %1238 = vmatpush1.msra.mxu0 %v1021
  %1239 = vmatprep.subr.mxu0 %v1028
  %1240 = vmatpush1.msra.mxu0 %v1027
  %1241 = vmatprep.subr.mxu0 %v1034
  %1242 = vmatpush1.msra.mxu0 %v1033
  %1243 = vmatprep.subr.mxu0 %v1040
  %1244 = vmatpush1.msra.mxu0 %v1039
  %1245 = vmatprep.subr.mxu0 %v1046
  %1246 = vmatpush1.msra.mxu0 %v1045
  %1247 = vmatprep.subr.mxu0 %v1052
  %1248 = vmatpush1.msra.mxu0 %v1051
  %1249 = vmatprep.subr.mxu0 %v1058
  %1250 = vmatpush1.msra.mxu0 %v1057
  %1251 = vmatprep.mubr.f32.mxu0 %v1095
  %1252 = vmatmul.mubr.f32.gmra.mrb[0].mxu0 %v1094
  %v1253 = vpop.f32.mrb[0].mxu0
  %v1254 = vadd.f32 %v1074, %v1253
  %v1255 = vpop.f32.mrb[0].mxu0
  %v1256 = vadd.f32 %v1078, %v1255
  %1257 = vmatprep.mubr.f32.mxu0 %v1097
  %1258 = vmatmul.mubr.f32.gmra.mrb[0].mxu0 %v1096
  %v1259 = vpop.f32.mrb[0].mxu0
  %v1260 = vadd.f32 %v1074, %v1259
  %v1261 = vpop.f32.mrb[0].mxu0
  %v1262 = vadd.f32 %v1078, %v1261
  %1263 = vdwg.mxu0
  %1264 = vmatprep.subr.mxu0 %v874
  %1265 = vmatpush1.msra.mxu0 %v873
  %1266 = vmatprep.subr.mxu0 %v880
  %1267 = vmatpush1.msra.mxu0 %v879
  %1268 = vmatprep.subr.mxu0 %v886
  %1269 = vmatpush1.msra.mxu0 %v885
  %1270 = vmatprep.subr.mxu0 %v892
  %1271 = vmatpush1.msra.mxu0 %v891
  %1272 = vmatprep.subr.mxu0 %v898
  %1273 = vmatpush1.msra.mxu0 %v897
  %1274 = vmatprep.subr.mxu0 %v904
  %1275 = vmatpush1.msra.mxu0 %v903
  %1276 = vmatprep.subr.mxu0 %v910
  %1277 = vmatpush1.msra.mxu0 %v909
  %1278 = vmatprep.subr.mxu0 %v916
  %1279 = vmatpush1.msra.mxu0 %v915
  %1280 = vmatprep.subr.mxu0 %v922
  %1281 = vmatpush1.msra.mxu0 %v921
  %1282 = vmatprep.subr.mxu0 %v928
  %1283 = vmatpush1.msra.mxu0 %v927
  %1284 = vmatprep.subr.mxu0 %v934
  %1285 = vmatpush1.msra.mxu0 %v933
  %1286 = vmatprep.subr.mxu0 %v940
  %1287 = vmatpush1.msra.mxu0 %v939
  %1288 = vmatprep.subr.mxu0 %v946
  %1289 = vmatpush1.msra.mxu0 %v945
  %1290 = vmatprep.subr.mxu0 %v952
  %1291 = vmatpush1.msra.mxu0 %v951
  %1292 = vmatprep.subr.mxu0 %v958
  %1293 = vmatpush1.msra.mxu0 %v957
  %1294 = vmatprep.subr.mxu0 %v964
  %1295 = vmatpush1.msra.mxu0 %v963
  %1296 = vmatprep.subr.mxu0 %v970
  %1297 = vmatpush1.msra.mxu0 %v969
  %1298 = vmatprep.subr.mxu0 %v976
  %1299 = vmatpush1.msra.mxu0 %v975
  %1300 = vmatprep.subr.mxu0 %v982
  %1301 = vmatpush1.msra.mxu0 %v981
  %1302 = vmatprep.subr.mxu0 %v988
  %1303 = vmatpush1.msra.mxu0 %v987
  %1304 = vmatprep.subr.mxu0 %v994
  %1305 = vmatpush1.msra.mxu0 %v993
  %1306 = vmatprep.subr.mxu0 %v1000
  %1307 = vmatpush1.msra.mxu0 %v999
  %1308 = vmatprep.subr.mxu0 %v1006
  %1309 = vmatpush1.msra.mxu0 %v1005
  %1310 = vmatprep.subr.mxu0 %v1012
  %1311 = vmatpush1.msra.mxu0 %v1011
  %1312 = vmatprep.subr.mxu0 %v1018
  %1313 = vmatpush1.msra.mxu0 %v1017
  %1314 = vmatprep.subr.mxu0 %v1024
  %1315 = vmatpush1.msra.mxu0 %v1023
  %1316 = vmatprep.subr.mxu0 %v1030
  %1317 = vmatpush1.msra.mxu0 %v1029
  %1318 = vmatprep.subr.mxu0 %v1036
  %1319 = vmatpush1.msra.mxu0 %v1035
  %1320 = vmatprep.subr.mxu0 %v1042
  %1321 = vmatpush1.msra.mxu0 %v1041
  %1322 = vmatprep.subr.mxu0 %v1048
  %1323 = vmatpush1.msra.mxu0 %v1047
  %1324 = vmatprep.subr.mxu0 %v1054
  %1325 = vmatpush1.msra.mxu0 %v1053
  %1326 = vmatprep.subr.mxu0 %v1060
  %1327 = vmatpush1.msra.mxu0 %v1059
  %1328 = vmatprep.mubr.f32.mxu0 %v1095
  %1329 = vmatmul.mubr.f32.gmra.mrb[0].mxu0 %v1094
  %v1330 = vpop.f32.mrb[0].mxu0
  %v1331 = vadd.f32 %v1082, %v1330
  %v1332 = vpop.f32.mrb[0].mxu0
  %v1333 = vadd.f32 %v1086, %v1332
  %1334 = vmatprep.mubr.f32.mxu0 %v1097
  %1335 = vmatmul.mubr.f32.gmra.mrb[0].mxu0 %v1096
  %v1336 = vpop.f32.mrb[0].mxu0
  %v1337 = vadd.f32 %v1082, %v1336
  %v1338 = vpop.f32.mrb[0].mxu0
  %v1339 = vadd.f32 %v1086, %v1338
  %1340 = vdwg.mxu0
  %v1341 = vadd.f32 %v1098, %v1177
  %v1342 = vadd.f32 %v1099, %v1179
  %v1343 = vadd.f32 %v1104, %v1183
  %v1344 = vadd.f32 %v1105, %v1185
  %v1345 = vxor.u32 %v1341, 2147483648
  %v1346 = vxor.u32 %v1342, 2147483648
  %v1347 = vxor.u32 %v1343, 2147483648
  %v1348 = vxor.u32 %v1344, 2147483648
  %v1349 = vmul.f32 %v1345, 1.442695
  %v1350 = vpow.pop %v1349
  %v1351 = vmul.f32 %v1346, 1.442695
  %v1352 = vpow.pop %v1351
  %v1353 = vmul.f32 %v1347, 1.442695
  %v1354 = vpow.pop %v1353
  %v1355 = vmul.f32 %v1348, 1.442695
  %v1356 = vpow.pop %v1355
  %v1357 = vadd.f32 %v1350, 1.0
  %v1358 = vadd.f32 %v1352, 1.0
  %v1359 = vadd.f32 %v1354, 1.0
  %v1360 = vadd.f32 %v1356, 1.0
  %v1361 = vrcp.pop %v1357
  %v1362 = vmul.f32 1.0, %v1361
  %v1363 = vrcp.pop %v1358
  %v1364 = vmul.f32 1.0, %v1363
  %v1365 = vrcp.pop %v1359
  %v1366 = vmul.f32 1.0, %v1365
  %v1367 = vrcp.pop %v1360
  %v1368 = vmul.f32 1.0, %v1367
  %v1369 = vadd.f32 %v1100, %v1254
  %v1370 = vadd.f32 %v1101, %v1256
  %v1371 = vadd.f32 %v1106, %v1260
  %v1372 = vadd.f32 %v1107, %v1262
  %v1373 = vxor.u32 %v1369, 2147483648
  %v1374 = vxor.u32 %v1370, 2147483648
  %v1375 = vxor.u32 %v1371, 2147483648
  %v1376 = vxor.u32 %v1372, 2147483648
  %v1377 = vmul.f32 %v1373, 1.442695
  %v1378 = vpow.pop %v1377
  %v1379 = vmul.f32 %v1374, 1.442695
  %v1380 = vpow.pop %v1379
  %v1381 = vmul.f32 %v1375, 1.442695
  %v1382 = vpow.pop %v1381
  %v1383 = vmul.f32 %v1376, 1.442695
  %v1384 = vpow.pop %v1383
  %v1385 = vadd.f32 %v1378, 1.0
  %v1386 = vadd.f32 %v1380, 1.0
  %v1387 = vadd.f32 %v1382, 1.0
  %v1388 = vadd.f32 %v1384, 1.0
  %v1389 = vrcp.pop %v1385
  %v1390 = vmul.f32 1.0, %v1389
  %v1391 = vrcp.pop %v1386
  %v1392 = vmul.f32 1.0, %v1391
  %v1393 = vrcp.pop %v1387
  %v1394 = vmul.f32 1.0, %v1393
  %v1395 = vrcp.pop %v1388
  %v1396 = vmul.f32 1.0, %v1395
  %v1397 = vmul.f32 %v1362, %v1331
  %v1398 = vmul.f32 %v1364, %v1333
  %v1399 = vmul.f32 %v1366, %v1337
  %v1400 = vmul.f32 %v1368, %v1339
  %v1401 = vadd.f32 %v1102, %v1397
  %v1402 = vadd.f32 %v1103, %v1398
  %v1403 = vadd.f32 %v1108, %v1399
  %v1404 = vadd.f32 %v1109, %v1400
  %v1405 = vtanh.pop %v1401
  %v1406 = vtanh.pop %v1402
  %v1407 = vtanh.pop %v1403
  %v1408 = vtanh.pop %v1404
  %v1409 = vsub.f32 1.0, %v1390
  %v1410 = vsub.f32 1.0, %v1392
  %v1411 = vsub.f32 1.0, %v1394
  %v1412 = vsub.f32 1.0, %v1396
  %v1413 = vmul.f32 %v1409, %v1405
  %v1414 = vmul.f32 %v1410, %v1406
  %v1415 = vmul.f32 %v1411, %v1407
  %v1416 = vmul.f32 %v1412, %v1408
  %v1417 = vmul.f32 %v1390, %v1094
  %v1418 = vmul.f32 %v1392, %v1095
  %v1419 = vmul.f32 %v1394, %v1096
  %v1420 = vmul.f32 %v1396, %v1097
  %v1421 = vadd.f32 %v1413, %v1417
  %v1422 = vadd.f32 %v1414, %v1418
  %v1423 = vadd.f32 %v1415, %v1419
  %v1424 = vadd.f32 %v1416, %v1420
  %p1425 = scmp.lt.s32.totalorder %s1093, 8
  %s1426 = scalar_select %p1425, 1, 0
  %s1427 = scvt.s32.f32 %s1426
  %v1428 = vstv %s1427
  %v1429 = vmul.f32 %v1428, %v1421
  %v1430 = vmul.f32 %v1428, %v1422
  %v1431 = vmul.f32 %v1428, %v1423
  %v1432 = vmul.f32 %v1428, %v1424
  %s1433 = ssub.f32 1.0, %s1427
  %v1434 = vstv %s1433
  %v1435 = vmul.f32 %v1434, %v1094
  %v1436 = vmul.f32 %v1434, %v1095
  %v1437 = vmul.f32 %v1434, %v1096
  %v1438 = vmul.f32 %v1434, %v1097
  %v1439 = vadd.f32 %v1429, %v1435
  %v1440 = vadd.f32 %v1430, %v1436
  %v1441 = vadd.f32 %v1431, %v1437
  %v1442 = vadd.f32 %v1432, %v1438
  %s1443 = scalar_lea.vmem [#allocation3], 96
  %v1444 = vld [vmem:[%s1443] sm:$0xff]
  %v1445 = vld [vmem:[%s1443 + $0x8] sm:$0xff]
  %v1446 = vld [vmem:[%s1443 + $0x10] sm:$0xff]
  %v1447 = vld [vmem:[%s1443 + $0x18] sm:$0xff]
  %v1448 = vld [vmem:[%s1443 + $0x20] sm:$0xff]
  %v1449 = vld [vmem:[%s1443 + $0x28] sm:$0xff]
  %v1450 = vld [vmem:[%s1443 + $0x30] sm:$0xff]
  %v1451 = vld [vmem:[%s1443 + $0x38] sm:$0xff]
  %v1452 = vld [vmem:[%s1443 + $0x40] sm:$0xff]
  %v1453 = vld [vmem:[%s1443 + $0x48] sm:$0xff]
  %v1454 = vld [vmem:[%s1443 + $0x50] sm:$0xff]
  %v1455 = vld [vmem:[%s1443 + $0x58] sm:$0xff]
  %1456 = vmatprep.subr.mxu0 %v870
  %1457 = vmatpush1.msra.mxu0 %v869
  %1458 = vmatprep.subr.mxu0 %v876
  %1459 = vmatpush1.msra.mxu0 %v875
  %1460 = vmatprep.subr.mxu0 %v882
  %1461 = vmatpush1.msra.mxu0 %v881
  %1462 = vmatprep.subr.mxu0 %v888
  %1463 = vmatpush1.msra.mxu0 %v887
  %1464 = vmatprep.subr.mxu0 %v894
  %1465 = vmatpush1.msra.mxu0 %v893
  %1466 = vmatprep.subr.mxu0 %v900
  %1467 = vmatpush1.msra.mxu0 %v899
  %1468 = vmatprep.subr.mxu0 %v906
  %1469 = vmatpush1.msra.mxu0 %v905
  %1470 = vmatprep.subr.mxu0 %v912
  %1471 = vmatpush1.msra.mxu0 %v911
  %1472 = vmatprep.subr.mxu0 %v918
  %1473 = vmatpush1.msra.mxu0 %v917
  %1474 = vmatprep.subr.mxu0 %v924
  %1475 = vmatpush1.msra.mxu0 %v923
  %1476 = vmatprep.subr.mxu0 %v930
  %1477 = vmatpush1.msra.mxu0 %v929
  %1478 = vmatprep.subr.mxu0 %v936
  %1479 = vmatpush1.msra.mxu0 %v935
  %1480 = vmatprep.subr.mxu0 %v942
  %1481 = vmatpush1.msra.mxu0 %v941
  %1482 = vmatprep.subr.mxu0 %v948
  %1483 = vmatpush1.msra.mxu0 %v947
  %1484 = vmatprep.subr.mxu0 %v954
  %1485 = vmatpush1.msra.mxu0 %v953
  %1486 = vmatprep.subr.mxu0 %v960
  %1487 = vmatpush1.msra.mxu0 %v959
  %1488 = vmatprep.subr.mxu0 %v966
  %1489 = vmatpush1.msra.mxu0 %v965
  %1490 = vmatprep.subr.mxu0 %v972
  %1491 = vmatpush1.msra.mxu0 %v971
  %1492 = vmatprep.subr.mxu0 %v978
  %1493 = vmatpush1.msra.mxu0 %v977
  %1494 = vmatprep.subr.mxu0 %v984
  %1495 = vmatpush1.msra.mxu0 %v983
  %1496 = vmatprep.subr.mxu0 %v990
  %1497 = vmatpush1.msra.mxu0 %v989
  %1498 = vmatprep.subr.mxu0 %v996
  %1499 = vmatpush1.msra.mxu0 %v995
  %1500 = vmatprep.subr.mxu0 %v1002
  %1501 = vmatpush1.msra.mxu0 %v1001
  %1502 = vmatprep.subr.mxu0 %v1008
  %1503 = vmatpush1.msra.mxu0 %v1007
  %1504 = vmatprep.subr.mxu0 %v1014
  %1505 = vmatpush1.msra.mxu0 %v1013
  %1506 = vmatprep.subr.mxu0 %v1020
  %1507 = vmatpush1.msra.mxu0 %v1019
  %1508 = vmatprep.subr.mxu0 %v1026
  %1509 = vmatpush1.msra.mxu0 %v1025
  %1510 = vmatprep.subr.mxu0 %v1032
  %1511 = vmatpush1.msra.mxu0 %v1031
  %1512 = vmatprep.subr.mxu0 %v1038
  %1513 = vmatpush1.msra.mxu0 %v1037
  %1514 = vmatprep.subr.mxu0 %v1044
  %1515 = vmatpush1.msra.mxu0 %v1043
  %1516 = vmatprep.subr.mxu0 %v1050
  %1517 = vmatpush1.msra.mxu0 %v1049
  %1518 = vmatprep.subr.mxu0 %v1056
  %1519 = vmatpush1.msra.mxu0 %v1055
  %1520 = vmatprep.mubr.f32.mxu0 %v1440
  %1521 = vmatmul.mubr.f32.gmra.mrb[0].mxu0 %v1439
  %v1522 = vpop.f32.mrb[0].mxu0
  %v1523 = vadd.f32 %v1066, %v1522
  %v1524 = vpop.f32.mrb[0].mxu0
  %v1525 = vadd.f32 %v1070, %v1524
  %1526 = vmatprep.mubr.f32.mxu0 %v1442
  %1527 = vmatmul.mubr.f32.gmra.mrb[0].mxu0 %v1441
  %v1528 = vpop.f32.mrb[0].mxu0
  %v1529 = vadd.f32 %v1066, %v1528
  %v1530 = vpop.f32.mrb[0].mxu0
  %v1531 = vadd.f32 %v1070, %v1530
  %1532 = vdwg.mxu0
  %1533 = vmatprep.subr.mxu0 %v872
  %1534 = vmatpush1.msra.mxu0 %v871
  %1535 = vmatprep.subr.mxu0 %v878
  %1536 = vmatpush1.msra.mxu0 %v877
  %1537 = vmatprep.subr.mxu0 %v884
  %1538 = vmatpush1.msra.mxu0 %v883
  %1539 = vmatprep.subr.mxu0 %v890
  %1540 = vmatpush1.msra.mxu0 %v889
  %1541 = vmatprep.subr.mxu0 %v896
  %1542 = vmatpush1.msra.mxu0 %v895
  %1543 = vmatprep.subr.mxu0 %v902
  %1544 = vmatpush1.msra.mxu0 %v901
  %1545 = vmatprep.subr.mxu0 %v908
  %1546 = vmatpush1.msra.mxu0 %v907
  %1547 = vmatprep.subr.mxu0 %v914
  %1548 = vmatpush1.msra.mxu0 %v913
  %1549 = vmatprep.subr.mxu0 %v920
  %1550 = vmatpush1.msra.mxu0 %v919
  %1551 = vmatprep.subr.mxu0 %v926
  %1552 = vmatpush1.msra.mxu0 %v925
  %1553 = vmatprep.subr.mxu0 %v932
  %1554 = vmatpush1.msra.mxu0 %v931
  %1555 = vmatprep.subr.mxu0 %v938
  %1556 = vmatpush1.msra.mxu0 %v937
  %1557 = vmatprep.subr.mxu0 %v944
  %1558 = vmatpush1.msra.mxu0 %v943
  %1559 = vmatprep.subr.mxu0 %v950
  %1560 = vmatpush1.msra.mxu0 %v949
  %1561 = vmatprep.subr.mxu0 %v956
  %1562 = vmatpush1.msra.mxu0 %v955
  %1563 = vmatprep.subr.mxu0 %v962
  %1564 = vmatpush1.msra.mxu0 %v961
  %1565 = vmatprep.subr.mxu0 %v968
  %1566 = vmatpush1.msra.mxu0 %v967
  %1567 = vmatprep.subr.mxu0 %v974
  %1568 = vmatpush1.msra.mxu0 %v973
  %1569 = vmatprep.subr.mxu0 %v980
  %1570 = vmatpush1.msra.mxu0 %v979
  %1571 = vmatprep.subr.mxu0 %v986
  %1572 = vmatpush1.msra.mxu0 %v985
  %1573 = vmatprep.subr.mxu0 %v992
  %1574 = vmatpush1.msra.mxu0 %v991
  %1575 = vmatprep.subr.mxu0 %v998
  %1576 = vmatpush1.msra.mxu0 %v997
  %1577 = vmatprep.subr.mxu0 %v1004
  %1578 = vmatpush1.msra.mxu0 %v1003
  %1579 = vmatprep.subr.mxu0 %v1010
  %1580 = vmatpush1.msra.mxu0 %v1009
  %1581 = vmatprep.subr.mxu0 %v1016
  %1582 = vmatpush1.msra.mxu0 %v1015
  %1583 = vmatprep.subr.mxu0 %v1022
  %1584 = vmatpush1.msra.mxu0 %v1021
  %1585 = vmatprep.subr.mxu0 %v1028
  %1586 = vmatpush1.msra.mxu0 %v1027
  %1587 = vmatprep.subr.mxu0 %v1034
  %1588 = vmatpush1.msra.mxu0 %v1033
  %1589 = vmatprep.subr.mxu0 %v1040
  %1590 = vmatpush1.msra.mxu0 %v1039
  %1591 = vmatprep.subr.mxu0 %v1046
  %1592 = vmatpush1.msra.mxu0 %v1045
  %1593 = vmatprep.subr.mxu0 %v1052
  %1594 = vmatpush1.msra.mxu0 %v1051
  %1595 = vmatprep.subr.mxu0 %v1058
  %1596 = vmatpush1.msra.mxu0 %v1057
  %1597 = vmatprep.mubr.f32.mxu0 %v1440
  %1598 = vmatmul.mubr.f32.gmra.mrb[0].mxu0 %v1439
  %v1599 = vpop.f32.mrb[0].mxu0
  %v1600 = vadd.f32 %v1074, %v1599
  %v1601 = vpop.f32.mrb[0].mxu0
  %v1602 = vadd.f32 %v1078, %v1601
  %1603 = vmatprep.mubr.f32.mxu0 %v1442
  %1604 = vmatmul.mubr.f32.gmra.mrb[0].mxu0 %v1441
  %v1605 = vpop.f32.mrb[0].mxu0
  %v1606 = vadd.f32 %v1074, %v1605
  %v1607 = vpop.f32.mrb[0].mxu0
  %v1608 = vadd.f32 %v1078, %v1607
  %1609 = vdwg.mxu0
  %1610 = vmatprep.subr.mxu0 %v874
  %1611 = vmatpush1.msra.mxu0 %v873
  %1612 = vmatprep.subr.mxu0 %v880
  %1613 = vmatpush1.msra.mxu0 %v879
  %1614 = vmatprep.subr.mxu0 %v886
  %1615 = vmatpush1.msra.mxu0 %v885
  %1616 = vmatprep.subr.mxu0 %v892
  %1617 = vmatpush1.msra.mxu0 %v891
  %1618 = vmatprep.subr.mxu0 %v898
  %1619 = vmatpush1.msra.mxu0 %v897
  %1620 = vmatprep.subr.mxu0 %v904
  %1621 = vmatpush1.msra.mxu0 %v903
  %1622 = vmatprep.subr.mxu0 %v910
  %1623 = vmatpush1.msra.mxu0 %v909
  %1624 = vmatprep.subr.mxu0 %v916
  %1625 = vmatpush1.msra.mxu0 %v915
  %1626 = vmatprep.subr.mxu0 %v922
  %1627 = vmatpush1.msra.mxu0 %v921
  %1628 = vmatprep.subr.mxu0 %v928
  %1629 = vmatpush1.msra.mxu0 %v927
  %1630 = vmatprep.subr.mxu0 %v934
  %1631 = vmatpush1.msra.mxu0 %v933
  %1632 = vmatprep.subr.mxu0 %v940
  %1633 = vmatpush1.msra.mxu0 %v939
  %1634 = vmatprep.subr.mxu0 %v946
  %1635 = vmatpush1.msra.mxu0 %v945
  %1636 = vmatprep.subr.mxu0 %v952
  %1637 = vmatpush1.msra.mxu0 %v951
  %1638 = vmatprep.subr.mxu0 %v958
  %1639 = vmatpush1.msra.mxu0 %v957
  %1640 = vmatprep.subr.mxu0 %v964
  %1641 = vmatpush1.msra.mxu0 %v963
  %1642 = vmatprep.subr.mxu0 %v970
  %1643 = vmatpush1.msra.mxu0 %v969
  %1644 = vmatprep.subr.mxu0 %v976
  %1645 = vmatpush1.msra.mxu0 %v975
  %1646 = vmatprep.subr.mxu0 %v982
  %1647 = vmatpush1.msra.mxu0 %v981
  %1648 = vmatprep.subr.mxu0 %v988
  %1649 = vmatpush1.msra.mxu0 %v987
  %1650 = vmatprep.subr.mxu0 %v994
  %1651 = vmatpush1.msra.mxu0 %v993
  %1652 = vmatprep.subr.mxu0 %v1000
  %1653 = vmatpush1.msra.mxu0 %v999
  %1654 = vmatprep.subr.mxu0 %v1006
  %1655 = vmatpush1.msra.mxu0 %v1005
  %1656 = vmatprep.subr.mxu0 %v1012
  %1657 = vmatpush1.msra.mxu0 %v1011
  %1658 = vmatprep.subr.mxu0 %v1018
  %1659 = vmatpush1.msra.mxu0 %v1017
  %1660 = vmatprep.subr.mxu0 %v1024
  %1661 = vmatpush1.msra.mxu0 %v1023
  %1662 = vmatprep.subr.mxu0 %v1030
  %1663 = vmatpush1.msra.mxu0 %v1029
  %1664 = vmatprep.subr.mxu0 %v1036
  %1665 = vmatpush1.msra.mxu0 %v1035
  %1666 = vmatprep.subr.mxu0 %v1042
  %1667 = vmatpush1.msra.mxu0 %v1041
  %1668 = vmatprep.subr.mxu0 %v1048
  %1669 = vmatpush1.msra.mxu0 %v1047
  %1670 = vmatprep.subr.mxu0 %v1054
  %1671 = vmatpush1.msra.mxu0 %v1053
  %1672 = vmatprep.subr.mxu0 %v1060
  %1673 = vmatpush1.msra.mxu0 %v1059
  %1674 = vmatprep.mubr.f32.mxu0 %v1440
  %1675 = vmatmul.mubr.f32.gmra.mrb[0].mxu0 %v1439
  %v1676 = vpop.f32.mrb[0].mxu0
  %v1677 = vadd.f32 %v1082, %v1676
  %v1678 = vpop.f32.mrb[0].mxu0
  %v1679 = vadd.f32 %v1086, %v1678
  %1680 = vmatprep.mubr.f32.mxu0 %v1442
  %1681 = vmatmul.mubr.f32.gmra.mrb[0].mxu0 %v1441
  %v1682 = vpop.f32.mrb[0].mxu0
  %v1683 = vadd.f32 %v1082, %v1682
  %v1684 = vpop.f32.mrb[0].mxu0
  %v1685 = vadd.f32 %v1086, %v1684
  %1686 = vdwg.mxu0
  %v1687 = vadd.f32 %v1444, %v1523
  %v1688 = vadd.f32 %v1445, %v1525
  %v1689 = vadd.f32 %v1450, %v1529
  %v1690 = vadd.f32 %v1451, %v1531
  %v1691 = vxor.u32 %v1687, 2147483648
  %v1692 = vxor.u32 %v1688, 2147483648
  %v1693 = vxor.u32 %v1689, 2147483648
  %v1694 = vxor.u32 %v1690, 2147483648
  %v1695 = vmul.f32 %v1691, 1.442695
  %v1696 = vpow.pop %v1695
  %v1697 = vmul.f32 %v1692, 1.442695
  %v1698 = vpow.pop %v1697
  %v1699 = vmul.f32 %v1693, 1.442695
  %v1700 = vpow.pop %v1699
  %v1701 = vmul.f32 %v1694, 1.442695
  %v1702 = vpow.pop %v1701
  %v1703 = vadd.f32 %v1696, 1.0
  %v1704 = vadd.f32 %v1698, 1.0
  %v1705 = vadd.f32 %v1700, 1.0
  %v1706 = vadd.f32 %v1702, 1.0
  %v1707 = vrcp.pop %v1703
  %v1708 = vmul.f32 1.0, %v1707
  %v1709 = vrcp.pop %v1704
  %v1710 = vmul.f32 1.0, %v1709
  %v1711 = vrcp.pop %v1705
  %v1712 = vmul.f32 1.0, %v1711
  %v1713 = vrcp.pop %v1706
  %v1714 = vmul.f32 1.0, %v1713
  %v1715 = vadd.f32 %v1446, %v1600
  %v1716 = vadd.f32 %v1447, %v1602
  %v1717 = vadd.f32 %v1452, %v1606
  %v1718 = vadd.f32 %v1453, %v1608
  %v1719 = vxor.u32 %v1715, 2147483648
  %v1720 = vxor.u32 %v1716, 2147483648
  %v1721 = vxor.u32 %v1717, 2147483648
  %v1722 = vxor.u32 %v1718, 2147483648
  %v1723 = vmul.f32 %v1719, 1.442695
  %v1724 = vpow.pop %v1723
  %v1725 = vmul.f32 %v1720, 1.442695
  %v1726 = vpow.pop %v1725
  %v1727 = vmul.f32 %v1721, 1.442695
  %v1728 = vpow.pop %v1727
  %v1729 = vmul.f32 %v1722, 1.442695
  %v1730 = vpow.pop %v1729
  %v1731 = vadd.f32 %v1724, 1.0
  %v1732 = vadd.f32 %v1726, 1.0
  %v1733 = vadd.f32 %v1728, 1.0
  %v1734 = vadd.f32 %v1730, 1.0
  %v1735 = vrcp.pop %v1731
  %v1736 = vmul.f32 1.0, %v1735
  %v1737 = vrcp.pop %v1732
  %v1738 = vmul.f32 1.0, %v1737
  %v1739 = vrcp.pop %v1733
  %v1740 = vmul.f32 1.0, %v1739
  %v1741 = vrcp.pop %v1734
  %v1742 = vmul.f32 1.0, %v1741
  %v1743 = vmul.f32 %v1708, %v1677
  %v1744 = vmul.f32 %v1710, %v1679
  %v1745 = vmul.f32 %v1712, %v1683
  %v1746 = vmul.f32 %v1714, %v1685
  %v1747 = vadd.f32 %v1448, %v1743
  %v1748 = vadd.f32 %v1449, %v1744
  %v1749 = vadd.f32 %v1454, %v1745
  %v1750 = vadd.f32 %v1455, %v1746
  %v1751 = vtanh.pop %v1747
  %v1752 = vtanh.pop %v1748
  %v1753 = vtanh.pop %v1749
  %v1754 = vtanh.pop %v1750
  %v1755 = vsub.f32 1.0, %v1736
  %v1756 = vsub.f32 1.0, %v1738
  %v1757 = vsub.f32 1.0, %v1740
  %v1758 = vsub.f32 1.0, %v1742
  %v1759 = vmul.f32 %v1755, %v1751
  %v1760 = vmul.f32 %v1756, %v1752
  %v1761 = vmul.f32 %v1757, %v1753
  %v1762 = vmul.f32 %v1758, %v1754
  %v1763 = vmul.f32 %v1736, %v1439
  %v1764 = vmul.f32 %v1738, %v1440
  %v1765 = vmul.f32 %v1740, %v1441
  %v1766 = vmul.f32 %v1742, %v1442
  %v1767 = vadd.f32 %v1759, %v1763
  %v1768 = vadd.f32 %v1760, %v1764
  %v1769 = vadd.f32 %v1761, %v1765
  %v1770 = vadd.f32 %v1762, %v1766
  %s1771 = sadd.s32 %s1093, 1
  %p1772 = scmp.lt.s32.totalorder %s1771, 8
  %s1773 = scalar_select %p1772, 1, 0
  %s1774 = scvt.s32.f32 %s1773
  %v1775 = vstv %s1774
  %v1776 = vmul.f32 %v1775, %v1767
  %v1777 = vmul.f32 %v1775, %v1768
  %v1778 = vmul.f32 %v1775, %v1769
  %v1779 = vmul.f32 %v1775, %v1770
  %s1780 = ssub.f32 1.0, %s1774
  %v1781 = vstv %s1780
  %v1782 = vmul.f32 %v1781, %v1439
  %v1783 = vmul.f32 %v1781, %v1440
  %v1784 = vmul.f32 %v1781, %v1441
  %v1785 = vmul.f32 %v1781, %v1442
  %v1786 = vadd.f32 %v1776, %v1782
  %v1787 = vadd.f32 %v1777, %v1783
  %v1788 = vadd.f32 %v1778, %v1784
  %v1789 = vadd.f32 %v1779, %v1785
  %s1790 = scalar_lea.vmem [#allocation3], 192
  %v1791 = vld [vmem:[%s1790] sm:$0xff]
  %v1792 = vld [vmem:[%s1790 + $0x8] sm:$0xff]
  %v1793 = vld [vmem:[%s1790 + $0x10] sm:$0xff]
  %v1794 = vld [vmem:[%s1790 + $0x18] sm:$0xff]
  %v1795 = vld [vmem:[%s1790 + $0x20] sm:$0xff]
  %v1796 = vld [vmem:[%s1790 + $0x28] sm:$0xff]
  %v1797 = vld [vmem:[%s1790 + $0x30] sm:$0xff]
  %v1798 = vld [vmem:[%s1790 + $0x38] sm:$0xff]
  %v1799 = vld [vmem:[%s1790 + $0x40] sm:$0xff]
  %v1800 = vld [vmem:[%s1790 + $0x48] sm:$0xff]
  %v1801 = vld [vmem:[%s1790 + $0x50] sm:$0xff]
  %v1802 = vld [vmem:[%s1790 + $0x58] sm:$0xff]
  %1803 = vmatprep.subr.mxu0 %v870
  %1804 = vmatpush1.msra.mxu0 %v869
  %1805 = vmatprep.subr.mxu0 %v876
  %1806 = vmatpush1.msra.mxu0 %v875
  %1807 = vmatprep.subr.mxu0 %v882
  %1808 = vmatpush1.msra.mxu0 %v881
  %1809 = vmatprep.subr.mxu0 %v888
  %1810 = vmatpush1.msra.mxu0 %v887
  %1811 = vmatprep.subr.mxu0 %v894
  %1812 = vmatpush1.msra.mxu0 %v893
  %1813 = vmatprep.subr.mxu0 %v900
  %1814 = vmatpush1.msra.mxu0 %v899
  %1815 = vmatprep.subr.mxu0 %v906
  %1816 = vmatpush1.msra.mxu0 %v905
  %1817 = vmatprep.subr.mxu0 %v912
  %1818 = vmatpush1.msra.mxu0 %v911
  %1819 = vmatprep.subr.mxu0 %v918
  %1820 = vmatpush1.msra.mxu0 %v917
  %1821 = vmatprep.subr.mxu0 %v924
  %1822 = vmatpush1.msra.mxu0 %v923
  %1823 = vmatprep.subr.mxu0 %v930
  %1824 = vmatpush1.msra.mxu0 %v929
  %1825 = vmatprep.subr.mxu0 %v936
  %1826 = vmatpush1.msra.mxu0 %v935
  %1827 = vmatprep.subr.mxu0 %v942
  %1828 = vmatpush1.msra.mxu0 %v941
  %1829 = vmatprep.subr.mxu0 %v948
  %1830 = vmatpush1.msra.mxu0 %v947
  %1831 = vmatprep.subr.mxu0 %v954
  %1832 = vmatpush1.msra.mxu0 %v953
  %1833 = vmatprep.subr.mxu0 %v960
  %1834 = vmatpush1.msra.mxu0 %v959
  %1835 = vmatprep.subr.mxu0 %v966
  %1836 = vmatpush1.msra.mxu0 %v965
  %1837 = vmatprep.subr.mxu0 %v972
  %1838 = vmatpush1.msra.mxu0 %v971
  %1839 = vmatprep.subr.mxu0 %v978
  %1840 = vmatpush1.msra.mxu0 %v977
  %1841 = vmatprep.subr.mxu0 %v984
  %1842 = vmatpush1.msra.mxu0 %v983
  %1843 = vmatprep.subr.mxu0 %v990
  %1844 = vmatpush1.msra.mxu0 %v989
  %1845 = vmatprep.subr.mxu0 %v996
  %1846 = vmatpush1.msra.mxu0 %v995
  %1847 = vmatprep.subr.mxu0 %v1002
  %1848 = vmatpush1.msra.mxu0 %v1001
  %1849 = vmatprep.subr.mxu0 %v1008
  %1850 = vmatpush1.msra.mxu0 %v1007
  %1851 = vmatprep.subr.mxu0 %v1014
  %1852 = vmatpush1.msra.mxu0 %v1013
  %1853 = vmatprep.subr.mxu0 %v1020
  %1854 = vmatpush1.msra.mxu0 %v1019
  %1855 = vmatprep.subr.mxu0 %v1026
  %1856 = vmatpush1.msra.mxu0 %v1025
  %1857 = vmatprep.subr.mxu0 %v1032
  %1858 = vmatpush1.msra.mxu0 %v1031
  %1859 = vmatprep.subr.mxu0 %v1038
  %1860 = vmatpush1.msra.mxu0 %v1037
  %1861 = vmatprep.subr.mxu0 %v1044
  %1862 = vmatpush1.msra.mxu0 %v1043
  %1863 = vmatprep.subr.mxu0 %v1050
  %1864 = vmatpush1.msra.mxu0 %v1049
  %1865 = vmatprep.subr.mxu0 %v1056
  %1866 = vmatpush1.msra.mxu0 %v1055
  %1867 = vmatprep.mubr.f32.mxu0 %v1787
  %1868 = vmatmul.mubr.f32.gmra.mrb[0].mxu0 %v1786
  %v1869 = vpop.f32.mrb[0].mxu0
  %v1870 = vadd.f32 %v1066, %v1869
  %v1871 = vpop.f32.mrb[0].mxu0
  %v1872 = vadd.f32 %v1070, %v1871
  %1873 = vmatprep.mubr.f32.mxu0 %v1789
  %1874 = vmatmul.mubr.f32.gmra.mrb[0].mxu0 %v1788
  %v1875 = vpop.f32.mrb[0].mxu0
  %v1876 = vadd.f32 %v1066, %v1875
  %v1877 = vpop.f32.mrb[0].mxu0
  %v1878 = vadd.f32 %v1070, %v1877
  %1879 = vdwg.mxu0
  %1880 = vmatprep.subr.mxu0 %v872
  %1881 = vmatpush1.msra.mxu0 %v871
  %1882 = vmatprep.subr.mxu0 %v878
  %1883 = vmatpush1.msra.mxu0 %v877
  %1884 = vmatprep.subr.mxu0 %v884
  %1885 = vmatpush1.msra.mxu0 %v883
  %1886 = vmatprep.subr.mxu0 %v890
  %1887 = vmatpush1.msra.mxu0 %v889
  %1888 = vmatprep.subr.mxu0 %v896
  %1889 = vmatpush1.msra.mxu0 %v895
  %1890 = vmatprep.subr.mxu0 %v902
  %1891 = vmatpush1.msra.mxu0 %v901
  %1892 = vmatprep.subr.mxu0 %v908
  %1893 = vmatpush1.msra.mxu0 %v907
  %1894 = vmatprep.subr.mxu0 %v914
  %1895 = vmatpush1.msra.mxu0 %v913
  %1896 = vmatprep.subr.mxu0 %v920
  %1897 = vmatpush1.msra.mxu0 %v919
  %1898 = vmatprep.subr.mxu0 %v926
  %1899 = vmatpush1.msra.mxu0 %v925
  %1900 = vmatprep.subr.mxu0 %v932
  %1901 = vmatpush1.msra.mxu0 %v931
  %1902 = vmatprep.subr.mxu0 %v938
  %1903 = vmatpush1.msra.mxu0 %v937
  %1904 = vmatprep.subr.mxu0 %v944
  %1905 = vmatpush1.msra.mxu0 %v943
  %1906 = vmatprep.subr.mxu0 %v950
  %1907 = vmatpush1.msra.mxu0 %v949
  %1908 = vmatprep.subr.mxu0 %v956
  %1909 = vmatpush1.msra.mxu0 %v955
  %1910 = vmatprep.subr.mxu0 %v962
  %1911 = vmatpush1.msra.mxu0 %v961
  %1912 = vmatprep.subr.mxu0 %v968
  %1913 = vmatpush1.msra.mxu0 %v967
  %1914 = vmatprep.subr.mxu0 %v974
  %1915 = vmatpush1.msra.mxu0 %v973
  %1916 = vmatprep.subr.mxu0 %v980
  %1917 = vmatpush1.msra.mxu0 %v979
  %1918 = vmatprep.subr.mxu0 %v986
  %1919 = vmatpush1.msra.mxu0 %v985
  %1920 = vmatprep.subr.mxu0 %v992
  %1921 = vmatpush1.msra.mxu0 %v991
  %1922 = vmatprep.subr.mxu0 %v998
  %1923 = vmatpush1.msra.mxu0 %v997
  %1924 = vmatprep.subr.mxu0 %v1004
  %1925 = vmatpush1.msra.mxu0 %v1003
  %1926 = vmatprep.subr.mxu0 %v1010
  %1927 = vmatpush1.msra.mxu0 %v1009
  %1928 = vmatprep.subr.mxu0 %v1016
  %1929 = vmatpush1.msra.mxu0 %v1015
  %1930 = vmatprep.subr.mxu0 %v1022
  %1931 = vmatpush1.msra.mxu0 %v1021
  %1932 = vmatprep.subr.mxu0 %v1028
  %1933 = vmatpush1.msra.mxu0 %v1027
  %1934 = vmatprep.subr.mxu0 %v1034
  %1935 = vmatpush1.msra.mxu0 %v1033
  %1936 = vmatprep.subr.mxu0 %v1040
  %1937 = vmatpush1.msra.mxu0 %v1039
  %1938 = vmatprep.subr.mxu0 %v1046
  %1939 = vmatpush1.msra.mxu0 %v1045
  %1940 = vmatprep.subr.mxu0 %v1052
  %1941 = vmatpush1.msra.mxu0 %v1051
  %1942 = vmatprep.subr.mxu0 %v1058
  %1943 = vmatpush1.msra.mxu0 %v1057
  %1944 = vmatprep.mubr.f32.mxu0 %v1787
  %1945 = vmatmul.mubr.f32.gmra.mrb[0].mxu0 %v1786
  %v1946 = vpop.f32.mrb[0].mxu0
  %v1947 = vadd.f32 %v1074, %v1946
  %v1948 = vpop.f32.mrb[0].mxu0
  %v1949 = vadd.f32 %v1078, %v1948
  %1950 = vmatprep.mubr.f32.mxu0 %v1789
  %1951 = vmatmul.mubr.f32.gmra.mrb[0].mxu0 %v1788
  %v1952 = vpop.f32.mrb[0].mxu0
  %v1953 = vadd.f32 %v1074, %v1952
  %v1954 = vpop.f32.mrb[0].mxu0
  %v1955 = vadd.f32 %v1078, %v1954
  %1956 = vdwg.mxu0
  %1957 = vmatprep.subr.mxu0 %v874
  %1958 = vmatpush1.msra.mxu0 %v873
  %1959 = vmatprep.subr.mxu0 %v880
  %1960 = vmatpush1.msra.mxu0 %v879
  %1961 = vmatprep.subr.mxu0 %v886
  %1962 = vmatpush1.msra.mxu0 %v885
  %1963 = vmatprep.subr.mxu0 %v892
  %1964 = vmatpush1.msra.mxu0 %v891
  %1965 = vmatprep.subr.mxu0 %v898
  %1966 = vmatpush1.msra.mxu0 %v897
  %1967 = vmatprep.subr.mxu0 %v904
  %1968 = vmatpush1.msra.mxu0 %v903
  %1969 = vmatprep.subr.mxu0 %v910
  %1970 = vmatpush1.msra.mxu0 %v909
  %1971 = vmatprep.subr.mxu0 %v916
  %1972 = vmatpush1.msra.mxu0 %v915
  %1973 = vmatprep.subr.mxu0 %v922
  %1974 = vmatpush1.msra.mxu0 %v921
  %1975 = vmatprep.subr.mxu0 %v928
  %1976 = vmatpush1.msra.mxu0 %v927
  %1977 = vmatprep.subr.mxu0 %v934
  %1978 = vmatpush1.msra.mxu0 %v933
  %1979 = vmatprep.subr.mxu0 %v940
  %1980 = vmatpush1.msra.mxu0 %v939
  %1981 = vmatprep.subr.mxu0 %v946
  %1982 = vmatpush1.msra.mxu0 %v945
  %1983 = vmatprep.subr.mxu0 %v952
  %1984 = vmatpush1.msra.mxu0 %v951
  %1985 = vmatprep.subr.mxu0 %v958
  %1986 = vmatpush1.msra.mxu0 %v957
  %1987 = vmatprep.subr.mxu0 %v964
  %1988 = vmatpush1.msra.mxu0 %v963
  %1989 = vmatprep.subr.mxu0 %v970
  %1990 = vmatpush1.msra.mxu0 %v969
  %1991 = vmatprep.subr.mxu0 %v976
  %1992 = vmatpush1.msra.mxu0 %v975
  %1993 = vmatprep.subr.mxu0 %v982
  %1994 = vmatpush1.msra.mxu0 %v981
  %1995 = vmatprep.subr.mxu0 %v988
  %1996 = vmatpush1.msra.mxu0 %v987
  %1997 = vmatprep.subr.mxu0 %v994
  %1998 = vmatpush1.msra.mxu0 %v993
  %1999 = vmatprep.subr.mxu0 %v1000
  %2000 = vmatpush1.msra.mxu0 %v999
  %2001 = vmatprep.subr.mxu0 %v1006
  %2002 = vmatpush1.msra.mxu0 %v1005
  %2003 = vmatprep.subr.mxu0 %v1012
  %2004 = vmatpush1.msra.mxu0 %v1011
  %2005 = vmatprep.subr.mxu0 %v1018
  %2006 = vmatpush1.msra.mxu0 %v1017
  %2007 = vmatprep.subr.mxu0 %v1024
  %2008 = vmatpush1.msra.mxu0 %v1023
  %2009 = vmatprep.subr.mxu0 %v1030
  %2010 = vmatpush1.msra.mxu0 %v1029
  %2011 = vmatprep.subr.mxu0 %v1036
  %2012 = vmatpush1.msra.mxu0 %v1035
  %2013 = vmatprep.subr.mxu0 %v1042
  %2014 = vmatpush1.msra.mxu0 %v1041
  %2015 = vmatprep.subr.mxu0 %v1048
  %2016 = vmatpush1.msra.mxu0 %v1047
  %2017 = vmatprep.subr.mxu0 %v1054
  %2018 = vmatpush1.msra.mxu0 %v1053
  %2019 = vmatprep.subr.mxu0 %v1060
  %2020 = vmatpush1.msra.mxu0 %v1059
  %2021 = vmatprep.mubr.f32.mxu0 %v1787
  %2022 = vmatmul.mubr.f32.gmra.mrb[0].mxu0 %v1786
  %v2023 = vpop.f32.mrb[0].mxu0
  %v2024 = vadd.f32 %v1082, %v2023
  %v2025 = vpop.f32.mrb[0].mxu0
  %v2026 = vadd.f32 %v1086, %v2025
  %2027 = vmatprep.mubr.f32.mxu0 %v1789
  %2028 = vmatmul.mubr.f32.gmra.mrb[0].mxu0 %v1788
  %v2029 = vpop.f32.mrb[0].mxu0
  %v2030 = vadd.f32 %v1082, %v2029
  %v2031 = vpop.f32.mrb[0].mxu0
  %v2032 = vadd.f32 %v1086, %v2031
  %2033 = vdwg.mxu0
  %v2034 = vadd.f32 %v1791, %v1870
  %v2035 = vadd.f32 %v1792, %v1872
  %v2036 = vadd.f32 %v1797, %v1876
  %v2037 = vadd.f32 %v1798, %v1878
  %v2038 = vxor.u32 %v2034, 2147483648
  %v2039 = vxor.u32 %v2035, 2147483648
  %v2040 = vxor.u32 %v2036, 2147483648
  %v2041 = vxor.u32 %v2037, 2147483648
  %v2042 = vmul.f32 %v2038, 1.442695
  %v2043 = vpow.pop %v2042
  %v2044 = vmul.f32 %v2039, 1.442695
  %v2045 = vpow.pop %v2044
  %v2046 = vmul.f32 %v2040, 1.442695
  %v2047 = vpow.pop %v2046
  %v2048 = vmul.f32 %v2041, 1.442695
  %v2049 = vpow.pop %v2048
  %v2050 = vadd.f32 %v2043, 1.0
  %v2051 = vadd.f32 %v2045, 1.0
  %v2052 = vadd.f32 %v2047, 1.0
  %v2053 = vadd.f32 %v2049, 1.0
  %v2054 = vrcp.pop %v2050
  %v2055 = vmul.f32 1.0, %v2054
  %v2056 = vrcp.pop %v2051
  %v2057 = vmul.f32 1.0, %v2056
  %v2058 = vrcp.pop %v2052
  %v2059 = vmul.f32 1.0, %v2058
  %v2060 = vrcp.pop %v2053
  %v2061 = vmul.f32 1.0, %v2060
  %v2062 = vadd.f32 %v1793, %v1947
  %v2063 = vadd.f32 %v1794, %v1949
  %v2064 = vadd.f32 %v1799, %v1953
  %v2065 = vadd.f32 %v1800, %v1955
  %v2066 = vxor.u32 %v2062, 2147483648
  %v2067 = vxor.u32 %v2063, 2147483648
  %v2068 = vxor.u32 %v2064, 2147483648
  %v2069 = vxor.u32 %v2065, 2147483648
  %v2070 = vmul.f32 %v2066, 1.442695
  %v2071 = vpow.pop %v2070
  %v2072 = vmul.f32 %v2067, 1.442695
  %v2073 = vpow.pop %v2072
  %v2074 = vmul.f32 %v2068, 1.442695
  %v2075 = vpow.pop %v2074
  %v2076 = vmul.f32 %v2069, 1.442695
  %v2077 = vpow.pop %v2076
  %v2078 = vadd.f32 %v2071, 1.0
  %v2079 = vadd.f32 %v2073, 1.0
  %v2080 = vadd.f32 %v2075, 1.0
  %v2081 = vadd.f32 %v2077, 1.0
  %v2082 = vrcp.pop %v2078
  %v2083 = vmul.f32 1.0, %v2082
  %v2084 = vrcp.pop %v2079
  %v2085 = vmul.f32 1.0, %v2084
  %v2086 = vrcp.pop %v2080
  %v2087 = vmul.f32 1.0, %v2086
  %v2088 = vrcp.pop %v2081
  %v2089 = vmul.f32 1.0, %v2088
  %v2090 = vmul.f32 %v2055, %v2024
  %v2091 = vmul.f32 %v2057, %v2026
  %v2092 = vmul.f32 %v2059, %v2030
  %v2093 = vmul.f32 %v2061, %v2032
  %v2094 = vadd.f32 %v1795, %v2090
  %v2095 = vadd.f32 %v1796, %v2091
  %v2096 = vadd.f32 %v1801, %v2092
  %v2097 = vadd.f32 %v1802, %v2093
  %v2098 = vtanh.pop %v2094
  %v2099 = vtanh.pop %v2095
  %v2100 = vtanh.pop %v2096
  %v2101 = vtanh.pop %v2097
  %v2102 = vsub.f32 1.0, %v2083
  %v2103 = vsub.f32 1.0, %v2085
  %v2104 = vsub.f32 1.0, %v2087
  %v2105 = vsub.f32 1.0, %v2089
  %v2106 = vmul.f32 %v2102, %v2098
  %v2107 = vmul.f32 %v2103, %v2099
  %v2108 = vmul.f32 %v2104, %v2100
  %v2109 = vmul.f32 %v2105, %v2101
  %v2110 = vmul.f32 %v2083, %v1786
  %v2111 = vmul.f32 %v2085, %v1787
  %v2112 = vmul.f32 %v2087, %v1788
  %v2113 = vmul.f32 %v2089, %v1789
  %v2114 = vadd.f32 %v2106, %v2110
  %v2115 = vadd.f32 %v2107, %v2111
  %v2116 = vadd.f32 %v2108, %v2112
  %v2117 = vadd.f32 %v2109, %v2113
  %s2118 = sadd.s32 %s1093, 2
  %p2119 = scmp.lt.s32.totalorder %s2118, 8
  %s2120 = scalar_select %p2119, 1, 0
  %s2121 = scvt.s32.f32 %s2120
  %v2122 = vstv %s2121
  %v2123 = vmul.f32 %v2122, %v2114
  %v2124 = vmul.f32 %v2122, %v2115
  %v2125 = vmul.f32 %v2122, %v2116
  %v2126 = vmul.f32 %v2122, %v2117
  %s2127 = ssub.f32 1.0, %s2121
  %v2128 = vstv %s2127
  %v2129 = vmul.f32 %v2128, %v1786
  %v2130 = vmul.f32 %v2128, %v1787
  %v2131 = vmul.f32 %v2128, %v1788
  %v2132 = vmul.f32 %v2128, %v1789
  %v2133 = vadd.f32 %v2123, %v2129
  %v2134 = vadd.f32 %v2124, %v2130
  %v2135 = vadd.f32 %v2125, %v2131
  %v2136 = vadd.f32 %v2126, %v2132
  %s2137 = scalar_lea.vmem [#allocation3], 288
  %v2138 = vld [vmem:[%s2137] sm:$0xff]
  %v2139 = vld [vmem:[%s2137 + $0x8] sm:$0xff]
  %v2140 = vld [vmem:[%s2137 + $0x10] sm:$0xff]
  %v2141 = vld [vmem:[%s2137 + $0x18] sm:$0xff]
  %v2142 = vld [vmem:[%s2137 + $0x20] sm:$0xff]
  %v2143 = vld [vmem:[%s2137 + $0x28] sm:$0xff]
  %v2144 = vld [vmem:[%s2137 + $0x30] sm:$0xff]
  %v2145 = vld [vmem:[%s2137 + $0x38] sm:$0xff]
  %v2146 = vld [vmem:[%s2137 + $0x40] sm:$0xff]
  %v2147 = vld [vmem:[%s2137 + $0x48] sm:$0xff]
  %v2148 = vld [vmem:[%s2137 + $0x50] sm:$0xff]
  %v2149 = vld [vmem:[%s2137 + $0x58] sm:$0xff]
  %2150 = vmatprep.subr.mxu0 %v870
  %2151 = vmatpush1.msra.mxu0 %v869
  %2152 = vmatprep.subr.mxu0 %v876
  %2153 = vmatpush1.msra.mxu0 %v875
  %2154 = vmatprep.subr.mxu0 %v882
  %2155 = vmatpush1.msra.mxu0 %v881
  %2156 = vmatprep.subr.mxu0 %v888
  %2157 = vmatpush1.msra.mxu0 %v887
  %2158 = vmatprep.subr.mxu0 %v894
  %2159 = vmatpush1.msra.mxu0 %v893
  %2160 = vmatprep.subr.mxu0 %v900
  %2161 = vmatpush1.msra.mxu0 %v899
  %2162 = vmatprep.subr.mxu0 %v906
  %2163 = vmatpush1.msra.mxu0 %v905
  %2164 = vmatprep.subr.mxu0 %v912
  %2165 = vmatpush1.msra.mxu0 %v911
  %2166 = vmatprep.subr.mxu0 %v918
  %2167 = vmatpush1.msra.mxu0 %v917
  %2168 = vmatprep.subr.mxu0 %v924
  %2169 = vmatpush1.msra.mxu0 %v923
  %2170 = vmatprep.subr.mxu0 %v930
  %2171 = vmatpush1.msra.mxu0 %v929
  %2172 = vmatprep.subr.mxu0 %v936
  %2173 = vmatpush1.msra.mxu0 %v935
  %2174 = vmatprep.subr.mxu0 %v942
  %2175 = vmatpush1.msra.mxu0 %v941
  %2176 = vmatprep.subr.mxu0 %v948
  %2177 = vmatpush1.msra.mxu0 %v947
  %2178 = vmatprep.subr.mxu0 %v954
  %2179 = vmatpush1.msra.mxu0 %v953
  %2180 = vmatprep.subr.mxu0 %v960
  %2181 = vmatpush1.msra.mxu0 %v959
  %2182 = vmatprep.subr.mxu0 %v966
  %2183 = vmatpush1.msra.mxu0 %v965
  %2184 = vmatprep.subr.mxu0 %v972
  %2185 = vmatpush1.msra.mxu0 %v971
  %2186 = vmatprep.subr.mxu0 %v978
  %2187 = vmatpush1.msra.mxu0 %v977
  %2188 = vmatprep.subr.mxu0 %v984
  %2189 = vmatpush1.msra.mxu0 %v983
  %2190 = vmatprep.subr.mxu0 %v990
  %2191 = vmatpush1.msra.mxu0 %v989
  %2192 = vmatprep.subr.mxu0 %v996
  %2193 = vmatpush1.msra.mxu0 %v995
  %2194 = vmatprep.subr.mxu0 %v1002
  %2195 = vmatpush1.msra.mxu0 %v1001
  %2196 = vmatprep.subr.mxu0 %v1008
  %2197 = vmatpush1.msra.mxu0 %v1007
  %2198 = vmatprep.subr.mxu0 %v1014
  %2199 = vmatpush1.msra.mxu0 %v1013
  %2200 = vmatprep.subr.mxu0 %v1020
  %2201 = vmatpush1.msra.mxu0 %v1019
  %2202 = vmatprep.subr.mxu0 %v1026
  %2203 = vmatpush1.msra.mxu0 %v1025
  %2204 = vmatprep.subr.mxu0 %v1032
  %2205 = vmatpush1.msra.mxu0 %v1031
  %2206 = vmatprep.subr.mxu0 %v1038
  %2207 = vmatpush1.msra.mxu0 %v1037
  %2208 = vmatprep.subr.mxu0 %v1044
  %2209 = vmatpush1.msra.mxu0 %v1043
  %2210 = vmatprep.subr.mxu0 %v1050
  %2211 = vmatpush1.msra.mxu0 %v1049
  %2212 = vmatprep.subr.mxu0 %v1056
  %2213 = vmatpush1.msra.mxu0 %v1055
  %2214 = vmatprep.mubr.f32.mxu0 %v2134
  %2215 = vmatmul.mubr.f32.gmra.mrb[0].mxu0 %v2133
  %v2216 = vpop.f32.mrb[0].mxu0
  %v2217 = vadd.f32 %v1066, %v2216
  %v2218 = vpop.f32.mrb[0].mxu0
  %v2219 = vadd.f32 %v1070, %v2218
  %2220 = vmatprep.mubr.f32.mxu0 %v2136
  %2221 = vmatmul.mubr.f32.gmra.mrb[0].mxu0 %v2135
  %v2222 = vpop.f32.mrb[0].mxu0
  %v2223 = vadd.f32 %v1066, %v2222
  %v2224 = vpop.f32.mrb[0].mxu0
  %v2225 = vadd.f32 %v1070, %v2224
  %2226 = vdwg.mxu0
  %2227 = vmatprep.subr.mxu0 %v872
  %2228 = vmatpush1.msra.mxu0 %v871
  %2229 = vmatprep.subr.mxu0 %v878
  %2230 = vmatpush1.msra.mxu0 %v877
  %2231 = vmatprep.subr.mxu0 %v884
  %2232 = vmatpush1.msra.mxu0 %v883
  %2233 = vmatprep.subr.mxu0 %v890
  %2234 = vmatpush1.msra.mxu0 %v889
  %2235 = vmatprep.subr.mxu0 %v896
  %2236 = vmatpush1.msra.mxu0 %v895
  %2237 = vmatprep.subr.mxu0 %v902
  %2238 = vmatpush1.msra.mxu0 %v901
  %2239 = vmatprep.subr.mxu0 %v908
  %2240 = vmatpush1.msra.mxu0 %v907
  %2241 = vmatprep.subr.mxu0 %v914
  %2242 = vmatpush1.msra.mxu0 %v913
  %2243 = vmatprep.subr.mxu0 %v920
  %2244 = vmatpush1.msra.mxu0 %v919
  %2245 = vmatprep.subr.mxu0 %v926
  %2246 = vmatpush1.msra.mxu0 %v925
  %2247 = vmatprep.subr.mxu0 %v932
  %2248 = vmatpush1.msra.mxu0 %v931
  %2249 = vmatprep.subr.mxu0 %v938
  %2250 = vmatpush1.msra.mxu0 %v937
  %2251 = vmatprep.subr.mxu0 %v944
  %2252 = vmatpush1.msra.mxu0 %v943
  %2253 = vmatprep.subr.mxu0 %v950
  %2254 = vmatpush1.msra.mxu0 %v949
  %2255 = vmatprep.subr.mxu0 %v956
  %2256 = vmatpush1.msra.mxu0 %v955
  %2257 = vmatprep.subr.mxu0 %v962
  %2258 = vmatpush1.msra.mxu0 %v961
  %2259 = vmatprep.subr.mxu0 %v968
  %2260 = vmatpush1.msra.mxu0 %v967
  %2261 = vmatprep.subr.mxu0 %v974
  %2262 = vmatpush1.msra.mxu0 %v973
  %2263 = vmatprep.subr.mxu0 %v980
  %2264 = vmatpush1.msra.mxu0 %v979
  %2265 = vmatprep.subr.mxu0 %v986
  %2266 = vmatpush1.msra.mxu0 %v985
  %2267 = vmatprep.subr.mxu0 %v992
  %2268 = vmatpush1.msra.mxu0 %v991
  %2269 = vmatprep.subr.mxu0 %v998
  %2270 = vmatpush1.msra.mxu0 %v997
  %2271 = vmatprep.subr.mxu0 %v1004
  %2272 = vmatpush1.msra.mxu0 %v1003
  %2273 = vmatprep.subr.mxu0 %v1010
  %2274 = vmatpush1.msra.mxu0 %v1009
  %2275 = vmatprep.subr.mxu0 %v1016
  %2276 = vmatpush1.msra.mxu0 %v1015
  %2277 = vmatprep.subr.mxu0 %v1022
  %2278 = vmatpush1.msra.mxu0 %v1021
  %2279 = vmatprep.subr.mxu0 %v1028
  %2280 = vmatpush1.msra.mxu0 %v1027
  %2281 = vmatprep.subr.mxu0 %v1034
  %2282 = vmatpush1.msra.mxu0 %v1033
  %2283 = vmatprep.subr.mxu0 %v1040
  %2284 = vmatpush1.msra.mxu0 %v1039
  %2285 = vmatprep.subr.mxu0 %v1046
  %2286 = vmatpush1.msra.mxu0 %v1045
  %2287 = vmatprep.subr.mxu0 %v1052
  %2288 = vmatpush1.msra.mxu0 %v1051
  %2289 = vmatprep.subr.mxu0 %v1058
  %2290 = vmatpush1.msra.mxu0 %v1057
  %2291 = vmatprep.mubr.f32.mxu0 %v2134
  %2292 = vmatmul.mubr.f32.gmra.mrb[0].mxu0 %v2133
  %v2293 = vpop.f32.mrb[0].mxu0
  %v2294 = vadd.f32 %v1074, %v2293
  %v2295 = vpop.f32.mrb[0].mxu0
  %v2296 = vadd.f32 %v1078, %v2295
  %2297 = vmatprep.mubr.f32.mxu0 %v2136
  %2298 = vmatmul.mubr.f32.gmra.mrb[0].mxu0 %v2135
  %v2299 = vpop.f32.mrb[0].mxu0
  %v2300 = vadd.f32 %v1074, %v2299
  %v2301 = vpop.f32.mrb[0].mxu0
  %v2302 = vadd.f32 %v1078, %v2301
  %2303 = vdwg.mxu0
  %2304 = vmatprep.subr.mxu0 %v874
  %2305 = vmatpush1.msra.mxu0 %v873
  %2306 = vmatprep.subr.mxu0 %v880
  %2307 = vmatpush1.msra.mxu0 %v879
  %2308 = vmatprep.subr.mxu0 %v886
  %2309 = vmatpush1.msra.mxu0 %v885
  %2310 = vmatprep.subr.mxu0 %v892
  %2311 = vmatpush1.msra.mxu0 %v891
  %2312 = vmatprep.subr.mxu0 %v898
  %2313 = vmatpush1.msra.mxu0 %v897
  %2314 = vmatprep.subr.mxu0 %v904
  %2315 = vmatpush1.msra.mxu0 %v903
  %2316 = vmatprep.subr.mxu0 %v910
  %2317 = vmatpush1.msra.mxu0 %v909
  %2318 = vmatprep.subr.mxu0 %v916
  %2319 = vmatpush1.msra.mxu0 %v915
  %2320 = vmatprep.subr.mxu0 %v922
  %2321 = vmatpush1.msra.mxu0 %v921
  %2322 = vmatprep.subr.mxu0 %v928
  %2323 = vmatpush1.msra.mxu0 %v927
  %2324 = vmatprep.subr.mxu0 %v934
  %2325 = vmatpush1.msra.mxu0 %v933
  %2326 = vmatprep.subr.mxu0 %v940
  %2327 = vmatpush1.msra.mxu0 %v939
  %2328 = vmatprep.subr.mxu0 %v946
  %2329 = vmatpush1.msra.mxu0 %v945
  %2330 = vmatprep.subr.mxu0 %v952
  %2331 = vmatpush1.msra.mxu0 %v951
  %2332 = vmatprep.subr.mxu0 %v958
  %2333 = vmatpush1.msra.mxu0 %v957
  %2334 = vmatprep.subr.mxu0 %v964
  %2335 = vmatpush1.msra.mxu0 %v963
  %2336 = vmatprep.subr.mxu0 %v970
  %2337 = vmatpush1.msra.mxu0 %v969
  %2338 = vmatprep.subr.mxu0 %v976
  %2339 = vmatpush1.msra.mxu0 %v975
  %2340 = vmatprep.subr.mxu0 %v982
  %2341 = vmatpush1.msra.mxu0 %v981
  %2342 = vmatprep.subr.mxu0 %v988
  %2343 = vmatpush1.msra.mxu0 %v987
  %2344 = vmatprep.subr.mxu0 %v994
  %2345 = vmatpush1.msra.mxu0 %v993
  %2346 = vmatprep.subr.mxu0 %v1000
  %2347 = vmatpush1.msra.mxu0 %v999
  %2348 = vmatprep.subr.mxu0 %v1006
  %2349 = vmatpush1.msra.mxu0 %v1005
  %2350 = vmatprep.subr.mxu0 %v1012
  %2351 = vmatpush1.msra.mxu0 %v1011
  %2352 = vmatprep.subr.mxu0 %v1018
  %2353 = vmatpush1.msra.mxu0 %v1017
  %2354 = vmatprep.subr.mxu0 %v1024
  %2355 = vmatpush1.msra.mxu0 %v1023
  %2356 = vmatprep.subr.mxu0 %v1030
  %2357 = vmatpush1.msra.mxu0 %v1029
  %2358 = vmatprep.subr.mxu0 %v1036
  %2359 = vmatpush1.msra.mxu0 %v1035
  %2360 = vmatprep.subr.mxu0 %v1042
  %2361 = vmatpush1.msra.mxu0 %v1041
  %2362 = vmatprep.subr.mxu0 %v1048
  %2363 = vmatpush1.msra.mxu0 %v1047
  %2364 = vmatprep.subr.mxu0 %v1054
  %2365 = vmatpush1.msra.mxu0 %v1053
  %2366 = vmatprep.subr.mxu0 %v1060
  %2367 = vmatpush1.msra.mxu0 %v1059
  %2368 = vmatprep.mubr.f32.mxu0 %v2134
  %2369 = vmatmul.mubr.f32.gmra.mrb[0].mxu0 %v2133
  %v2370 = vpop.f32.mrb[0].mxu0
  %v2371 = vadd.f32 %v1082, %v2370
  %v2372 = vpop.f32.mrb[0].mxu0
  %v2373 = vadd.f32 %v1086, %v2372
  %2374 = vmatprep.mubr.f32.mxu0 %v2136
  %2375 = vmatmul.mubr.f32.gmra.mrb[0].mxu0 %v2135
  %v2376 = vpop.f32.mrb[0].mxu0
  %v2377 = vadd.f32 %v1082, %v2376
  %v2378 = vpop.f32.mrb[0].mxu0
  %v2379 = vadd.f32 %v1086, %v2378
  %2380 = vdwg.mxu0
  %v2381 = vadd.f32 %v2138, %v2217
  %v2382 = vadd.f32 %v2139, %v2219
  %v2383 = vadd.f32 %v2144, %v2223
  %v2384 = vadd.f32 %v2145, %v2225
  %v2385 = vxor.u32 %v2381, 2147483648
  %v2386 = vxor.u32 %v2382, 2147483648
  %v2387 = vxor.u32 %v2383, 2147483648
  %v2388 = vxor.u32 %v2384, 2147483648
  %v2389 = vmul.f32 %v2385, 1.442695
  %v2390 = vpow.pop %v2389
  %v2391 = vmul.f32 %v2386, 1.442695
  %v2392 = vpow.pop %v2391
  %v2393 = vmul.f32 %v2387, 1.442695
  %v2394 = vpow.pop %v2393
  %v2395 = vmul.f32 %v2388, 1.442695
  %v2396 = vpow.pop %v2395
  %v2397 = vadd.f32 %v2390, 1.0
  %v2398 = vadd.f32 %v2392, 1.0
  %v2399 = vadd.f32 %v2394, 1.0
  %v2400 = vadd.f32 %v2396, 1.0
  %v2401 = vrcp.pop %v2397
  %v2402 = vmul.f32 1.0, %v2401
  %v2403 = vrcp.pop %v2398
  %v2404 = vmul.f32 1.0, %v2403
  %v2405 = vrcp.pop %v2399
  %v2406 = vmul.f32 1.0, %v2405
  %v2407 = vrcp.pop %v2400
  %v2408 = vmul.f32 1.0, %v2407
  %v2409 = vadd.f32 %v2140, %v2294
  %v2410 = vadd.f32 %v2141, %v2296
  %v2411 = vadd.f32 %v2146, %v2300
  %v2412 = vadd.f32 %v2147, %v2302
  %v2413 = vxor.u32 %v2409, 2147483648
  %v2414 = vxor.u32 %v2410, 2147483648
  %v2415 = vxor.u32 %v2411, 2147483648
  %v2416 = vxor.u32 %v2412, 2147483648
  %v2417 = vmul.f32 %v2413, 1.442695
  %v2418 = vpow.pop %v2417
  %v2419 = vmul.f32 %v2414, 1.442695
  %v2420 = vpow.pop %v2419
  %v2421 = vmul.f32 %v2415, 1.442695
  %v2422 = vpow.pop %v2421
  %v2423 = vmul.f32 %v2416, 1.442695
  %v2424 = vpow.pop %v2423
  %v2425 = vadd.f32 %v2418, 1.0
  %v2426 = vadd.f32 %v2420, 1.0
  %v2427 = vadd.f32 %v2422, 1.0
  %v2428 = vadd.f32 %v2424, 1.0
  %v2429 = vrcp.pop %v2425
  %v2430 = vmul.f32 1.0, %v2429
  %v2431 = vrcp.pop %v2426
  %v2432 = vmul.f32 1.0, %v2431
  %v2433 = vrcp.pop %v2427
  %v2434 = vmul.f32 1.0, %v2433
  %v2435 = vrcp.pop %v2428
  %v2436 = vmul.f32 1.0, %v2435
  %v2437 = vmul.f32 %v2402, %v2371
  %v2438 = vmul.f32 %v2404, %v2373
  %v2439 = vmul.f32 %v2406, %v2377
  %v2440 = vmul.f32 %v2408, %v2379
  %v2441 = vadd.f32 %v2142, %v2437
  %v2442 = vadd.f32 %v2143, %v2438
  %v2443 = vadd.f32 %v2148, %v2439
  %v2444 = vadd.f32 %v2149, %v2440
  %v2445 = vtanh.pop %v2441
  %v2446 = vtanh.pop %v2442
  %v2447 = vtanh.pop %v2443
  %v2448 = vtanh.pop %v2444
  %v2449 = vsub.f32 1.0, %v2430
  %v2450 = vsub.f32 1.0, %v2432
  %v2451 = vsub.f32 1.0, %v2434
  %v2452 = vsub.f32 1.0, %v2436
  %v2453 = vmul.f32 %v2449, %v2445
  %v2454 = vmul.f32 %v2450, %v2446
  %v2455 = vmul.f32 %v2451, %v2447
  %v2456 = vmul.f32 %v2452, %v2448
  %v2457 = vmul.f32 %v2430, %v2133
  %v2458 = vmul.f32 %v2432, %v2134
  %v2459 = vmul.f32 %v2434, %v2135
  %v2460 = vmul.f32 %v2436, %v2136
  %v2461 = vadd.f32 %v2453, %v2457
  %v2462 = vadd.f32 %v2454, %v2458
  %v2463 = vadd.f32 %v2455, %v2459
  %v2464 = vadd.f32 %v2456, %v2460
  %s2465 = sadd.s32 %s1093, 3
  %p2466 = scmp.lt.s32.totalorder %s2465, 8
  %s2467 = scalar_select %p2466, 1, 0
  %s2468 = scvt.s32.f32 %s2467
  %v2469 = vstv %s2468
  %v2470 = vmul.f32 %v2469, %v2461
  %v2471 = vmul.f32 %v2469, %v2462
  %v2472 = vmul.f32 %v2469, %v2463
  %v2473 = vmul.f32 %v2469, %v2464
  %s2474 = ssub.f32 1.0, %s2468
  %v2475 = vstv %s2474
  %v2476 = vmul.f32 %v2475, %v2133
  %v2477 = vmul.f32 %v2475, %v2134
  %v2478 = vmul.f32 %v2475, %v2135
  %v2479 = vmul.f32 %v2475, %v2136
  %v2480 = vadd.f32 %v2470, %v2476
  %v2481 = vadd.f32 %v2471, %v2477
  %v2482 = vadd.f32 %v2472, %v2478
  %v2483 = vadd.f32 %v2473, %v2479
  %s2484 = scalar_lea.vmem [#allocation3], 384
  %v2485 = vld [vmem:[%s2484] sm:$0xff]
  %v2486 = vld [vmem:[%s2484 + $0x8] sm:$0xff]
  %v2487 = vld [vmem:[%s2484 + $0x10] sm:$0xff]
  %v2488 = vld [vmem:[%s2484 + $0x18] sm:$0xff]
  %v2489 = vld [vmem:[%s2484 + $0x20] sm:$0xff]
  %v2490 = vld [vmem:[%s2484 + $0x28] sm:$0xff]
  %v2491 = vld [vmem:[%s2484 + $0x30] sm:$0xff]
  %v2492 = vld [vmem:[%s2484 + $0x38] sm:$0xff]
  %v2493 = vld [vmem:[%s2484 + $0x40] sm:$0xff]
  %v2494 = vld [vmem:[%s2484 + $0x48] sm:$0xff]
  %v2495 = vld [vmem:[%s2484 + $0x50] sm:$0xff]
  %v2496 = vld [vmem:[%s2484 + $0x58] sm:$0xff]
  %2497 = vmatprep.subr.mxu0 %v870
  %2498 = vmatpush1.msra.mxu0 %v869
  %2499 = vmatprep.subr.mxu0 %v876
  %2500 = vmatpush1.msra.mxu0 %v875
  %2501 = vmatprep.subr.mxu0 %v882
  %2502 = vmatpush1.msra.mxu0 %v881
  %2503 = vmatprep.subr.mxu0 %v888
  %2504 = vmatpush1.msra.mxu0 %v887
  %2505 = vmatprep.subr.mxu0 %v894
  %2506 = vmatpush1.msra.mxu0 %v893
  %2507 = vmatprep.subr.mxu0 %v900
  %2508 = vmatpush1.msra.mxu0 %v899
  %2509 = vmatprep.subr.mxu0 %v906
  %2510 = vmatpush1.msra.mxu0 %v905
  %2511 = vmatprep.subr.mxu0 %v912
  %2512 = vmatpush1.msra.mxu0 %v911
  %2513 = vmatprep.subr.mxu0 %v918
  %2514 = vmatpush1.msra.mxu0 %v917
  %2515 = vmatprep.subr.mxu0 %v924
  %2516 = vmatpush1.msra.mxu0 %v923
  %2517 = vmatprep.subr.mxu0 %v930
  %2518 = vmatpush1.msra.mxu0 %v929
  %2519 = vmatprep.subr.mxu0 %v936
  %2520 = vmatpush1.msra.mxu0 %v935
  %2521 = vmatprep.subr.mxu0 %v942
  %2522 = vmatpush1.msra.mxu0 %v941
  %2523 = vmatprep.subr.mxu0 %v948
  %2524 = vmatpush1.msra.mxu0 %v947
  %2525 = vmatprep.subr.mxu0 %v954
  %2526 = vmatpush1.msra.mxu0 %v953
  %2527 = vmatprep.subr.mxu0 %v960
  %2528 = vmatpush1.msra.mxu0 %v959
  %2529 = vmatprep.subr.mxu0 %v966
  %2530 = vmatpush1.msra.mxu0 %v965
  %2531 = vmatprep.subr.mxu0 %v972
  %2532 = vmatpush1.msra.mxu0 %v971
  %2533 = vmatprep.subr.mxu0 %v978
  %2534 = vmatpush1.msra.mxu0 %v977
  %2535 = vmatprep.subr.mxu0 %v984
  %2536 = vmatpush1.msra.mxu0 %v983
  %2537 = vmatprep.subr.mxu0 %v990
  %2538 = vmatpush1.msra.mxu0 %v989
  %2539 = vmatprep.subr.mxu0 %v996
  %2540 = vmatpush1.msra.mxu0 %v995
  %2541 = vmatprep.subr.mxu0 %v1002
  %2542 = vmatpush1.msra.mxu0 %v1001
  %2543 = vmatprep.subr.mxu0 %v1008
  %2544 = vmatpush1.msra.mxu0 %v1007
  %2545 = vmatprep.subr.mxu0 %v1014
  %2546 = vmatpush1.msra.mxu0 %v1013
  %2547 = vmatprep.subr.mxu0 %v1020
  %2548 = vmatpush1.msra.mxu0 %v1019
  %2549 = vmatprep.subr.mxu0 %v1026
  %2550 = vmatpush1.msra.mxu0 %v1025
  %2551 = vmatprep.subr.mxu0 %v1032
  %2552 = vmatpush1.msra.mxu0 %v1031
  %2553 = vmatprep.subr.mxu0 %v1038
  %2554 = vmatpush1.msra.mxu0 %v1037
  %2555 = vmatprep.subr.mxu0 %v1044
  %2556 = vmatpush1.msra.mxu0 %v1043
  %2557 = vmatprep.subr.mxu0 %v1050
  %2558 = vmatpush1.msra.mxu0 %v1049
  %2559 = vmatprep.subr.mxu0 %v1056
  %2560 = vmatpush1.msra.mxu0 %v1055
  %2561 = vmatprep.mubr.f32.mxu0 %v2481
  %2562 = vmatmul.mubr.f32.gmra.mrb[0].mxu0 %v2480
  %v2563 = vpop.f32.mrb[0].mxu0
  %v2564 = vadd.f32 %v1066, %v2563
  %v2565 = vpop.f32.mrb[0].mxu0
  %v2566 = vadd.f32 %v1070, %v2565
  %2567 = vmatprep.mubr.f32.mxu0 %v2483
  %2568 = vmatmul.mubr.f32.gmra.mrb[0].mxu0 %v2482
  %v2569 = vpop.f32.mrb[0].mxu0
  %v2570 = vadd.f32 %v1066, %v2569
  %v2571 = vpop.f32.mrb[0].mxu0
  %v2572 = vadd.f32 %v1070, %v2571
  %2573 = vdwg.mxu0
  %2574 = vmatprep.subr.mxu0 %v872
  %2575 = vmatpush1.msra.mxu0 %v871
  %2576 = vmatprep.subr.mxu0 %v878
  %2577 = vmatpush1.msra.mxu0 %v877
  %2578 = vmatprep.subr.mxu0 %v884
  %2579 = vmatpush1.msra.mxu0 %v883
  %2580 = vmatprep.subr.mxu0 %v890
  %2581 = vmatpush1.msra.mxu0 %v889
  %2582 = vmatprep.subr.mxu0 %v896
  %2583 = vmatpush1.msra.mxu0 %v895
  %2584 = vmatprep.subr.mxu0 %v902
  %2585 = vmatpush1.msra.mxu0 %v901
  %2586 = vmatprep.subr.mxu0 %v908
  %2587 = vmatpush1.msra.mxu0 %v907
  %2588 = vmatprep.subr.mxu0 %v914
  %2589 = vmatpush1.msra.mxu0 %v913
  %2590 = vmatprep.subr.mxu0 %v920
  %2591 = vmatpush1.msra.mxu0 %v919
  %2592 = vmatprep.subr.mxu0 %v926
  %2593 = vmatpush1.msra.mxu0 %v925
  %2594 = vmatprep.subr.mxu0 %v932
  %2595 = vmatpush1.msra.mxu0 %v931
  %2596 = vmatprep.subr.mxu0 %v938
  %2597 = vmatpush1.msra.mxu0 %v937
  %2598 = vmatprep.subr.mxu0 %v944
  %2599 = vmatpush1.msra.mxu0 %v943
  %2600 = vmatprep.subr.mxu0 %v950
  %2601 = vmatpush1.msra.mxu0 %v949
  %2602 = vmatprep.subr.mxu0 %v956
  %2603 = vmatpush1.msra.mxu0 %v955
  %2604 = vmatprep.subr.mxu0 %v962
  %2605 = vmatpush1.msra.mxu0 %v961
  %2606 = vmatprep.subr.mxu0 %v968
  %2607 = vmatpush1.msra.mxu0 %v967
  %2608 = vmatprep.subr.mxu0 %v974
  %2609 = vmatpush1.msra.mxu0 %v973
  %2610 = vmatprep.subr.mxu0 %v980
  %2611 = vmatpush1.msra.mxu0 %v979
  %2612 = vmatprep.subr.mxu0 %v986
  %2613 = vmatpush1.msra.mxu0 %v985
  %2614 = vmatprep.subr.mxu0 %v992
  %2615 = vmatpush1.msra.mxu0 %v991
  %2616 = vmatprep.subr.mxu0 %v998
  %2617 = vmatpush1.msra.mxu0 %v997
  %2618 = vmatprep.subr.mxu0 %v1004
  %2619 = vmatpush1.msra.mxu0 %v1003
  %2620 = vmatprep.subr.mxu0 %v1010
  %2621 = vmatpush1.msra.mxu0 %v1009
  %2622 = vmatprep.subr.mxu0 %v1016
  %2623 = vmatpush1.msra.mxu0 %v1015
  %2624 = vmatprep.subr.mxu0 %v1022
  %2625 = vmatpush1.msra.mxu0 %v1021
  %2626 = vmatprep.subr.mxu0 %v1028
  %2627 = vmatpush1.msra.mxu0 %v1027
  %2628 = vmatprep.subr.mxu0 %v1034
  %2629 = vmatpush1.msra.mxu0 %v1033
  %2630 = vmatprep.subr.mxu0 %v1040
  %2631 = vmatpush1.msra.mxu0 %v1039
  %2632 = vmatprep.subr.mxu0 %v1046
  %2633 = vmatpush1.msra.mxu0 %v1045
  %2634 = vmatprep.subr.mxu0 %v1052
  %2635 = vmatpush1.msra.mxu0 %v1051
  %2636 = vmatprep.subr.mxu0 %v1058
  %2637 = vmatpush1.msra.mxu0 %v1057
  %2638 = vmatprep.mubr.f32.mxu0 %v2481
  %2639 = vmatmul.mubr.f32.gmra.mrb[0].mxu0 %v2480
  %v2640 = vpop.f32.mrb[0].mxu0
  %v2641 = vadd.f32 %v1074, %v2640
  %v2642 = vpop.f32.mrb[0].mxu0
  %v2643 = vadd.f32 %v1078, %v2642
  %2644 = vmatprep.mubr.f32.mxu0 %v2483
  %2645 = vmatmul.mubr.f32.gmra.mrb[0].mxu0 %v2482
  %v2646 = vpop.f32.mrb[0].mxu0
  %v2647 = vadd.f32 %v1074, %v2646
  %v2648 = vpop.f32.mrb[0].mxu0
  %v2649 = vadd.f32 %v1078, %v2648
  %2650 = vdwg.mxu0
  %2651 = vmatprep.subr.mxu0 %v874
  %2652 = vmatpush1.msra.mxu0 %v873
  %2653 = vmatprep.subr.mxu0 %v880
  %2654 = vmatpush1.msra.mxu0 %v879
  %2655 = vmatprep.subr.mxu0 %v886
  %2656 = vmatpush1.msra.mxu0 %v885
  %2657 = vmatprep.subr.mxu0 %v892
  %2658 = vmatpush1.msra.mxu0 %v891
  %2659 = vmatprep.subr.mxu0 %v898
  %2660 = vmatpush1.msra.mxu0 %v897
  %2661 = vmatprep.subr.mxu0 %v904
  %2662 = vmatpush1.msra.mxu0 %v903
  %2663 = vmatprep.subr.mxu0 %v910
  %2664 = vmatpush1.msra.mxu0 %v909
  %2665 = vmatprep.subr.mxu0 %v916
  %2666 = vmatpush1.msra.mxu0 %v915
  %2667 = vmatprep.subr.mxu0 %v922
  %2668 = vmatpush1.msra.mxu0 %v921
  %2669 = vmatprep.subr.mxu0 %v928
  %2670 = vmatpush1.msra.mxu0 %v927
  %2671 = vmatprep.subr.mxu0 %v934
  %2672 = vmatpush1.msra.mxu0 %v933
  %2673 = vmatprep.subr.mxu0 %v940
  %2674 = vmatpush1.msra.mxu0 %v939
  %2675 = vmatprep.subr.mxu0 %v946
  %2676 = vmatpush1.msra.mxu0 %v945
  %2677 = vmatprep.subr.mxu0 %v952
  %2678 = vmatpush1.msra.mxu0 %v951
  %2679 = vmatprep.subr.mxu0 %v958
  %2680 = vmatpush1.msra.mxu0 %v957
  %2681 = vmatprep.subr.mxu0 %v964
  %2682 = vmatpush1.msra.mxu0 %v963
  %2683 = vmatprep.subr.mxu0 %v970
  %2684 = vmatpush1.msra.mxu0 %v969
  %2685 = vmatprep.subr.mxu0 %v976
  %2686 = vmatpush1.msra.mxu0 %v975
  %2687 = vmatprep.subr.mxu0 %v982
  %2688 = vmatpush1.msra.mxu0 %v981
  %2689 = vmatprep.subr.mxu0 %v988
  %2690 = vmatpush1.msra.mxu0 %v987
  %2691 = vmatprep.subr.mxu0 %v994
  %2692 = vmatpush1.msra.mxu0 %v993
  %2693 = vmatprep.subr.mxu0 %v1000
  %2694 = vmatpush1.msra.mxu0 %v999
  %2695 = vmatprep.subr.mxu0 %v1006
  %2696 = vmatpush1.msra.mxu0 %v1005
  %2697 = vmatprep.subr.mxu0 %v1012
  %2698 = vmatpush1.msra.mxu0 %v1011
  %2699 = vmatprep.subr.mxu0 %v1018
  %2700 = vmatpush1.msra.mxu0 %v1017
  %2701 = vmatprep.subr.mxu0 %v1024
  %2702 = vmatpush1.msra.mxu0 %v1023
  %2703 = vmatprep.subr.mxu0 %v1030
  %2704 = vmatpush1.msra.mxu0 %v1029
  %2705 = vmatprep.subr.mxu0 %v1036
  %2706 = vmatpush1.msra.mxu0 %v1035
  %2707 = vmatprep.subr.mxu0 %v1042
  %2708 = vmatpush1.msra.mxu0 %v1041
  %2709 = vmatprep.subr.mxu0 %v1048
  %2710 = vmatpush1.msra.mxu0 %v1047
  %2711 = vmatprep.subr.mxu0 %v1054
  %2712 = vmatpush1.msra.mxu0 %v1053
  %2713 = vmatprep.subr.mxu0 %v1060
  %2714 = vmatpush1.msra.mxu0 %v1059
  %2715 = vmatprep.mubr.f32.mxu0 %v2481
  %2716 = vmatmul.mubr.f32.gmra.mrb[0].mxu0 %v2480
  %v2717 = vpop.f32.mrb[0].mxu0
  %v2718 = vadd.f32 %v1082, %v2717
  %v2719 = vpop.f32.mrb[0].mxu0
  %v2720 = vadd.f32 %v1086, %v2719
  %2721 = vmatprep.mubr.f32.mxu0 %v2483
  %2722 = vmatmul.mubr.f32.gmra.mrb[0].mxu0 %v2482
  %v2723 = vpop.f32.mrb[0].mxu0
  %v2724 = vadd.f32 %v1082, %v2723
  %v2725 = vpop.f32.mrb[0].mxu0
  %v2726 = vadd.f32 %v1086, %v2725
  %2727 = vdwg.mxu0
  %v2728 = vadd.f32 %v2485, %v2564
  %v2729 = vadd.f32 %v2486, %v2566
  %v2730 = vadd.f32 %v2491, %v2570
  %v2731 = vadd.f32 %v2492, %v2572
  %v2732 = vxor.u32 %v2728, 2147483648
  %v2733 = vxor.u32 %v2729, 2147483648
  %v2734 = vxor.u32 %v2730, 2147483648
  %v2735 = vxor.u32 %v2731, 2147483648
  %v2736 = vmul.f32 %v2732, 1.442695
  %v2737 = vpow.pop %v2736
  %v2738 = vmul.f32 %v2733, 1.442695
  %v2739 = vpow.pop %v2738
  %v2740 = vmul.f32 %v2734, 1.442695
  %v2741 = vpow.pop %v2740
  %v2742 = vmul.f32 %v2735, 1.442695
  %v2743 = vpow.pop %v2742
  %v2744 = vadd.f32 %v2737, 1.0
  %v2745 = vadd.f32 %v2739, 1.0
  %v2746 = vadd.f32 %v2741, 1.0
  %v2747 = vadd.f32 %v2743, 1.0
  %v2748 = vrcp.pop %v2744
  %v2749 = vmul.f32 1.0, %v2748
  %v2750 = vrcp.pop %v2745
  %v2751 = vmul.f32 1.0, %v2750
  %v2752 = vrcp.pop %v2746
  %v2753 = vmul.f32 1.0, %v2752
  %v2754 = vrcp.pop %v2747
  %v2755 = vmul.f32 1.0, %v2754
  %v2756 = vadd.f32 %v2487, %v2641
  %v2757 = vadd.f32 %v2488, %v2643
  %v2758 = vadd.f32 %v2493, %v2647
  %v2759 = vadd.f32 %v2494, %v2649
  %v2760 = vxor.u32 %v2756, 2147483648
  %v2761 = vxor.u32 %v2757, 2147483648
  %v2762 = vxor.u32 %v2758, 2147483648
  %v2763 = vxor.u32 %v2759, 2147483648
  %v2764 = vmul.f32 %v2760, 1.442695
  %v2765 = vpow.pop %v2764
  %v2766 = vmul.f32 %v2761, 1.442695
  %v2767 = vpow.pop %v2766
  %v2768 = vmul.f32 %v2762, 1.442695
  %v2769 = vpow.pop %v2768
  %v2770 = vmul.f32 %v2763, 1.442695
  %v2771 = vpow.pop %v2770
  %v2772 = vadd.f32 %v2765, 1.0
  %v2773 = vadd.f32 %v2767, 1.0
  %v2774 = vadd.f32 %v2769, 1.0
  %v2775 = vadd.f32 %v2771, 1.0
  %v2776 = vrcp.pop %v2772
  %v2777 = vmul.f32 1.0, %v2776
  %v2778 = vrcp.pop %v2773
  %v2779 = vmul.f32 1.0, %v2778
  %v2780 = vrcp.pop %v2774
  %v2781 = vmul.f32 1.0, %v2780
  %v2782 = vrcp.pop %v2775
  %v2783 = vmul.f32 1.0, %v2782
  %v2784 = vmul.f32 %v2749, %v2718
  %v2785 = vmul.f32 %v2751, %v2720
  %v2786 = vmul.f32 %v2753, %v2724
  %v2787 = vmul.f32 %v2755, %v2726
  %v2788 = vadd.f32 %v2489, %v2784
  %v2789 = vadd.f32 %v2490, %v2785
  %v2790 = vadd.f32 %v2495, %v2786
  %v2791 = vadd.f32 %v2496, %v2787
  %v2792 = vtanh.pop %v2788
  %v2793 = vtanh.pop %v2789
  %v2794 = vtanh.pop %v2790
  %v2795 = vtanh.pop %v2791
  %v2796 = vsub.f32 1.0, %v2777
  %v2797 = vsub.f32 1.0, %v2779
  %v2798 = vsub.f32 1.0, %v2781
  %v2799 = vsub.f32 1.0, %v2783
  %v2800 = vmul.f32 %v2796, %v2792
  %v2801 = vmul.f32 %v2797, %v2793
  %v2802 = vmul.f32 %v2798, %v2794
  %v2803 = vmul.f32 %v2799, %v2795
  %v2804 = vmul.f32 %v2777, %v2480
  %v2805 = vmul.f32 %v2779, %v2481
  %v2806 = vmul.f32 %v2781, %v2482
  %v2807 = vmul.f32 %v2783, %v2483
  %v2808 = vadd.f32 %v2800, %v2804
  %v2809 = vadd.f32 %v2801, %v2805
  %v2810 = vadd.f32 %v2802, %v2806
  %v2811 = vadd.f32 %v2803, %v2807
  %s2812 = sadd.s32 %s1093, 4
  %p2813 = scmp.lt.s32.totalorder %s2812, 8
  %s2814 = scalar_select %p2813, 1, 0
  %s2815 = scvt.s32.f32 %s2814
  %v2816 = vstv %s2815
  %v2817 = vmul.f32 %v2816, %v2808
  %v2818 = vmul.f32 %v2816, %v2809
  %v2819 = vmul.f32 %v2816, %v2810
  %v2820 = vmul.f32 %v2816, %v2811
  %s2821 = ssub.f32 1.0, %s2815
  %v2822 = vstv %s2821
  %v2823 = vmul.f32 %v2822, %v2480
  %v2824 = vmul.f32 %v2822, %v2481
  %v2825 = vmul.f32 %v2822, %v2482
  %v2826 = vmul.f32 %v2822, %v2483
  %v2827 = vadd.f32 %v2817, %v2823
  %v2828 = vadd.f32 %v2818, %v2824
  %v2829 = vadd.f32 %v2819, %v2825
  %v2830 = vadd.f32 %v2820, %v2826
  %s2831 = scalar_lea.vmem [#allocation3], 480
  %v2832 = vld [vmem:[%s2831] sm:$0xff]
  %v2833 = vld [vmem:[%s2831 + $0x8] sm:$0xff]
  %v2834 = vld [vmem:[%s2831 + $0x10] sm:$0xff]
  %v2835 = vld [vmem:[%s2831 + $0x18] sm:$0xff]
  %v2836 = vld [vmem:[%s2831 + $0x20] sm:$0xff]
  %v2837 = vld [vmem:[%s2831 + $0x28] sm:$0xff]
  %v2838 = vld [vmem:[%s2831 + $0x30] sm:$0xff]
  %v2839 = vld [vmem:[%s2831 + $0x38] sm:$0xff]
  %v2840 = vld [vmem:[%s2831 + $0x40] sm:$0xff]
  %v2841 = vld [vmem:[%s2831 + $0x48] sm:$0xff]
  %v2842 = vld [vmem:[%s2831 + $0x50] sm:$0xff]
  %v2843 = vld [vmem:[%s2831 + $0x58] sm:$0xff]
  %2844 = vmatprep.subr.mxu0 %v870
  %2845 = vmatpush1.msra.mxu0 %v869
  %2846 = vmatprep.subr.mxu0 %v876
  %2847 = vmatpush1.msra.mxu0 %v875
  %2848 = vmatprep.subr.mxu0 %v882
  %2849 = vmatpush1.msra.mxu0 %v881
  %2850 = vmatprep.subr.mxu0 %v888
  %2851 = vmatpush1.msra.mxu0 %v887
  %2852 = vmatprep.subr.mxu0 %v894
  %2853 = vmatpush1.msra.mxu0 %v893
  %2854 = vmatprep.subr.mxu0 %v900
  %2855 = vmatpush1.msra.mxu0 %v899
  %2856 = vmatprep.subr.mxu0 %v906
  %2857 = vmatpush1.msra.mxu0 %v905
  %2858 = vmatprep.subr.mxu0 %v912
  %2859 = vmatpush1.msra.mxu0 %v911
  %2860 = vmatprep.subr.mxu0 %v918
  %2861 = vmatpush1.msra.mxu0 %v917
  %2862 = vmatprep.subr.mxu0 %v924
  %2863 = vmatpush1.msra.mxu0 %v923
  %2864 = vmatprep.subr.mxu0 %v930
  %2865 = vmatpush1.msra.mxu0 %v929
  %2866 = vmatprep.subr.mxu0 %v936
  %2867 = vmatpush1.msra.mxu0 %v935
  %2868 = vmatprep.subr.mxu0 %v942
  %2869 = vmatpush1.msra.mxu0 %v941
  %2870 = vmatprep.subr.mxu0 %v948
  %2871 = vmatpush1.msra.mxu0 %v947
  %2872 = vmatprep.subr.mxu0 %v954
  %2873 = vmatpush1.msra.mxu0 %v953
  %2874 = vmatprep.subr.mxu0 %v960
  %2875 = vmatpush1.msra.mxu0 %v959
  %2876 = vmatprep.subr.mxu0 %v966
  %2877 = vmatpush1.msra.mxu0 %v965
  %2878 = vmatprep.subr.mxu0 %v972
  %2879 = vmatpush1.msra.mxu0 %v971
  %2880 = vmatprep.subr.mxu0 %v978
  %2881 = vmatpush1.msra.mxu0 %v977
  %2882 = vmatprep.subr.mxu0 %v984
  %2883 = vmatpush1.msra.mxu0 %v983
  %2884 = vmatprep.subr.mxu0 %v990
  %2885 = vmatpush1.msra.mxu0 %v989
  %2886 = vmatprep.subr.mxu0 %v996
  %2887 = vmatpush1.msra.mxu0 %v995
  %2888 = vmatprep.subr.mxu0 %v1002
  %2889 = vmatpush1.msra.mxu0 %v1001
  %2890 = vmatprep.subr.mxu0 %v1008
  %2891 = vmatpush1.msra.mxu0 %v1007
  %2892 = vmatprep.subr.mxu0 %v1014
  %2893 = vmatpush1.msra.mxu0 %v1013
  %2894 = vmatprep.subr.mxu0 %v1020
  %2895 = vmatpush1.msra.mxu0 %v1019
  %2896 = vmatprep.subr.mxu0 %v1026
  %2897 = vmatpush1.msra.mxu0 %v1025
  %2898 = vmatprep.subr.mxu0 %v1032
  %2899 = vmatpush1.msra.mxu0 %v1031
  %2900 = vmatprep.subr.mxu0 %v1038
  %2901 = vmatpush1.msra.mxu0 %v1037
  %2902 = vmatprep.subr.mxu0 %v1044
  %2903 = vmatpush1.msra.mxu0 %v1043
  %2904 = vmatprep.subr.mxu0 %v1050
  %2905 = vmatpush1.msra.mxu0 %v1049
  %2906 = vmatprep.subr.mxu0 %v1056
  %2907 = vmatpush1.msra.mxu0 %v1055
  %2908 = vmatprep.mubr.f32.mxu0 %v2828
  %2909 = vmatmul.mubr.f32.gmra.mrb[0].mxu0 %v2827
  %v2910 = vpop.f32.mrb[0].mxu0
  %v2911 = vadd.f32 %v1066, %v2910
  %v2912 = vpop.f32.mrb[0].mxu0
  %v2913 = vadd.f32 %v1070, %v2912
  %2914 = vmatprep.mubr.f32.mxu0 %v2830
  %2915 = vmatmul.mubr.f32.gmra.mrb[0].mxu0 %v2829
  %v2916 = vpop.f32.mrb[0].mxu0
  %v2917 = vadd.f32 %v1066, %v2916
  %v2918 = vpop.f32.mrb[0].mxu0
  %v2919 = vadd.f32 %v1070, %v2918
  %2920 = vdwg.mxu0
  %2921 = vmatprep.subr.mxu0 %v872
  %2922 = vmatpush1.msra.mxu0 %v871
  %2923 = vmatprep.subr.mxu0 %v878
  %2924 = vmatpush1.msra.mxu0 %v877
  %2925 = vmatprep.subr.mxu0 %v884
  %2926 = vmatpush1.msra.mxu0 %v883
  %2927 = vmatprep.subr.mxu0 %v890
  %2928 = vmatpush1.msra.mxu0 %v889
  %2929 = vmatprep.subr.mxu0 %v896
  %2930 = vmatpush1.msra.mxu0 %v895
  %2931 = vmatprep.subr.mxu0 %v902
  %2932 = vmatpush1.msra.mxu0 %v901
  %2933 = vmatprep.subr.mxu0 %v908
  %2934 = vmatpush1.msra.mxu0 %v907
  %2935 = vmatprep.subr.mxu0 %v914
  %2936 = vmatpush1.msra.mxu0 %v913
  %2937 = vmatprep.subr.mxu0 %v920
  %2938 = vmatpush1.msra.mxu0 %v919
  %2939 = vmatprep.subr.mxu0 %v926
  %2940 = vmatpush1.msra.mxu0 %v925
  %2941 = vmatprep.subr.mxu0 %v932
  %2942 = vmatpush1.msra.mxu0 %v931
  %2943 = vmatprep.subr.mxu0 %v938
  %2944 = vmatpush1.msra.mxu0 %v937
  %2945 = vmatprep.subr.mxu0 %v944
  %2946 = vmatpush1.msra.mxu0 %v943
  %2947 = vmatprep.subr.mxu0 %v950
  %2948 = vmatpush1.msra.mxu0 %v949
  %2949 = vmatprep.subr.mxu0 %v956
  %2950 = vmatpush1.msra.mxu0 %v955
  %2951 = vmatprep.subr.mxu0 %v962
  %2952 = vmatpush1.msra.mxu0 %v961
  %2953 = vmatprep.subr.mxu0 %v968
  %2954 = vmatpush1.msra.mxu0 %v967
  %2955 = vmatprep.subr.mxu0 %v974
  %2956 = vmatpush1.msra.mxu0 %v973
  %2957 = vmatprep.subr.mxu0 %v980
  %2958 = vmatpush1.msra.mxu0 %v979
  %2959 = vmatprep.subr.mxu0 %v986
  %2960 = vmatpush1.msra.mxu0 %v985
  %2961 = vmatprep.subr.mxu0 %v992
  %2962 = vmatpush1.msra.mxu0 %v991
  %2963 = vmatprep.subr.mxu0 %v998
  %2964 = vmatpush1.msra.mxu0 %v997
  %2965 = vmatprep.subr.mxu0 %v1004
  %2966 = vmatpush1.msra.mxu0 %v1003
  %2967 = vmatprep.subr.mxu0 %v1010
  %2968 = vmatpush1.msra.mxu0 %v1009
  %2969 = vmatprep.subr.mxu0 %v1016
  %2970 = vmatpush1.msra.mxu0 %v1015
  %2971 = vmatprep.subr.mxu0 %v1022
  %2972 = vmatpush1.msra.mxu0 %v1021
  %2973 = vmatprep.subr.mxu0 %v1028
  %2974 = vmatpush1.msra.mxu0 %v1027
  %2975 = vmatprep.subr.mxu0 %v1034
  %2976 = vmatpush1.msra.mxu0 %v1033
  %2977 = vmatprep.subr.mxu0 %v1040
  %2978 = vmatpush1.msra.mxu0 %v1039
  %2979 = vmatprep.subr.mxu0 %v1046
  %2980 = vmatpush1.msra.mxu0 %v1045
  %2981 = vmatprep.subr.mxu0 %v1052
  %2982 = vmatpush1.msra.mxu0 %v1051
  %2983 = vmatprep.subr.mxu0 %v1058
  %2984 = vmatpush1.msra.mxu0 %v1057
  %2985 = vmatprep.mubr.f32.mxu0 %v2828
  %2986 = vmatmul.mubr.f32.gmra.mrb[0].mxu0 %v2827
  %v2987 = vpop.f32.mrb[0].mxu0
  %v2988 = vadd.f32 %v1074, %v2987
  %v2989 = vpop.f32.mrb[0].mxu0
  %v2990 = vadd.f32 %v1078, %v2989
  %2991 = vmatprep.mubr.f32.mxu0 %v2830
  %2992 = vmatmul.mubr.f32.gmra.mrb[0].mxu0 %v2829
  %v2993 = vpop.f32.mrb[0].mxu0
  %v2994 = vadd.f32 %v1074, %v2993
  %v2995 = vpop.f32.mrb[0].mxu0
  %v2996 = vadd.f32 %v1078, %v2995
  %2997 = vdwg.mxu0
  %2998 = vmatprep.subr.mxu0 %v874
  %2999 = vmatpush1.msra.mxu0 %v873
  %3000 = vmatprep.subr.mxu0 %v880
  %3001 = vmatpush1.msra.mxu0 %v879
  %3002 = vmatprep.subr.mxu0 %v886
  %3003 = vmatpush1.msra.mxu0 %v885
  %3004 = vmatprep.subr.mxu0 %v892
  %3005 = vmatpush1.msra.mxu0 %v891
  %3006 = vmatprep.subr.mxu0 %v898
  %3007 = vmatpush1.msra.mxu0 %v897
  %3008 = vmatprep.subr.mxu0 %v904
  %3009 = vmatpush1.msra.mxu0 %v903
  %3010 = vmatprep.subr.mxu0 %v910
  %3011 = vmatpush1.msra.mxu0 %v909
  %3012 = vmatprep.subr.mxu0 %v916
  %3013 = vmatpush1.msra.mxu0 %v915
  %3014 = vmatprep.subr.mxu0 %v922
  %3015 = vmatpush1.msra.mxu0 %v921
  %3016 = vmatprep.subr.mxu0 %v928
  %3017 = vmatpush1.msra.mxu0 %v927
  %3018 = vmatprep.subr.mxu0 %v934
  %3019 = vmatpush1.msra.mxu0 %v933
  %3020 = vmatprep.subr.mxu0 %v940
  %3021 = vmatpush1.msra.mxu0 %v939
  %3022 = vmatprep.subr.mxu0 %v946
  %3023 = vmatpush1.msra.mxu0 %v945
  %3024 = vmatprep.subr.mxu0 %v952
  %3025 = vmatpush1.msra.mxu0 %v951
  %3026 = vmatprep.subr.mxu0 %v958
  %3027 = vmatpush1.msra.mxu0 %v957
  %3028 = vmatprep.subr.mxu0 %v964
  %3029 = vmatpush1.msra.mxu0 %v963
  %3030 = vmatprep.subr.mxu0 %v970
  %3031 = vmatpush1.msra.mxu0 %v969
  %3032 = vmatprep.subr.mxu0 %v976
  %3033 = vmatpush1.msra.mxu0 %v975
  %3034 = vmatprep.subr.mxu0 %v982
  %3035 = vmatpush1.msra.mxu0 %v981
  %3036 = vmatprep.subr.mxu0 %v988
  %3037 = vmatpush1.msra.mxu0 %v987
  %3038 = vmatprep.subr.mxu0 %v994
  %3039 = vmatpush1.msra.mxu0 %v993
  %3040 = vmatprep.subr.mxu0 %v1000
  %3041 = vmatpush1.msra.mxu0 %v999
  %3042 = vmatprep.subr.mxu0 %v1006
  %3043 = vmatpush1.msra.mxu0 %v1005
  %3044 = vmatprep.subr.mxu0 %v1012
  %3045 = vmatpush1.msra.mxu0 %v1011
  %3046 = vmatprep.subr.mxu0 %v1018
  %3047 = vmatpush1.msra.mxu0 %v1017
  %3048 = vmatprep.subr.mxu0 %v1024
  %3049 = vmatpush1.msra.mxu0 %v1023
  %3050 = vmatprep.subr.mxu0 %v1030
  %3051 = vmatpush1.msra.mxu0 %v1029
  %3052 = vmatprep.subr.mxu0 %v1036
  %3053 = vmatpush1.msra.mxu0 %v1035
  %3054 = vmatprep.subr.mxu0 %v1042
  %3055 = vmatpush1.msra.mxu0 %v1041
  %3056 = vmatprep.subr.mxu0 %v1048
  %3057 = vmatpush1.msra.mxu0 %v1047
  %3058 = vmatprep.subr.mxu0 %v1054
  %3059 = vmatpush1.msra.mxu0 %v1053
  %3060 = vmatprep.subr.mxu0 %v1060
  %3061 = vmatpush1.msra.mxu0 %v1059
  %3062 = vmatprep.mubr.f32.mxu0 %v2828
  %3063 = vmatmul.mubr.f32.gmra.mrb[0].mxu0 %v2827
  %v3064 = vpop.f32.mrb[0].mxu0
  %v3065 = vadd.f32 %v1082, %v3064
  %v3066 = vpop.f32.mrb[0].mxu0
  %v3067 = vadd.f32 %v1086, %v3066
  %3068 = vmatprep.mubr.f32.mxu0 %v2830
  %3069 = vmatmul.mubr.f32.gmra.mrb[0].mxu0 %v2829
  %v3070 = vpop.f32.mrb[0].mxu0
  %v3071 = vadd.f32 %v1082, %v3070
  %v3072 = vpop.f32.mrb[0].mxu0
  %v3073 = vadd.f32 %v1086, %v3072
  %3074 = vdwg.mxu0
  %v3075 = vadd.f32 %v2832, %v2911
  %v3076 = vadd.f32 %v2833, %v2913
  %v3077 = vadd.f32 %v2838, %v2917
  %v3078 = vadd.f32 %v2839, %v2919
  %v3079 = vxor.u32 %v3075, 2147483648
  %v3080 = vxor.u32 %v3076, 2147483648
  %v3081 = vxor.u32 %v3077, 2147483648
  %v3082 = vxor.u32 %v3078, 2147483648
  %v3083 = vmul.f32 %v3079, 1.442695
  %v3084 = vpow.pop %v3083
  %v3085 = vmul.f32 %v3080, 1.442695
  %v3086 = vpow.pop %v3085
  %v3087 = vmul.f32 %v3081, 1.442695
  %v3088 = vpow.pop %v3087
  %v3089 = vmul.f32 %v3082, 1.442695
  %v3090 = vpow.pop %v3089
  %v3091 = vadd.f32 %v3084, 1.0
  %v3092 = vadd.f32 %v3086, 1.0
  %v3093 = vadd.f32 %v3088, 1.0
  %v3094 = vadd.f32 %v3090, 1.0
  %v3095 = vrcp.pop %v3091
  %v3096 = vmul.f32 1.0, %v3095
  %v3097 = vrcp.pop %v3092
  %v3098 = vmul.f32 1.0, %v3097
  %v3099 = vrcp.pop %v3093
  %v3100 = vmul.f32 1.0, %v3099
  %v3101 = vrcp.pop %v3094
  %v3102 = vmul.f32 1.0, %v3101
  %v3103 = vadd.f32 %v2834, %v2988
  %v3104 = vadd.f32 %v2835, %v2990
  %v3105 = vadd.f32 %v2840, %v2994
  %v3106 = vadd.f32 %v2841, %v2996
  %v3107 = vxor.u32 %v3103, 2147483648
  %v3108 = vxor.u32 %v3104, 2147483648
  %v3109 = vxor.u32 %v3105, 2147483648
  %v3110 = vxor.u32 %v3106, 2147483648
  %v3111 = vmul.f32 %v3107, 1.442695
  %v3112 = vpow.pop %v3111
  %v3113 = vmul.f32 %v3108, 1.442695
  %v3114 = vpow.pop %v3113
  %v3115 = vmul.f32 %v3109, 1.442695
  %v3116 = vpow.pop %v3115
  %v3117 = vmul.f32 %v3110, 1.442695
  %v3118 = vpow.pop %v3117
  %v3119 = vadd.f32 %v3112, 1.0
  %v3120 = vadd.f32 %v3114, 1.0
  %v3121 = vadd.f32 %v3116, 1.0
  %v3122 = vadd.f32 %v3118, 1.0
  %v3123 = vrcp.pop %v3119
  %v3124 = vmul.f32 1.0, %v3123
  %v3125 = vrcp.pop %v3120
  %v3126 = vmul.f32 1.0, %v3125
  %v3127 = vrcp.pop %v3121
  %v3128 = vmul.f32 1.0, %v3127
  %v3129 = vrcp.pop %v3122
  %v3130 = vmul.f32 1.0, %v3129
  %v3131 = vmul.f32 %v3096, %v3065
  %v3132 = vmul.f32 %v3098, %v3067
  %v3133 = vmul.f32 %v3100, %v3071
  %v3134 = vmul.f32 %v3102, %v3073
  %v3135 = vadd.f32 %v2836, %v3131
  %v3136 = vadd.f32 %v2837, %v3132
  %v3137 = vadd.f32 %v2842, %v3133
  %v3138 = vadd.f32 %v2843, %v3134
  %v3139 = vtanh.pop %v3135
  %v3140 = vtanh.pop %v3136
  %v3141 = vtanh.pop %v3137
  %v3142 = vtanh.pop %v3138
  %v3143 = vsub.f32 1.0, %v3124
  %v3144 = vsub.f32 1.0, %v3126
  %v3145 = vsub.f32 1.0, %v3128
  %v3146 = vsub.f32 1.0, %v3130
  %v3147 = vmul.f32 %v3143, %v3139
  %v3148 = vmul.f32 %v3144, %v3140
  %v3149 = vmul.f32 %v3145, %v3141
  %v3150 = vmul.f32 %v3146, %v3142
  %v3151 = vmul.f32 %v3124, %v2827
  %v3152 = vmul.f32 %v3126, %v2828
  %v3153 = vmul.f32 %v3128, %v2829
  %v3154 = vmul.f32 %v3130, %v2830
  %v3155 = vadd.f32 %v3147, %v3151
  %v3156 = vadd.f32 %v3148, %v3152
  %v3157 = vadd.f32 %v3149, %v3153
  %v3158 = vadd.f32 %v3150, %v3154
  %s3159 = sadd.s32 %s1093, 5
  %p3160 = scmp.lt.s32.totalorder %s3159, 8
  %s3161 = scalar_select %p3160, 1, 0
  %s3162 = scvt.s32.f32 %s3161
  %v3163 = vstv %s3162
  %v3164 = vmul.f32 %v3163, %v3155
  %v3165 = vmul.f32 %v3163, %v3156
  %v3166 = vmul.f32 %v3163, %v3157
  %v3167 = vmul.f32 %v3163, %v3158
  %s3168 = ssub.f32 1.0, %s3162
  %v3169 = vstv %s3168
  %v3170 = vmul.f32 %v3169, %v2827
  %v3171 = vmul.f32 %v3169, %v2828
  %v3172 = vmul.f32 %v3169, %v2829
  %v3173 = vmul.f32 %v3169, %v2830
  %v3174 = vadd.f32 %v3164, %v3170
  %v3175 = vadd.f32 %v3165, %v3171
  %v3176 = vadd.f32 %v3166, %v3172
  %v3177 = vadd.f32 %v3167, %v3173
  %s3178 = scalar_lea.vmem [#allocation3], 576
  %v3179 = vld [vmem:[%s3178] sm:$0xff]
  %v3180 = vld [vmem:[%s3178 + $0x8] sm:$0xff]
  %v3181 = vld [vmem:[%s3178 + $0x10] sm:$0xff]
  %v3182 = vld [vmem:[%s3178 + $0x18] sm:$0xff]
  %v3183 = vld [vmem:[%s3178 + $0x20] sm:$0xff]
  %v3184 = vld [vmem:[%s3178 + $0x28] sm:$0xff]
  %v3185 = vld [vmem:[%s3178 + $0x30] sm:$0xff]
  %v3186 = vld [vmem:[%s3178 + $0x38] sm:$0xff]
  %v3187 = vld [vmem:[%s3178 + $0x40] sm:$0xff]
  %v3188 = vld [vmem:[%s3178 + $0x48] sm:$0xff]
  %v3189 = vld [vmem:[%s3178 + $0x50] sm:$0xff]
  %v3190 = vld [vmem:[%s3178 + $0x58] sm:$0xff]
  %3191 = vmatprep.subr.mxu0 %v870
  %3192 = vmatpush1.msra.mxu0 %v869
  %3193 = vmatprep.subr.mxu0 %v876
  %3194 = vmatpush1.msra.mxu0 %v875
  %3195 = vmatprep.subr.mxu0 %v882
  %3196 = vmatpush1.msra.mxu0 %v881
  %3197 = vmatprep.subr.mxu0 %v888
  %3198 = vmatpush1.msra.mxu0 %v887
  %3199 = vmatprep.subr.mxu0 %v894
  %3200 = vmatpush1.msra.mxu0 %v893
  %3201 = vmatprep.subr.mxu0 %v900
  %3202 = vmatpush1.msra.mxu0 %v899
  %3203 = vmatprep.subr.mxu0 %v906
  %3204 = vmatpush1.msra.mxu0 %v905
  %3205 = vmatprep.subr.mxu0 %v912
  %3206 = vmatpush1.msra.mxu0 %v911
  %3207 = vmatprep.subr.mxu0 %v918
  %3208 = vmatpush1.msra.mxu0 %v917
  %3209 = vmatprep.subr.mxu0 %v924
  %3210 = vmatpush1.msra.mxu0 %v923
  %3211 = vmatprep.subr.mxu0 %v930
  %3212 = vmatpush1.msra.mxu0 %v929
  %3213 = vmatprep.subr.mxu0 %v936
  %3214 = vmatpush1.msra.mxu0 %v935
  %3215 = vmatprep.subr.mxu0 %v942
  %3216 = vmatpush1.msra.mxu0 %v941
  %3217 = vmatprep.subr.mxu0 %v948
  %3218 = vmatpush1.msra.mxu0 %v947
  %3219 = vmatprep.subr.mxu0 %v954
  %3220 = vmatpush1.msra.mxu0 %v953
  %3221 = vmatprep.subr.mxu0 %v960
  %3222 = vmatpush1.msra.mxu0 %v959
  %3223 = vmatprep.subr.mxu0 %v966
  %3224 = vmatpush1.msra.mxu0 %v965
  %3225 = vmatprep.subr.mxu0 %v972
  %3226 = vmatpush1.msra.mxu0 %v971
  %3227 = vmatprep.subr.mxu0 %v978
  %3228 = vmatpush1.msra.mxu0 %v977
  %3229 = vmatprep.subr.mxu0 %v984
  %3230 = vmatpush1.msra.mxu0 %v983
  %3231 = vmatprep.subr.mxu0 %v990
  %3232 = vmatpush1.msra.mxu0 %v989
  %3233 = vmatprep.subr.mxu0 %v996
  %3234 = vmatpush1.msra.mxu0 %v995
  %3235 = vmatprep.subr.mxu0 %v1002
  %3236 = vmatpush1.msra.mxu0 %v1001
  %3237 = vmatprep.subr.mxu0 %v1008
  %3238 = vmatpush1.msra.mxu0 %v1007
  %3239 = vmatprep.subr.mxu0 %v1014
  %3240 = vmatpush1.msra.mxu0 %v1013
  %3241 = vmatprep.subr.mxu0 %v1020
  %3242 = vmatpush1.msra.mxu0 %v1019
  %3243 = vmatprep.subr.mxu0 %v1026
  %3244 = vmatpush1.msra.mxu0 %v1025
  %3245 = vmatprep.subr.mxu0 %v1032
  %3246 = vmatpush1.msra.mxu0 %v1031
  %3247 = vmatprep.subr.mxu0 %v1038
  %3248 = vmatpush1.msra.mxu0 %v1037
  %3249 = vmatprep.subr.mxu0 %v1044
  %3250 = vmatpush1.msra.mxu0 %v1043
  %3251 = vmatprep.subr.mxu0 %v1050
  %3252 = vmatpush1.msra.mxu0 %v1049
  %3253 = vmatprep.subr.mxu0 %v1056
  %3254 = vmatpush1.msra.mxu0 %v1055
  %3255 = vmatprep.mubr.f32.mxu0 %v3175
  %3256 = vmatmul.mubr.f32.gmra.mrb[0].mxu0 %v3174
  %v3257 = vpop.f32.mrb[0].mxu0
  %v3258 = vadd.f32 %v1066, %v3257
  %v3259 = vpop.f32.mrb[0].mxu0
  %v3260 = vadd.f32 %v1070, %v3259
  %3261 = vmatprep.mubr.f32.mxu0 %v3177
  %3262 = vmatmul.mubr.f32.gmra.mrb[0].mxu0 %v3176
  %v3263 = vpop.f32.mrb[0].mxu0
  %v3264 = vadd.f32 %v1066, %v3263
  %v3265 = vpop.f32.mrb[0].mxu0
  %v3266 = vadd.f32 %v1070, %v3265
  %3267 = vdwg.mxu0
  %3268 = vmatprep.subr.mxu0 %v872
  %3269 = vmatpush1.msra.mxu0 %v871
  %3270 = vmatprep.subr.mxu0 %v878
  %3271 = vmatpush1.msra.mxu0 %v877
  %3272 = vmatprep.subr.mxu0 %v884
  %3273 = vmatpush1.msra.mxu0 %v883
  %3274 = vmatprep.subr.mxu0 %v890
  %3275 = vmatpush1.msra.mxu0 %v889
  %3276 = vmatprep.subr.mxu0 %v896
  %3277 = vmatpush1.msra.mxu0 %v895
  %3278 = vmatprep.subr.mxu0 %v902
  %3279 = vmatpush1.msra.mxu0 %v901
  %3280 = vmatprep.subr.mxu0 %v908
  %3281 = vmatpush1.msra.mxu0 %v907
  %3282 = vmatprep.subr.mxu0 %v914
  %3283 = vmatpush1.msra.mxu0 %v913
  %3284 = vmatprep.subr.mxu0 %v920
  %3285 = vmatpush1.msra.mxu0 %v919
  %3286 = vmatprep.subr.mxu0 %v926
  %3287 = vmatpush1.msra.mxu0 %v925
  %3288 = vmatprep.subr.mxu0 %v932
  %3289 = vmatpush1.msra.mxu0 %v931
  %3290 = vmatprep.subr.mxu0 %v938
  %3291 = vmatpush1.msra.mxu0 %v937
  %3292 = vmatprep.subr.mxu0 %v944
  %3293 = vmatpush1.msra.mxu0 %v943
  %3294 = vmatprep.subr.mxu0 %v950
  %3295 = vmatpush1.msra.mxu0 %v949
  %3296 = vmatprep.subr.mxu0 %v956
  %3297 = vmatpush1.msra.mxu0 %v955
  %3298 = vmatprep.subr.mxu0 %v962
  %3299 = vmatpush1.msra.mxu0 %v961
  %3300 = vmatprep.subr.mxu0 %v968
  %3301 = vmatpush1.msra.mxu0 %v967
  %3302 = vmatprep.subr.mxu0 %v974
  %3303 = vmatpush1.msra.mxu0 %v973
  %3304 = vmatprep.subr.mxu0 %v980
  %3305 = vmatpush1.msra.mxu0 %v979
  %3306 = vmatprep.subr.mxu0 %v986
  %3307 = vmatpush1.msra.mxu0 %v985
  %3308 = vmatprep.subr.mxu0 %v992
  %3309 = vmatpush1.msra.mxu0 %v991
  %3310 = vmatprep.subr.mxu0 %v998
  %3311 = vmatpush1.msra.mxu0 %v997
  %3312 = vmatprep.subr.mxu0 %v1004
  %3313 = vmatpush1.msra.mxu0 %v1003
  %3314 = vmatprep.subr.mxu0 %v1010
  %3315 = vmatpush1.msra.mxu0 %v1009
  %3316 = vmatprep.subr.mxu0 %v1016
  %3317 = vmatpush1.msra.mxu0 %v1015
  %3318 = vmatprep.subr.mxu0 %v1022
  %3319 = vmatpush1.msra.mxu0 %v1021
  %3320 = vmatprep.subr.mxu0 %v1028
  %3321 = vmatpush1.msra.mxu0 %v1027
  %3322 = vmatprep.subr.mxu0 %v1034
  %3323 = vmatpush1.msra.mxu0 %v1033
  %3324 = vmatprep.subr.mxu0 %v1040
  %3325 = vmatpush1.msra.mxu0 %v1039
  %3326 = vmatprep.subr.mxu0 %v1046
  %3327 = vmatpush1.msra.mxu0 %v1045
  %3328 = vmatprep.subr.mxu0 %v1052
  %3329 = vmatpush1.msra.mxu0 %v1051
  %3330 = vmatprep.subr.mxu0 %v1058
  %3331 = vmatpush1.msra.mxu0 %v1057
  %3332 = vmatprep.mubr.f32.mxu0 %v3175
  %3333 = vmatmul.mubr.f32.gmra.mrb[0].mxu0 %v3174
  %v3334 = vpop.f32.mrb[0].mxu0
  %v3335 = vadd.f32 %v1074, %v3334
  %v3336 = vpop.f32.mrb[0].mxu0
  %v3337 = vadd.f32 %v1078, %v3336
  %3338 = vmatprep.mubr.f32.mxu0 %v3177
  %3339 = vmatmul.mubr.f32.gmra.mrb[0].mxu0 %v3176
  %v3340 = vpop.f32.mrb[0].mxu0
  %v3341 = vadd.f32 %v1074, %v3340
  %v3342 = vpop.f32.mrb[0].mxu0
  %v3343 = vadd.f32 %v1078, %v3342
  %3344 = vdwg.mxu0
  %3345 = vmatprep.subr.mxu0 %v874
  %3346 = vmatpush1.msra.mxu0 %v873
  %3347 = vmatprep.subr.mxu0 %v880
  %3348 = vmatpush1.msra.mxu0 %v879
  %3349 = vmatprep.subr.mxu0 %v886
  %3350 = vmatpush1.msra.mxu0 %v885
  %3351 = vmatprep.subr.mxu0 %v892
  %3352 = vmatpush1.msra.mxu0 %v891
  %3353 = vmatprep.subr.mxu0 %v898
  %3354 = vmatpush1.msra.mxu0 %v897
  %3355 = vmatprep.subr.mxu0 %v904
  %3356 = vmatpush1.msra.mxu0 %v903
  %3357 = vmatprep.subr.mxu0 %v910
  %3358 = vmatpush1.msra.mxu0 %v909
  %3359 = vmatprep.subr.mxu0 %v916
  %3360 = vmatpush1.msra.mxu0 %v915
  %3361 = vmatprep.subr.mxu0 %v922
  %3362 = vmatpush1.msra.mxu0 %v921
  %3363 = vmatprep.subr.mxu0 %v928
  %3364 = vmatpush1.msra.mxu0 %v927
  %3365 = vmatprep.subr.mxu0 %v934
  %3366 = vmatpush1.msra.mxu0 %v933
  %3367 = vmatprep.subr.mxu0 %v940
  %3368 = vmatpush1.msra.mxu0 %v939
  %3369 = vmatprep.subr.mxu0 %v946
  %3370 = vmatpush1.msra.mxu0 %v945
  %3371 = vmatprep.subr.mxu0 %v952
  %3372 = vmatpush1.msra.mxu0 %v951
  %3373 = vmatprep.subr.mxu0 %v958
  %3374 = vmatpush1.msra.mxu0 %v957
  %3375 = vmatprep.subr.mxu0 %v964
  %3376 = vmatpush1.msra.mxu0 %v963
  %3377 = vmatprep.subr.mxu0 %v970
  %3378 = vmatpush1.msra.mxu0 %v969
  %3379 = vmatprep.subr.mxu0 %v976
  %3380 = vmatpush1.msra.mxu0 %v975
  %3381 = vmatprep.subr.mxu0 %v982
  %3382 = vmatpush1.msra.mxu0 %v981
  %3383 = vmatprep.subr.mxu0 %v988
  %3384 = vmatpush1.msra.mxu0 %v987
  %3385 = vmatprep.subr.mxu0 %v994
  %3386 = vmatpush1.msra.mxu0 %v993
  %3387 = vmatprep.subr.mxu0 %v1000
  %3388 = vmatpush1.msra.mxu0 %v999
  %3389 = vmatprep.subr.mxu0 %v1006
  %3390 = vmatpush1.msra.mxu0 %v1005
  %3391 = vmatprep.subr.mxu0 %v1012
  %3392 = vmatpush1.msra.mxu0 %v1011
  %3393 = vmatprep.subr.mxu0 %v1018
  %3394 = vmatpush1.msra.mxu0 %v1017
  %3395 = vmatprep.subr.mxu0 %v1024
  %3396 = vmatpush1.msra.mxu0 %v1023
  %3397 = vmatprep.subr.mxu0 %v1030
  %3398 = vmatpush1.msra.mxu0 %v1029
  %3399 = vmatprep.subr.mxu0 %v1036
  %3400 = vmatpush1.msra.mxu0 %v1035
  %3401 = vmatprep.subr.mxu0 %v1042
  %3402 = vmatpush1.msra.mxu0 %v1041
  %3403 = vmatprep.subr.mxu0 %v1048
  %3404 = vmatpush1.msra.mxu0 %v1047
  %3405 = vmatprep.subr.mxu0 %v1054
  %3406 = vmatpush1.msra.mxu0 %v1053
  %3407 = vmatprep.subr.mxu0 %v1060
  %3408 = vmatpush1.msra.mxu0 %v1059
  %3409 = vmatprep.mubr.f32.mxu0 %v3175
  %3410 = vmatmul.mubr.f32.gmra.mrb[0].mxu0 %v3174
  %v3411 = vpop.f32.mrb[0].mxu0
  %v3412 = vadd.f32 %v1082, %v3411
  %v3413 = vpop.f32.mrb[0].mxu0
  %v3414 = vadd.f32 %v1086, %v3413
  %3415 = vmatprep.mubr.f32.mxu0 %v3177
  %3416 = vmatmul.mubr.f32.gmra.mrb[0].mxu0 %v3176
  %v3417 = vpop.f32.mrb[0].mxu0
  %v3418 = vadd.f32 %v1082, %v3417
  %v3419 = vpop.f32.mrb[0].mxu0
  %v3420 = vadd.f32 %v1086, %v3419
  %3421 = vdwg.mxu0
  %v3422 = vadd.f32 %v3179, %v3258
  %v3423 = vadd.f32 %v3180, %v3260
  %v3424 = vadd.f32 %v3185, %v3264
  %v3425 = vadd.f32 %v3186, %v3266
  %v3426 = vxor.u32 %v3422, 2147483648
  %v3427 = vxor.u32 %v3423, 2147483648
  %v3428 = vxor.u32 %v3424, 2147483648
  %v3429 = vxor.u32 %v3425, 2147483648
  %v3430 = vmul.f32 %v3426, 1.442695
  %v3431 = vpow.pop %v3430
  %v3432 = vmul.f32 %v3427, 1.442695
  %v3433 = vpow.pop %v3432
  %v3434 = vmul.f32 %v3428, 1.442695
  %v3435 = vpow.pop %v3434
  %v3436 = vmul.f32 %v3429, 1.442695
  %v3437 = vpow.pop %v3436
  %v3438 = vadd.f32 %v3431, 1.0
  %v3439 = vadd.f32 %v3433, 1.0
  %v3440 = vadd.f32 %v3435, 1.0
  %v3441 = vadd.f32 %v3437, 1.0
  %v3442 = vrcp.pop %v3438
  %v3443 = vmul.f32 1.0, %v3442
  %v3444 = vrcp.pop %v3439
  %v3445 = vmul.f32 1.0, %v3444
  %v3446 = vrcp.pop %v3440
  %v3447 = vmul.f32 1.0, %v3446
  %v3448 = vrcp.pop %v3441
  %v3449 = vmul.f32 1.0, %v3448
  %v3450 = vadd.f32 %v3181, %v3335
  %v3451 = vadd.f32 %v3182, %v3337
  %v3452 = vadd.f32 %v3187, %v3341
  %v3453 = vadd.f32 %v3188, %v3343
  %v3454 = vxor.u32 %v3450, 2147483648
  %v3455 = vxor.u32 %v3451, 2147483648
  %v3456 = vxor.u32 %v3452, 2147483648
  %v3457 = vxor.u32 %v3453, 2147483648
  %v3458 = vmul.f32 %v3454, 1.442695
  %v3459 = vpow.pop %v3458
  %v3460 = vmul.f32 %v3455, 1.442695
  %v3461 = vpow.pop %v3460
  %v3462 = vmul.f32 %v3456, 1.442695
  %v3463 = vpow.pop %v3462
  %v3464 = vmul.f32 %v3457, 1.442695
  %v3465 = vpow.pop %v3464
  %v3466 = vadd.f32 %v3459, 1.0
  %v3467 = vadd.f32 %v3461, 1.0
  %v3468 = vadd.f32 %v3463, 1.0
  %v3469 = vadd.f32 %v3465, 1.0
  %v3470 = vrcp.pop %v3466
  %v3471 = vmul.f32 1.0, %v3470
  %v3472 = vrcp.pop %v3467
  %v3473 = vmul.f32 1.0, %v3472
  %v3474 = vrcp.pop %v3468
  %v3475 = vmul.f32 1.0, %v3474
  %v3476 = vrcp.pop %v3469
  %v3477 = vmul.f32 1.0, %v3476
  %v3478 = vmul.f32 %v3443, %v3412
  %v3479 = vmul.f32 %v3445, %v3414
  %v3480 = vmul.f32 %v3447, %v3418
  %v3481 = vmul.f32 %v3449, %v3420
  %v3482 = vadd.f32 %v3183, %v3478
  %v3483 = vadd.f32 %v3184, %v3479
  %v3484 = vadd.f32 %v3189, %v3480
  %v3485 = vadd.f32 %v3190, %v3481
  %v3486 = vtanh.pop %v3482
  %v3487 = vtanh.pop %v3483
  %v3488 = vtanh.pop %v3484
  %v3489 = vtanh.pop %v3485
  %v3490 = vsub.f32 1.0, %v3471
  %v3491 = vsub.f32 1.0, %v3473
  %v3492 = vsub.f32 1.0, %v3475
  %v3493 = vsub.f32 1.0, %v3477
  %v3494 = vmul.f32 %v3490, %v3486
  %v3495 = vmul.f32 %v3491, %v3487
  %v3496 = vmul.f32 %v3492, %v3488
  %v3497 = vmul.f32 %v3493, %v3489
  %v3498 = vmul.f32 %v3471, %v3174
  %v3499 = vmul.f32 %v3473, %v3175
  %v3500 = vmul.f32 %v3475, %v3176
  %v3501 = vmul.f32 %v3477, %v3177
  %v3502 = vadd.f32 %v3494, %v3498
  %v3503 = vadd.f32 %v3495, %v3499
  %v3504 = vadd.f32 %v3496, %v3500
  %v3505 = vadd.f32 %v3497, %v3501
  %s3506 = sadd.s32 %s1093, 6
  %p3507 = scmp.lt.s32.totalorder %s3506, 8
  %s3508 = scalar_select %p3507, 1, 0
  %s3509 = scvt.s32.f32 %s3508
  %v3510 = vstv %s3509
  %v3511 = vmul.f32 %v3510, %v3502
  %v3512 = vmul.f32 %v3510, %v3503
  %v3513 = vmul.f32 %v3510, %v3504
  %v3514 = vmul.f32 %v3510, %v3505
  %s3515 = ssub.f32 1.0, %s3509
  %v3516 = vstv %s3515
  %v3517 = vmul.f32 %v3516, %v3174
  %v3518 = vmul.f32 %v3516, %v3175
  %v3519 = vmul.f32 %v3516, %v3176
  %v3520 = vmul.f32 %v3516, %v3177
  %v3521 = vadd.f32 %v3511, %v3517
  %v3522 = vadd.f32 %v3512, %v3518
  %v3523 = vadd.f32 %v3513, %v3519
  %v3524 = vadd.f32 %v3514, %v3520
  %s3525 = scalar_lea.vmem [#allocation3], 672
  %v3526 = vld [vmem:[%s3525] sm:$0xff]
  %v3527 = vld [vmem:[%s3525 + $0x8] sm:$0xff]
  %v3528 = vld [vmem:[%s3525 + $0x10] sm:$0xff]
  %v3529 = vld [vmem:[%s3525 + $0x18] sm:$0xff]
  %v3530 = vld [vmem:[%s3525 + $0x20] sm:$0xff]
  %v3531 = vld [vmem:[%s3525 + $0x28] sm:$0xff]
  %v3532 = vld [vmem:[%s3525 + $0x30] sm:$0xff]
  %v3533 = vld [vmem:[%s3525 + $0x38] sm:$0xff]
  %v3534 = vld [vmem:[%s3525 + $0x40] sm:$0xff]
  %v3535 = vld [vmem:[%s3525 + $0x48] sm:$0xff]
  %v3536 = vld [vmem:[%s3525 + $0x50] sm:$0xff]
  %v3537 = vld [vmem:[%s3525 + $0x58] sm:$0xff]
  %3538 = vmatprep.subr.mxu0 %v870
  %3539 = vmatpush1.msra.mxu0 %v869
  %3540 = vmatprep.subr.mxu0 %v876
  %3541 = vmatpush1.msra.mxu0 %v875
  %3542 = vmatprep.subr.mxu0 %v882
  %3543 = vmatpush1.msra.mxu0 %v881
  %3544 = vmatprep.subr.mxu0 %v888
  %3545 = vmatpush1.msra.mxu0 %v887
  %3546 = vmatprep.subr.mxu0 %v894
  %3547 = vmatpush1.msra.mxu0 %v893
  %3548 = vmatprep.subr.mxu0 %v900
  %3549 = vmatpush1.msra.mxu0 %v899
  %3550 = vmatprep.subr.mxu0 %v906
  %3551 = vmatpush1.msra.mxu0 %v905
  %3552 = vmatprep.subr.mxu0 %v912
  %3553 = vmatpush1.msra.mxu0 %v911
  %3554 = vmatprep.subr.mxu0 %v918
  %3555 = vmatpush1.msra.mxu0 %v917
  %3556 = vmatprep.subr.mxu0 %v924
  %3557 = vmatpush1.msra.mxu0 %v923
  %3558 = vmatprep.subr.mxu0 %v930
  %3559 = vmatpush1.msra.mxu0 %v929
  %3560 = vmatprep.subr.mxu0 %v936
  %3561 = vmatpush1.msra.mxu0 %v935
  %3562 = vmatprep.subr.mxu0 %v942
  %3563 = vmatpush1.msra.mxu0 %v941
  %3564 = vmatprep.subr.mxu0 %v948
  %3565 = vmatpush1.msra.mxu0 %v947
  %3566 = vmatprep.subr.mxu0 %v954
  %3567 = vmatpush1.msra.mxu0 %v953
  %3568 = vmatprep.subr.mxu0 %v960
  %3569 = vmatpush1.msra.mxu0 %v959
  %3570 = vmatprep.subr.mxu0 %v966
  %3571 = vmatpush1.msra.mxu0 %v965
  %3572 = vmatprep.subr.mxu0 %v972
  %3573 = vmatpush1.msra.mxu0 %v971
  %3574 = vmatprep.subr.mxu0 %v978
  %3575 = vmatpush1.msra.mxu0 %v977
  %3576 = vmatprep.subr.mxu0 %v984
  %3577 = vmatpush1.msra.mxu0 %v983
  %3578 = vmatprep.subr.mxu0 %v990
  %3579 = vmatpush1.msra.mxu0 %v989
  %3580 = vmatprep.subr.mxu0 %v996
  %3581 = vmatpush1.msra.mxu0 %v995
  %3582 = vmatprep.subr.mxu0 %v1002
  %3583 = vmatpush1.msra.mxu0 %v1001
  %3584 = vmatprep.subr.mxu0 %v1008
  %3585 = vmatpush1.msra.mxu0 %v1007
  %3586 = vmatprep.subr.mxu0 %v1014
  %3587 = vmatpush1.msra.mxu0 %v1013
  %3588 = vmatprep.subr.mxu0 %v1020
  %3589 = vmatpush1.msra.mxu0 %v1019
  %3590 = vmatprep.subr.mxu0 %v1026
  %3591 = vmatpush1.msra.mxu0 %v1025
  %3592 = vmatprep.subr.mxu0 %v1032
  %3593 = vmatpush1.msra.mxu0 %v1031
  %3594 = vmatprep.subr.mxu0 %v1038
  %3595 = vmatpush1.msra.mxu0 %v1037
  %3596 = vmatprep.subr.mxu0 %v1044
  %3597 = vmatpush1.msra.mxu0 %v1043
  %3598 = vmatprep.subr.mxu0 %v1050
  %3599 = vmatpush1.msra.mxu0 %v1049
  %3600 = vmatprep.subr.mxu0 %v1056
  %3601 = vmatpush1.msra.mxu0 %v1055
  %3602 = vmatprep.mubr.f32.mxu0 %v3522
  %3603 = vmatmul.mubr.f32.gmra.mrb[0].mxu0 %v3521
  %v3604 = vpop.f32.mrb[0].mxu0
  %v3605 = vadd.f32 %v1066, %v3604
  %v3606 = vpop.f32.mrb[0].mxu0
  %v3607 = vadd.f32 %v1070, %v3606
  %3608 = vmatprep.mubr.f32.mxu0 %v3524
  %3609 = vmatmul.mubr.f32.gmra.mrb[0].mxu0 %v3523
  %v3610 = vpop.f32.mrb[0].mxu0
  %v3611 = vadd.f32 %v1066, %v3610
  %v3612 = vpop.f32.mrb[0].mxu0
  %v3613 = vadd.f32 %v1070, %v3612
  %3614 = vdwg.mxu0
  %3615 = vmatprep.subr.mxu0 %v872
  %3616 = vmatpush1.msra.mxu0 %v871
  %3617 = vmatprep.subr.mxu0 %v878
  %3618 = vmatpush1.msra.mxu0 %v877
  %3619 = vmatprep.subr.mxu0 %v884
  %3620 = vmatpush1.msra.mxu0 %v883
  %3621 = vmatprep.subr.mxu0 %v890
  %3622 = vmatpush1.msra.mxu0 %v889
  %3623 = vmatprep.subr.mxu0 %v896
  %3624 = vmatpush1.msra.mxu0 %v895
  %3625 = vmatprep.subr.mxu0 %v902
  %3626 = vmatpush1.msra.mxu0 %v901
  %3627 = vmatprep.subr.mxu0 %v908
  %3628 = vmatpush1.msra.mxu0 %v907
  %3629 = vmatprep.subr.mxu0 %v914
  %3630 = vmatpush1.msra.mxu0 %v913
  %3631 = vmatprep.subr.mxu0 %v920
  %3632 = vmatpush1.msra.mxu0 %v919
  %3633 = vmatprep.subr.mxu0 %v926
  %3634 = vmatpush1.msra.mxu0 %v925
  %3635 = vmatprep.subr.mxu0 %v932
  %3636 = vmatpush1.msra.mxu0 %v931
  %3637 = vmatprep.subr.mxu0 %v938
  %3638 = vmatpush1.msra.mxu0 %v937
  %3639 = vmatprep.subr.mxu0 %v944
  %3640 = vmatpush1.msra.mxu0 %v943
  %3641 = vmatprep.subr.mxu0 %v950
  %3642 = vmatpush1.msra.mxu0 %v949
  %3643 = vmatprep.subr.mxu0 %v956
  %3644 = vmatpush1.msra.mxu0 %v955
  %3645 = vmatprep.subr.mxu0 %v962
  %3646 = vmatpush1.msra.mxu0 %v961
  %3647 = vmatprep.subr.mxu0 %v968
  %3648 = vmatpush1.msra.mxu0 %v967
  %3649 = vmatprep.subr.mxu0 %v974
  %3650 = vmatpush1.msra.mxu0 %v973
  %3651 = vmatprep.subr.mxu0 %v980
  %3652 = vmatpush1.msra.mxu0 %v979
  %3653 = vmatprep.subr.mxu0 %v986
  %3654 = vmatpush1.msra.mxu0 %v985
  %3655 = vmatprep.subr.mxu0 %v992
  %3656 = vmatpush1.msra.mxu0 %v991
  %3657 = vmatprep.subr.mxu0 %v998
  %3658 = vmatpush1.msra.mxu0 %v997
  %3659 = vmatprep.subr.mxu0 %v1004
  %3660 = vmatpush1.msra.mxu0 %v1003
  %3661 = vmatprep.subr.mxu0 %v1010
  %3662 = vmatpush1.msra.mxu0 %v1009
  %3663 = vmatprep.subr.mxu0 %v1016
  %3664 = vmatpush1.msra.mxu0 %v1015
  %3665 = vmatprep.subr.mxu0 %v1022
  %3666 = vmatpush1.msra.mxu0 %v1021
  %3667 = vmatprep.subr.mxu0 %v1028
  %3668 = vmatpush1.msra.mxu0 %v1027
  %3669 = vmatprep.subr.mxu0 %v1034
  %3670 = vmatpush1.msra.mxu0 %v1033
  %3671 = vmatprep.subr.mxu0 %v1040
  %3672 = vmatpush1.msra.mxu0 %v1039
  %3673 = vmatprep.subr.mxu0 %v1046
  %3674 = vmatpush1.msra.mxu0 %v1045
  %3675 = vmatprep.subr.mxu0 %v1052
  %3676 = vmatpush1.msra.mxu0 %v1051
  %3677 = vmatprep.subr.mxu0 %v1058
  %3678 = vmatpush1.msra.mxu0 %v1057
  %3679 = vmatprep.mubr.f32.mxu0 %v3522
  %3680 = vmatmul.mubr.f32.gmra.mrb[0].mxu0 %v3521
  %v3681 = vpop.f32.mrb[0].mxu0
  %v3682 = vadd.f32 %v1074, %v3681
  %v3683 = vpop.f32.mrb[0].mxu0
  %v3684 = vadd.f32 %v1078, %v3683
  %3685 = vmatprep.mubr.f32.mxu0 %v3524
  %3686 = vmatmul.mubr.f32.gmra.mrb[0].mxu0 %v3523
  %v3687 = vpop.f32.mrb[0].mxu0
  %v3688 = vadd.f32 %v1074, %v3687
  %v3689 = vpop.f32.mrb[0].mxu0
  %v3690 = vadd.f32 %v1078, %v3689
  %3691 = vdwg.mxu0
  %3692 = vmatprep.subr.mxu0 %v874
  %3693 = vmatpush1.msra.mxu0 %v873
  %3694 = vmatprep.subr.mxu0 %v880
  %3695 = vmatpush1.msra.mxu0 %v879
  %3696 = vmatprep.subr.mxu0 %v886
  %3697 = vmatpush1.msra.mxu0 %v885
  %3698 = vmatprep.subr.mxu0 %v892
  %3699 = vmatpush1.msra.mxu0 %v891
  %3700 = vmatprep.subr.mxu0 %v898
  %3701 = vmatpush1.msra.mxu0 %v897
  %3702 = vmatprep.subr.mxu0 %v904
  %3703 = vmatpush1.msra.mxu0 %v903
  %3704 = vmatprep.subr.mxu0 %v910
  %3705 = vmatpush1.msra.mxu0 %v909
  %3706 = vmatprep.subr.mxu0 %v916
  %3707 = vmatpush1.msra.mxu0 %v915
  %3708 = vmatprep.subr.mxu0 %v922
  %3709 = vmatpush1.msra.mxu0 %v921
  %3710 = vmatprep.subr.mxu0 %v928
  %3711 = vmatpush1.msra.mxu0 %v927
  %3712 = vmatprep.subr.mxu0 %v934
  %3713 = vmatpush1.msra.mxu0 %v933
  %3714 = vmatprep.subr.mxu0 %v940
  %3715 = vmatpush1.msra.mxu0 %v939
  %3716 = vmatprep.subr.mxu0 %v946
  %3717 = vmatpush1.msra.mxu0 %v945
  %3718 = vmatprep.subr.mxu0 %v952
  %3719 = vmatpush1.msra.mxu0 %v951
  %3720 = vmatprep.subr.mxu0 %v958
  %3721 = vmatpush1.msra.mxu0 %v957
  %3722 = vmatprep.subr.mxu0 %v964
  %3723 = vmatpush1.msra.mxu0 %v963
  %3724 = vmatprep.subr.mxu0 %v970
  %3725 = vmatpush1.msra.mxu0 %v969
  %3726 = vmatprep.subr.mxu0 %v976
  %3727 = vmatpush1.msra.mxu0 %v975
  %3728 = vmatprep.subr.mxu0 %v982
  %3729 = vmatpush1.msra.mxu0 %v981
  %3730 = vmatprep.subr.mxu0 %v988
  %3731 = vmatpush1.msra.mxu0 %v987
  %3732 = vmatprep.subr.mxu0 %v994
  %3733 = vmatpush1.msra.mxu0 %v993
  %3734 = vmatprep.subr.mxu0 %v1000
  %3735 = vmatpush1.msra.mxu0 %v999
  %3736 = vmatprep.subr.mxu0 %v1006
  %3737 = vmatpush1.msra.mxu0 %v1005
  %3738 = vmatprep.subr.mxu0 %v1012
  %3739 = vmatpush1.msra.mxu0 %v1011
  %3740 = vmatprep.subr.mxu0 %v1018
  %3741 = vmatpush1.msra.mxu0 %v1017
  %3742 = vmatprep.subr.mxu0 %v1024
  %3743 = vmatpush1.msra.mxu0 %v1023
  %3744 = vmatprep.subr.mxu0 %v1030
  %3745 = vmatpush1.msra.mxu0 %v1029
  %3746 = vmatprep.subr.mxu0 %v1036
  %3747 = vmatpush1.msra.mxu0 %v1035
  %3748 = vmatprep.subr.mxu0 %v1042
  %3749 = vmatpush1.msra.mxu0 %v1041
  %3750 = vmatprep.subr.mxu0 %v1048
  %3751 = vmatpush1.msra.mxu0 %v1047
  %3752 = vmatprep.subr.mxu0 %v1054
  %3753 = vmatpush1.msra.mxu0 %v1053
  %3754 = vmatprep.subr.mxu0 %v1060
  %3755 = vmatpush1.msra.mxu0 %v1059
  %3756 = vmatprep.mubr.f32.mxu0 %v3522
  %3757 = vmatmul.mubr.f32.gmra.mrb[0].mxu0 %v3521
  %v3758 = vpop.f32.mrb[0].mxu0
  %v3759 = vadd.f32 %v1082, %v3758
  %v3760 = vpop.f32.mrb[0].mxu0
  %v3761 = vadd.f32 %v1086, %v3760
  %3762 = vmatprep.mubr.f32.mxu0 %v3524
  %3763 = vmatmul.mubr.f32.gmra.mrb[0].mxu0 %v3523
  %v3764 = vpop.f32.mrb[0].mxu0
  %v3765 = vadd.f32 %v1082, %v3764
  %v3766 = vpop.f32.mrb[0].mxu0
  %v3767 = vadd.f32 %v1086, %v3766
  %3768 = vdwg.mxu0
  %v3769 = vadd.f32 %v3526, %v3605
  %v3770 = vadd.f32 %v3527, %v3607
  %v3771 = vadd.f32 %v3532, %v3611
  %v3772 = vadd.f32 %v3533, %v3613
  %v3773 = vxor.u32 %v3769, 2147483648
  %v3774 = vxor.u32 %v3770, 2147483648
  %v3775 = vxor.u32 %v3771, 2147483648
  %v3776 = vxor.u32 %v3772, 2147483648
  %v3777 = vmul.f32 %v3773, 1.442695
  %v3778 = vpow.pop %v3777
  %v3779 = vmul.f32 %v3774, 1.442695
  %v3780 = vpow.pop %v3779
  %v3781 = vmul.f32 %v3775, 1.442695
  %v3782 = vpow.pop %v3781
  %v3783 = vmul.f32 %v3776, 1.442695
  %v3784 = vpow.pop %v3783
  %v3785 = vadd.f32 %v3778, 1.0
  %v3786 = vadd.f32 %v3780, 1.0
  %v3787 = vadd.f32 %v3782, 1.0
  %v3788 = vadd.f32 %v3784, 1.0
  %v3789 = vrcp.pop %v3785
  %v3790 = vmul.f32 1.0, %v3789
  %v3791 = vrcp.pop %v3786
  %v3792 = vmul.f32 1.0, %v3791
  %v3793 = vrcp.pop %v3787
  %v3794 = vmul.f32 1.0, %v3793
  %v3795 = vrcp.pop %v3788
  %v3796 = vmul.f32 1.0, %v3795
  %v3797 = vadd.f32 %v3528, %v3682
  %v3798 = vadd.f32 %v3529, %v3684
  %v3799 = vadd.f32 %v3534, %v3688
  %v3800 = vadd.f32 %v3535, %v3690
  %v3801 = vxor.u32 %v3797, 2147483648
  %v3802 = vxor.u32 %v3798, 2147483648
  %v3803 = vxor.u32 %v3799, 2147483648
  %v3804 = vxor.u32 %v3800, 2147483648
  %v3805 = vmul.f32 %v3801, 1.442695
  %v3806 = vpow.pop %v3805
  %v3807 = vmul.f32 %v3802, 1.442695
  %v3808 = vpow.pop %v3807
  %v3809 = vmul.f32 %v3803, 1.442695
  %v3810 = vpow.pop %v3809
  %v3811 = vmul.f32 %v3804, 1.442695
  %v3812 = vpow.pop %v3811
  %v3813 = vadd.f32 %v3806, 1.0
  %v3814 = vadd.f32 %v3808, 1.0
  %v3815 = vadd.f32 %v3810, 1.0
  %v3816 = vadd.f32 %v3812, 1.0
  %v3817 = vrcp.pop %v3813
  %v3818 = vmul.f32 1.0, %v3817
  %v3819 = vrcp.pop %v3814
  %v3820 = vmul.f32 1.0, %v3819
  %v3821 = vrcp.pop %v3815
  %v3822 = vmul.f32 1.0, %v3821
  %v3823 = vrcp.pop %v3816
  %v3824 = vmul.f32 1.0, %v3823
  %v3825 = vmul.f32 %v3790, %v3759
  %v3826 = vmul.f32 %v3792, %v3761
  %v3827 = vmul.f32 %v3794, %v3765
  %v3828 = vmul.f32 %v3796, %v3767
  %v3829 = vadd.f32 %v3530, %v3825
  %v3830 = vadd.f32 %v3531, %v3826
  %v3831 = vadd.f32 %v3536, %v3827
  %v3832 = vadd.f32 %v3537, %v3828
  %v3833 = vtanh.pop %v3829
  %v3834 = vtanh.pop %v3830
  %v3835 = vtanh.pop %v3831
  %v3836 = vtanh.pop %v3832
  %v3837 = vsub.f32 1.0, %v3818
  %v3838 = vsub.f32 1.0, %v3820
  %v3839 = vsub.f32 1.0, %v3822
  %v3840 = vsub.f32 1.0, %v3824
  %v3841 = vmul.f32 %v3837, %v3833
  %v3842 = vmul.f32 %v3838, %v3834
  %v3843 = vmul.f32 %v3839, %v3835
  %v3844 = vmul.f32 %v3840, %v3836
  %v3845 = vmul.f32 %v3818, %v3521
  %v3846 = vmul.f32 %v3820, %v3522
  %v3847 = vmul.f32 %v3822, %v3523
  %v3848 = vmul.f32 %v3824, %v3524
  %v3849 = vadd.f32 %v3841, %v3845
  %v3850 = vadd.f32 %v3842, %v3846
  %v3851 = vadd.f32 %v3843, %v3847
  %v3852 = vadd.f32 %v3844, %v3848
  %s3853 = sadd.s32 %s1093, 7
  %p3854 = scmp.lt.s32.totalorder %s3853, 8
  %s3855 = scalar_select %p3854, 1, 0
  %s3856 = scvt.s32.f32 %s3855
  %v3857 = vstv %s3856
  %v3858 = vmul.f32 %v3857, %v3849
  %v3859 = vmul.f32 %v3857, %v3850
  %v3860 = vmul.f32 %v3857, %v3851
  %v3861 = vmul.f32 %v3857, %v3852
  %s3862 = ssub.f32 1.0, %s3856
  %v3863 = vstv %s3862
  %v3864 = vmul.f32 %v3863, %v3521
  %v3865 = vmul.f32 %v3863, %v3522
  %v3866 = vmul.f32 %v3863, %v3523
  %v3867 = vmul.f32 %v3863, %v3524
  %v3868 = vadd.f32 %v3858, %v3864
  %v3869 = vadd.f32 %v3859, %v3865
  %v3870 = vadd.f32 %v3860, %v3866
  %v3871 = vadd.f32 %v3861, %v3867
  %3872 = vst [vmem:[#allocation2] sm:$0xff] %v3868
  %3873 = vst [vmem:[#allocation2 + $0x8] sm:$0xff] %v3869
  %3874 = vst [vmem:[#allocation2 + $0x10] sm:$0xff] %v3870
  %3875 = vst [vmem:[#allocation2 + $0x18] sm:$0xff] %v3871
  // Predicated region
  $region34: #{glove_multi_attention_forward.1} parent=0 // pred_check
    %p3876 = pneg %p26
  $region35: #{glove_multi_attention_forward.1} parent=0 // pred_check_branch
    %3878 = sbr.rel (%p3876) target = $region37
  $region36: #{glove_multi_attention_forward.1} parent=0 // pred_region
    %v3879 = vld [vmem:[#allocation2] sm:$0xff]
    %v3880 = vld [vmem:[#allocation2 + $0x8] sm:$0xff]
    %v3881 = vld [vmem:[#allocation2 + $0x10] sm:$0xff]
    %v3882 = vld [vmem:[#allocation2 + $0x18] sm:$0xff]
    %v3883 = vld [vmem:[%s5] sm:$0xff]
    %v3884 = vld [vmem:[%s5 + $0x8] sm:$0xff]
    %v3885 = vld [vmem:[%s5 + $0x10] sm:$0xff]
    %v3886 = vld [vmem:[%s5 + $0x18] sm:$0xff]
    %v3887 = vld [vmem:[%s5 + $0x20] sm:$0xff]
    %v3888 = vld [vmem:[%s5 + $0x28] sm:$0xff]
    %v3889 = vld [vmem:[%s5 + $0x30] sm:$0xff]
    %v3890 = vld [vmem:[%s5 + $0x38] sm:$0xff]
    %v3891 = vld [vmem:[%s5 + $0x40] sm:$0xff]
    %v3892 = vld [vmem:[%s5 + $0x48] sm:$0xff]
    %v3893 = vld [vmem:[%s5 + $0x50] sm:$0xff]
    %v3894 = vld [vmem:[%s5 + $0x58] sm:$0xff]
    %v3895 = vld [vmem:[%s5 + $0x60] sm:$0xff]
    %v3896 = vld [vmem:[%s5 + $0x68] sm:$0xff]
    %v3897 = vld [vmem:[%s5 + $0x70] sm:$0xff]
    %v3898 = vld [vmem:[%s5 + $0x78] sm:$0xff]
    %v3899 = vld [vmem:[%s5 + $0x80] sm:$0xff]
    %v3900 = vld [vmem:[%s5 + $0x88] sm:$0xff]
    %v3901 = vld [vmem:[%s5 + $0x90] sm:$0xff]
    %v3902 = vld [vmem:[%s5 + $0x98] sm:$0xff]
    %v3903 = vld [vmem:[%s5 + $0xa0] sm:$0xff]
    %v3904 = vld [vmem:[%s5 + $0xa8] sm:$0xff]
    %v3905 = vld [vmem:[%s5 + $0xb0] sm:$0xff]
    %v3906 = vld [vmem:[%s5 + $0xb8] sm:$0xff]
    %v3907 = vld [vmem:[%s5 + $0xc0] sm:$0xff]
    %v3908 = vld [vmem:[%s5 + $0xc8] sm:$0xff]
    %v3909 = vld [vmem:[%s5 + $0xd0] sm:$0xff]
    %v3910 = vld [vmem:[%s5 + $0xd8] sm:$0xff]
    %v3911 = vld [vmem:[%s5 + $0xe0] sm:$0xff]
    %v3912 = vld [vmem:[%s5 + $0xe8] sm:$0xff]
    %v3913 = vld [vmem:[%s5 + $0xf0] sm:$0xff]
    %v3914 = vld [vmem:[%s5 + $0xf8] sm:$0xff]
    %v3915 = vld [vmem:[%s6] sm:$0x1]
    %v3917 = vlaneseq
    %v3918 = vshrl.u32 %v3917, 7
    %v3919 = vsub.s32 0, %v3918
    %v3920 = vrot.slane %v3915, %v3919
    %3922 = vmatprep.subr.mxu0 0.0
    %3923 = vmatpush1.msra.mxu0 %v3883
    %3924 = vmatprep.subr.mxu0 0.0
    %3925 = vmatpush1.msra.mxu0 %v3884
    %3926 = vmatprep.subr.mxu0 0.0
    %3927 = vmatpush1.msra.mxu0 %v3885
    %3928 = vmatprep.subr.mxu0 0.0
    %3929 = vmatpush1.msra.mxu0 %v3886
    %3930 = vmatprep.subr.mxu0 0.0
    %3931 = vmatpush1.msra.mxu0 %v3887
    %3932 = vmatprep.subr.mxu0 0.0
    %3933 = vmatpush1.msra.mxu0 %v3888
    %3934 = vmatprep.subr.mxu0 0.0
    %3935 = vmatpush1.msra.mxu0 %v3889
    %3936 = vmatprep.subr.mxu0 0.0
    %3937 = vmatpush1.msra.mxu0 %v3890
    %3938 = vmatprep.subr.mxu0 0.0
    %3939 = vmatpush1.msra.mxu0 %v3891
    %3940 = vmatprep.subr.mxu0 0.0
    %3941 = vmatpush1.msra.mxu0 %v3892
    %3942 = vmatprep.subr.mxu0 0.0
    %3943 = vmatpush1.msra.mxu0 %v3893
    %3944 = vmatprep.subr.mxu0 0.0
    %3945 = vmatpush1.msra.mxu0 %v3894
    %3946 = vmatprep.subr.mxu0 0.0
    %3947 = vmatpush1.msra.mxu0 %v3895
    %3948 = vmatprep.subr.mxu0 0.0
    %3949 = vmatpush1.msra.mxu0 %v3896
    %3950 = vmatprep.subr.mxu0 0.0
    %3951 = vmatpush1.msra.mxu0 %v3897
    %3952 = vmatprep.subr.mxu0 0.0
    %3953 = vmatpush1.msra.mxu0 %v3898
    %3954 = vmatprep.subr.mxu0 0.0
    %3955 = vmatpush1.msra.mxu0 %v3899
    %3956 = vmatprep.subr.mxu0 0.0
    %3957 = vmatpush1.msra.mxu0 %v3900
    %3958 = vmatprep.subr.mxu0 0.0
    %3959 = vmatpush1.msra.mxu0 %v3901
    %3960 = vmatprep.subr.mxu0 0.0
    %3961 = vmatpush1.msra.mxu0 %v3902
    %3962 = vmatprep.subr.mxu0 0.0
    %3963 = vmatpush1.msra.mxu0 %v3903
    %3964 = vmatprep.subr.mxu0 0.0
    %3965 = vmatpush1.msra.mxu0 %v3904
    %3966 = vmatprep.subr.mxu0 0.0
    %3967 = vmatpush1.msra.mxu0 %v3905
    %3968 = vmatprep.subr.mxu0 0.0
    %3969 = vmatpush1.msra.mxu0 %v3906
    %3970 = vmatprep.subr.mxu0 0.0
    %3971 = vmatpush1.msra.mxu0 %v3907
    %3972 = vmatprep.subr.mxu0 0.0
    %3973 = vmatpush1.msra.mxu0 %v3908
    %3974 = vmatprep.subr.mxu0 0.0
    %3975 = vmatpush1.msra.mxu0 %v3909
    %3976 = vmatprep.subr.mxu0 0.0
    %3977 = vmatpush1.msra.mxu0 %v3910
    %3978 = vmatprep.subr.mxu0 0.0
    %3979 = vmatpush1.msra.mxu0 %v3911
    %3980 = vmatprep.subr.mxu0 0.0
    %3981 = vmatpush1.msra.mxu0 %v3912
    %3982 = vmatprep.subr.mxu0 0.0
    %3983 = vmatpush1.msra.mxu0 %v3913
    %3984 = vmatprep.subr.mxu0 0.0
    %3985 = vmatpush1.msra.mxu0 %v3914
    %3986 = vmatprep.mubr.f32.mxu0 %v3880
    %3987 = vmatmul.mubr.f32.gmra.mrb[0].mxu0 %v3879
    %v3988 = vpop.f32.mrb[0].mxu0
    %v3989 = vadd.f32 %v3920, %v3988
    %v3990 = vpop.f32.mrb[0].mxu0
    %3991 = vmatprep.mubr.f32.mxu0 %v3882
    %3992 = vmatmul.mubr.f32.gmra.mrb[0].mxu0 %v3881
    %v3993 = vpop.f32.mrb[0].mxu0
    %v3994 = vadd.f32 %v3920, %v3993
    %v3995 = vpop.f32.mrb[0].mxu0
    %3996 = vdwg.mxu0
    %3997 = vmax.xlane.f32.xlu0 %v3989
    %v3998 = vpop.xlane.xlu0 %3997
    %3999 = vmax.xlane.f32.xlu0 %v3994
    %v4000 = vpop.xlane.xlu0 %3999
    %v4001 = vsub.f32 %v3989, %v3998
    %v4002 = vsub.f32 %v3994, %v4000
    %v4003 = vmul.f32 %v4001, 1.442695
    %v4004 = vpow.pop %v4003
    %v4005 = vmul.f32 %v4002, 1.442695
    %v4006 = vpow.pop %v4005
    %4007 = vadd.xlane.f32.xlu0 %v4004
    %v4008 = vpop.xlane.xlu0 %4007
    %4009 = vadd.xlane.f32.xlu0 %v4006
    %v4010 = vpop.xlane.xlu0 %4009
    %v4011 = vrcp.pop %v4008
    %v4012 = vmul.f32 %v4004, %v4011
    %v4013 = vrcp.pop %v4010
    %v4014 = vmul.f32 %v4006, %v4013
    %4015 = vst [vmem:[%s7] sm:$0xff] %v4012
    %4016 = vst [vmem:[%s7 + $0x8] sm:$0xff] %v4014
  $region37: #{glove_multi_attention_forward.1} parent=0 // pred_fallthru
    _
  // Predicated region
  $region38: #{glove_multi_attention_forward.1} parent=0 // pred_check
    _
  $region39: #{glove_multi_attention_forward.1} parent=0 // pred_check_branch
    %4018 = sbr.rel (0) target = $region41
  $region40: #{glove_multi_attention_forward.1} parent=0 // pred_region
    _
  $region41: #{glove_multi_attention_forward.1} parent=0 // pred_fallthru
    _
  // Predicated region
  $region42: #{glove_multi_attention_forward.1} parent=0 // pred_check
    _
  $region43: #{glove_multi_attention_forward.1} parent=0 // pred_check_branch
    %4020 = sbr.rel (0) target = $region45
  $region44: #{glove_multi_attention_forward.1} parent=0 // pred_region
    _
  $region45: #{glove_multi_attention_forward.1} parent=0 // pred_fallthru
    _

</llo_original>
